<compile_context>
chip_gen: v7x
topology: tpu7x:2x2x1
jax: 0.10.0
libtpu: 0.0.40
codegen_flags: <defaults>
</compile_context>

<pallas_src>
import functools
import math

import jax
import jax.numpy as jnp
from jax.experimental import pallas as pl
from jax.experimental.pallas import tpu as pltpu


# ----------------------------- in-kernel helpers -----------------------------

def _layernorm(x, g, b, eps=1e-5):
    mu = jnp.mean(x, axis=-1, keepdims=True)
    var = jnp.mean((x - mu) ** 2, axis=-1, keepdims=True)
    return (x - mu) * jax.lax.rsqrt(var + eps) * g + b


def _mish(x):
    # x * tanh(softplus(x)) rewritten with a single transcendental:
    #   tanh(softplus(x)) = 1 - 2 / ((1 + e^x)^2 + 1)
    # exp goes to the EUP; the divide becomes an approximate EUP reciprocal.
    ex = jnp.exp(x)
    t = 1.0 + ex
    return x * (1.0 - 2.0 * pl.reciprocal(t * t + 1.0, approx=True))


def _softmax_last(x):
    m = jnp.max(x, axis=-1, keepdims=True)
    e = jnp.exp(x - m)
    return e * pl.reciprocal(jnp.sum(e, axis=-1, keepdims=True), approx=True)


# ------------------------------- Pallas kernels -------------------------------

def embed_pe_kernel(emb_ref, w_ref, b_ref, pe_ref, out_ref, *, B, S, E, H):
    # factorized-embedding projection (E->H) + positional-encoding add
    x = emb_ref[...].reshape(B * S, E).astype(jnp.bfloat16)
    y = jnp.dot(x, w_ref[...], preferred_element_type=jnp.float32) + b_ref[...]
    # TODO(synk): PositionalEncoding dropout (p=0.2) is identity in eval mode.
    out_ref[...] = y.reshape(B, S, H) + pe_ref[...][None, :, :]


def encoder_stack_kernel(x_ref,
                         wq, bq, wk, bk, wv, bv, wo, bo,
                         mln_g, mln_b,
                         f0_w1, f0_b1, f0_lng, f0_lnb, f0_w2, f0_b2,
                         ln0_g, ln0_b,
                         f1_w1, f1_b1, f1_lng, f1_lnb, f1_w2, f1_b2,
                         ln1_g, ln1_b,
                         lin2_w, lin2_b, ln2_g, ln2_b,
                         ps_ref,
                         out_ref, carry,
                         *, S, H, NH):
    DH = H // NH
    scale = 1.0 / math.sqrt(DH)
    layer = pl.program_id(1)

    # load this batch's token block into the layer carry at shared-layer 0
    @pl.when(layer == 0)
    def _():
        carry[...] = x_ref[...]

    x = carry[...]                                   # [S, H] f32
    xb = x.astype(jnp.bfloat16)
    xh = jnp.broadcast_to(xb[None], (NH, S, H))      # head-batched view

    # --- multi-head self attention: one batched contraction per stage ---
    q = jnp.einsum('nsh,nhd->nsd', xh, wq[...],
                   preferred_element_type=jnp.float32) + bq[...]
    k = jnp.einsum('nsh,nhd->nsd', xh, wk[...],
                   preferred_element_type=jnp.float32) + bk[...]
    v = jnp.einsum('nsh,nhd->nsd', xh, wv[...],
                   preferred_element_type=jnp.float32) + bv[...]
    q = q * scale                                    # nn.MultiheadAttention q-scaling

    s = jnp.einsum('nqd,nkd->nqk',
                   q.astype(jnp.bfloat16), k.astype(jnp.bfloat16),
                   preferred_element_type=jnp.float32)
    # TODO(synk): attention dropout (p=0.2) is identity in eval mode.
    p = _softmax_last(s)
    o = jnp.einsum('nqk,nkd->nqd',
                   p.astype(jnp.bfloat16), v.astype(jnp.bfloat16),
                   preferred_element_type=jnp.float32)
    # output projection: concat-heads @ Wo == sum over heads of o_h @ Wo_h
    a = jnp.einsum('nqd,ndh->nqh',
                   o.astype(jnp.bfloat16), wo[...],
                   preferred_element_type=jnp.float32)
    a = jnp.sum(a, axis=0) + bo[...]                 # [S, H]

    main_ln = _layernorm(a + x, mln_g[...], mln_b[...])

    # --- FeedForward: liner1 -> LN(4H) -> Mish -> (dropout) -> liner2 -> Mish ---
    # TODO(synk): FeedForward dropout (p=0.2) is identity in eval mode.
    def ff(z, w1, b1, lng, lnb, w2, b2):
        t = jnp.dot(z.astype(jnp.bfloat16), w1[...],
                    preferred_element_type=jnp.float32) + b1[...]
        t = _mish(_layernorm(t, lng[...], lnb[...]))
        t = jnp.dot(t.astype(jnp.bfloat16), w2[...],
                    preferred_element_type=jnp.float32) + b2[...]
        return _mish(t)

    # branch 0: attention path + FFN
    ln0 = _layernorm(
        ff(main_ln, f0_w1, f0_b1, f0_lng, f0_lnb, f0_w2, f0_b2) + main_ln,
        ln0_g[...], ln0_b[...])
    # branch 1: FFN directly on x
    ln1 = _layernorm(
        ff(x, f1_w1, f1_b1, f1_lng, f1_lnb, f1_w2, f1_b2) + x,
        ln1_g[...], ln1_b[...])
    # branch 2: linear + Mish on x
    t2 = jnp.dot(xb, lin2_w[...], preferred_element_type=jnp.float32) + lin2_b[...]
    ln2 = _layernorm(_mish(t2) + x, ln2_g[...], ln2_b[...])

    # learned mixing weights (softmax of p1,p2,p3 computed in glue, SMEM scalars)
    y = ln0 * ps_ref[0] + ln1 * ps_ref[1] + ln2 * ps_ref[2]
    carry[...] = y

    @pl.when(layer == pl.num_programs(1) - 1)
    def _():
        out_ref[...] = y


def head_kernel(x_ref, bn_g, bn_b, bn_rm, bn_rv, w_ref, b_ref, out_ref, acc_ref,
                *, L):
    k = pl.program_id(0)

    @pl.when(k == 0)
    def _():
        acc_ref[...] = jnp.zeros_like(acc_ref)

    # TODO(synk): BatchNorm1d uses eval-mode running stats (not batch stats).
    eps = 1e-5
    x = x_ref[...]                                                   # [B, Kt]
    xn = (x - bn_rm[...]) * jax.lax.rsqrt(bn_rv[...] + eps) * bn_g[...] + bn_b[...]
    z = _mish(xn)
    acc_ref[...] += jnp.dot(z.astype(jnp.bfloat16), w_ref[...],
                            preferred_element_type=jnp.float32)

    @pl.when(k == pl.num_programs(0) - 1)
    def _():
        logits = acc_ref[...] + b_ref[...]
        lane = jax.lax.broadcasted_iota(jnp.int32, logits.shape, 1)
        logits = jnp.where(lane < L, logits, -1e30)                  # mask pad lanes
        m = jnp.max(logits, axis=-1, keepdims=True)
        e = jnp.exp(logits - m)
        # exact division so class probabilities sum to 1 at f32 precision
        out_ref[...] = e / jnp.sum(e, axis=-1, keepdims=True)


# ------------------------------- wrappers -------------------------------

_VSPEC = pl.BlockSpec(memory_space=pltpu.MemorySpace.VMEM)
_SSPEC = pl.BlockSpec(memory_space=pltpu.MemorySpace.SMEM)


def run_embed_pe(emb, w, b, pe):
    B, S, E = emb.shape
    H = w.shape[1]
    return pl.pallas_call(
        functools.partial(embed_pe_kernel, B=B, S=S, E=E, H=H),
        out_shape=jax.ShapeDtypeStruct((B, S, H), jnp.float32),
        in_specs=[_VSPEC] * 4,
        out_specs=_VSPEC,
    )(emb, w, b, pe)


def run_encoder_stack(x, enc, ps, *, num_heads, layers):
    """Apply one TransformerEncoder `layers` times (ALBERT weight sharing)
    inside a single pallas_call: grid=(batch, layers), weights stay resident."""
    B, S, H = x.shape

    def full_spec(p):
        return pl.BlockSpec(p.shape, lambda b, l, nd=p.ndim: (0,) * nd)

    x_spec = pl.BlockSpec((None, S, H), lambda b, l: (b, 0, 0))
    out_spec = pl.BlockSpec((None, S, H), lambda b, l: (b, 0, 0))

    grid_spec = pltpu.PrefetchScalarGridSpec(
        num_scalar_prefetch=0,
        grid=(B, layers),
        in_specs=[x_spec] + [full_spec(p) for p in enc] + [_SSPEC],
        out_specs=out_spec,
        scratch_shapes=[pltpu.VMEM((S, H), jnp.float32)],   # layer carry
    )
    return pl.pallas_call(
        functools.partial(encoder_stack_kernel, S=S, H=H, NH=num_heads),
        out_shape=jax.ShapeDtypeStruct((B, S, H), jnp.float32),
        grid_spec=grid_spec,
        compiler_params=pltpu.CompilerParams(
            dimension_semantics=("parallel", "arbitrary"),
            vmem_limit_bytes=64 * 1024 * 1024),
    )(x, *enc, ps)


def _pick_block_k(K):
    for cand in (512, 256, 128):
        if K % cand == 0 and K // cand >= 2:
            return cand
    return K


def run_head(flat, bn_g, bn_b, bn_rm, bn_rv, lin_w, lin_b, *, num_labels):
    B, K = flat.shape
    Lp = lin_w.shape[1]
    bk = _pick_block_k(K)

    grid_spec = pltpu.PrefetchScalarGridSpec(
        num_scalar_prefetch=0,
        grid=(K // bk,),
        in_specs=[
            pl.BlockSpec((B, bk), lambda k: (0, k)),
            pl.BlockSpec((1, bk), lambda k: (0, k)),
            pl.BlockSpec((1, bk), lambda k: (0, k)),
            pl.BlockSpec((1, bk), lambda k: (0, k)),
            pl.BlockSpec((1, bk), lambda k: (0, k)),
            pl.BlockSpec((bk, Lp), lambda k: (k, 0)),
            pl.BlockSpec((1, Lp), lambda k: (0, 0)),
        ],
        out_specs=pl.BlockSpec((B, Lp), lambda k: (0, 0)),
        scratch_shapes=[pltpu.VMEM((B, Lp), jnp.float32)],
    )
    out = pl.pallas_call(
        functools.partial(head_kernel, L=num_labels),
        out_shape=jax.ShapeDtypeStruct((B, Lp), jnp.float32),
        grid_spec=grid_spec,
        compiler_params=pltpu.CompilerParams(dimension_semantics=("arbitrary",)),
    )(flat, bn_g, bn_b, bn_rm, bn_rv, lin_w, lin_b)
    return out[:, :num_labels]


# ------------------------------- parameters -------------------------------

def init_albert_params(key, vocab_size, embed_size, hidden_size, num_heads,
                       sequence_len, num_encoder, num_labels):
    H, E, S, L, NH = hidden_size, embed_size, sequence_len, num_labels, num_heads
    DH = H // NH
    Lp = ((L + 127) // 128) * 128

    def nrm(k, shape, scale=0.02):
        return (scale * jax.random.normal(k, shape)).astype(jnp.float32)

    keys = jax.random.split(key, 3 + num_encoder)

    emb_table = nrm(keys[0], (vocab_size + 1, E), 0.1)
    emb_table = emb_table.at[0].set(0.0)          # padding_idx=0 row is zero

    w_proj = nrm(keys[1], (E, H)).astype(jnp.bfloat16)
    b_proj = jnp.zeros((1, H), jnp.float32)

    # sinusoidal positional encoding (same interleaved sin/cos as the PyTorch module)
    pos = jnp.arange(S, dtype=jnp.float32)[:, None]
    div = jnp.exp(jnp.arange(0, H, 2, dtype=jnp.float32) * (-math.log(10000.0) / H))
    pe = jnp.stack([jnp.sin(pos * div), jnp.cos(pos * div)], axis=-1).reshape(S, H)
    pe = pe.astype(jnp.float32)

    def head_cols(w):      # [H, H] -> [NH, H, DH]  (per-head output columns)
        return jnp.transpose(w.reshape(H, NH, DH), (1, 0, 2))

    encoders = []
    for e in range(num_encoder):
        ek = jax.random.split(keys[2 + e], 9)
        enc = [
            head_cols(nrm(ek[0], (H, H))).astype(jnp.bfloat16),            # wq [NH,H,DH]
            jnp.zeros((NH, 1, DH), jnp.float32),                           # bq
            head_cols(nrm(ek[1], (H, H))).astype(jnp.bfloat16),            # wk
            jnp.zeros((NH, 1, DH), jnp.float32),                           # bk
            head_cols(nrm(ek[2], (H, H))).astype(jnp.bfloat16),            # wv
            jnp.zeros((NH, 1, DH), jnp.float32),                           # bv
            nrm(ek[3], (H, H)).reshape(NH, DH, H).astype(jnp.bfloat16),    # wo [NH,DH,H]
            jnp.zeros((1, H), jnp.float32),                                # bo
            jnp.ones((1, H), jnp.float32), jnp.zeros((1, H), jnp.float32),           # mulLn
            nrm(ek[4], (H, 4 * H)).astype(jnp.bfloat16), jnp.zeros((1, 4 * H), jnp.float32),  # fft0 w1 b1
            jnp.ones((1, 4 * H), jnp.float32), jnp.zeros((1, 4 * H), jnp.float32),            # fft0 ln
            nrm(ek[5], (4 * H, H)).astype(jnp.bfloat16), jnp.zeros((1, H), jnp.float32),      # fft0 w2 b2
            jnp.ones((1, H), jnp.float32), jnp.zeros((1, H), jnp.float32),           # ln0
            nrm(ek[6], (H, 4 * H)).astype(jnp.bfloat16), jnp.zeros((1, 4 * H), jnp.float32),  # fft1 w1 b1
            jnp.ones((1, 4 * H), jnp.float32), jnp.zeros((1, 4 * H), jnp.float32),            # fft1 ln
            nrm(ek[7], (4 * H, H)).astype(jnp.bfloat16), jnp.zeros((1, H), jnp.float32),      # fft1 w2 b2
            jnp.ones((1, H), jnp.float32), jnp.zeros((1, H), jnp.float32),           # ln1
            nrm(ek[8], (H, H)).astype(jnp.bfloat16), jnp.zeros((1, H), jnp.float32), # linear2
            jnp.ones((1, H), jnp.float32), jnp.zeros((1, H), jnp.float32),           # ln2
        ]
        encoders.append(enc)

    # p1, p2, p3 initialized to 0.0  ->  softmax gives 1/3 each
    ps = jax.nn.softmax(jnp.zeros((3,), jnp.float32))

    # classifier weight padded to 128 output lanes (lane-dense stores); pad cols are 0
    w_head = nrm(keys[2 + num_encoder], (S * H, L))
    head_lin_w = jnp.zeros((S * H, Lp), jnp.float32).at[:, :L].set(w_head)
    head_lin_w = head_lin_w.astype(jnp.bfloat16)
    head_lin_b = jnp.zeros((1, Lp), jnp.float32)

    bn = [jnp.ones((1, S * H), jnp.float32),   # gamma
          jnp.zeros((1, S * H), jnp.float32),  # beta
          jnp.zeros((1, S * H), jnp.float32),  # running_mean
          jnp.ones((1, S * H), jnp.float32)]   # running_var

    return dict(emb_table=emb_table, w_proj=w_proj, b_proj=b_proj, pe=pe,
                encoders=encoders, ps=ps,
                head_lin_w=head_lin_w, head_lin_b=head_lin_b, bn=bn)


# ------------------------------- forward pass -------------------------------

def albert_forward(token_ids, params, *, num_heads, encoder_layers, num_encoder,
                   num_labels):
    # embedding lookup is glue (gather); projection + PE add are in-kernel
    emb = jnp.take(params["emb_table"], token_ids, axis=0)          # [B, S, E]
    x = run_embed_pe(emb, params["w_proj"], params["b_proj"], params["pe"])

    summed = None
    for e in range(num_encoder):
        t = run_encoder_stack(x, params["encoders"][e], params["ps"],
                              num_heads=num_heads, layers=encoder_layers)
        summed = t if summed is None else summed + t                # add_nTensors

    B, S, H = summed.shape
    flat = summed.reshape(B, S * H)
    return run_head(flat, *params["bn"],
                    params["head_lin_w"], params["head_lin_b"],
                    num_labels=num_labels)


# ------------------------------- main -------------------------------

if __name__ == "__main__":
    vocab_size = 50
    embed_size = 16
    hidden_size = 32
    num_heads = 4
    sequence_len = 8
    encoder_layers = 2
    num_encoder = 2
    num_labels = 5
    batch = 2

    key = jax.random.PRNGKey(0)
    pkey, dkey = jax.random.split(key)

    params = init_albert_params(pkey, vocab_size, embed_size, hidden_size,
                                num_heads, sequence_len, num_encoder, num_labels)

    token_ids = jax.random.randint(dkey, (batch, sequence_len),
                                   0, vocab_size + 1, dtype=jnp.int32)

    fwd = jax.jit(functools.partial(albert_forward,
                                    num_heads=num_heads,
                                    encoder_layers=encoder_layers,
                                    num_encoder=num_encoder,
                                    num_labels=num_labels))
    out = jax.block_until_ready(fwd(token_ids, params))

    assert out.shape == (batch, num_labels), out.shape
    assert bool(jnp.all(jnp.isfinite(out)))
    # softmax rows sum to 1
    assert bool(jnp.allclose(jnp.sum(out, axis=-1), 1.0, atol=1e-5))
    print("KERNEL_OK")
</pallas_src>

<mosaic_0001>
module attributes {stable_mosaic.version = 11 : i64} {
  func.func @embed_pe_kernel(%arg0: memref<2x8x16xf32, #tpu.memory_space<vmem>>, %arg1: memref<16x32xbf16, #tpu.memory_space<vmem>>, %arg2: memref<1x32xf32, #tpu.memory_space<vmem>>, %arg3: memref<8x32xf32, #tpu.memory_space<vmem>>, %arg4: memref<2x8x32xf32, #tpu.memory_space<vmem>>) attributes {dimension_semantics = [], scalar_prefetch = 0 : i64, scratch_operands = 0 : i64, tpu.core_type = #tpu.core_type<tc>} {
    %c0 = arith.constant 0 : index
    %c0_0 = arith.constant 0 : index
    %c0_1 = arith.constant 0 : index
    %0 = vector.load %arg0[%c0, %c0_0, %c0_1] : memref<2x8x16xf32, #tpu.memory_space<vmem>>, vector<2x8x16xf32>
    %1 = vector.shape_cast %0 : vector<2x8x16xf32> to vector<16x16xf32>
    %2 = arith.truncf %1 : vector<16x16xf32> to vector<16x16xbf16>
    %c0_2 = arith.constant 0 : index
    %c0_3 = arith.constant 0 : index
    %3 = vector.load %arg1[%c0_2, %c0_3] : memref<16x32xbf16, #tpu.memory_space<vmem>>, vector<16x32xbf16>
    %cst = arith.constant dense<0.000000e+00> : vector<16x32xf32>
    %4 = tpu.matmul %2, %3, %cst {dimension_numbers = #tpu.dot_dimension_numbers<[1], [0], [0], [1], [0, 0, 1, 1], [], []>} : vector<16x16xbf16>, vector<16x32xbf16>, vector<16x32xf32> -> vector<16x32xf32>
    %c0_4 = arith.constant 0 : index
    %c0_5 = arith.constant 0 : index
    %5 = vector.load %arg2[%c0_4, %c0_5] : memref<1x32xf32, #tpu.memory_space<vmem>>, vector<1x32xf32>
    %6 = vector.broadcast %5 : vector<1x32xf32> to vector<16x32xf32>
    %7 = arith.addf %4, %6 : vector<16x32xf32>
    %8 = vector.shape_cast %7 : vector<16x32xf32> to vector<2x8x32xf32>
    %c0_6 = arith.constant 0 : index
    %c0_7 = arith.constant 0 : index
    %9 = vector.load %arg3[%c0_6, %c0_7] : memref<8x32xf32, #tpu.memory_space<vmem>>, vector<8x32xf32>
    %10 = vector.shape_cast %9 : vector<8x32xf32> to vector<1x8x32xf32>
    %11 = vector.broadcast %10 : vector<1x8x32xf32> to vector<2x8x32xf32>
    %12 = arith.addf %8, %11 : vector<2x8x32xf32>
    %c0_8 = arith.constant 0 : index
    %c0_9 = arith.constant 0 : index
    %c0_10 = arith.constant 0 : index
    %13 = vector.load %arg4[%c0_8, %c0_9, %c0_10] : memref<2x8x32xf32, #tpu.memory_space<vmem>>, vector<2x8x32xf32>
    tpu.vector_store %arg4[%c0_8, %c0_9, %c0_10], %12 {strides = array<i32>} : memref<2x8x32xf32, #tpu.memory_space<vmem>>, vector<2x8x32xf32>,
    return
  }
}

module attributes {stable_mosaic.version = 11 : i64} {
  func.func @encoder_stack_kernel(%arg0: i32, %arg1: i32, %arg2: memref<1x8x32xf32, #tpu.memory_space<vmem>>, %arg3: memref<4x32x8xbf16, #tpu.memory_space<vmem>>, %arg4: memref<4x1x8xf32, #tpu.memory_space<vmem>>, %arg5: memref<4x32x8xbf16, #tpu.memory_space<vmem>>, %arg6: memref<4x1x8xf32, #tpu.memory_space<vmem>>, %arg7: memref<4x32x8xbf16, #tpu.memory_space<vmem>>, %arg8: memref<4x1x8xf32, #tpu.memory_space<vmem>>, %arg9: memref<4x8x32xbf16, #tpu.memory_space<vmem>>, %arg10: memref<1x32xf32, #tpu.memory_space<vmem>>, %arg11: memref<1x32xf32, #tpu.memory_space<vmem>>, %arg12: memref<1x32xf32, #tpu.memory_space<vmem>>, %arg13: memref<32x128xbf16, #tpu.memory_space<vmem>>, %arg14: memref<1x128xf32, #tpu.memory_space<vmem>>, %arg15: memref<1x128xf32, #tpu.memory_space<vmem>>, %arg16: memref<1x128xf32, #tpu.memory_space<vmem>>, %arg17: memref<128x32xbf16, #tpu.memory_space<vmem>>, %arg18: memref<1x32xf32, #tpu.memory_space<vmem>>, %arg19: memref<1x32xf32, #tpu.memory_space<vmem>>, %arg20: memref<1x32xf32, #tpu.memory_space<vmem>>, %arg21: memref<32x128xbf16, #tpu.memory_space<vmem>>, %arg22: memref<1x128xf32, #tpu.memory_space<vmem>>, %arg23: memref<1x128xf32, #tpu.memory_space<vmem>>, %arg24: memref<1x128xf32, #tpu.memory_space<vmem>>, %arg25: memref<128x32xbf16, #tpu.memory_space<vmem>>, %arg26: memref<1x32xf32, #tpu.memory_space<vmem>>, %arg27: memref<1x32xf32, #tpu.memory_space<vmem>>, %arg28: memref<1x32xf32, #tpu.memory_space<vmem>>, %arg29: memref<32x32xbf16, #tpu.memory_space<vmem>>, %arg30: memref<1x32xf32, #tpu.memory_space<vmem>>, %arg31: memref<1x32xf32, #tpu.memory_space<vmem>>, %arg32: memref<1x32xf32, #tpu.memory_space<vmem>>, %arg33: memref<3xf32, #tpu.memory_space<smem>>, %arg34: memref<1x8x32xf32, #tpu.memory_space<vmem>>, %arg35: memref<8x32xf32, #tpu.memory_space<vmem>>) attributes {dimension_semantics = [#tpu.dimension_semantics<parallel>, #tpu.dimension_semantics<arbitrary>], iteration_bounds = array<i64: 2, 2>, scalar_prefetch = 0 : i64, scratch_operands = 1 : i64, tpu.core_type = #tpu.core_type<tc>, window_params = [{transform_indices = @transform_0, window_bounds = array<i64: 1, 8, 32>}, {pipeline_mode = #tpu.pipeline_mode<synchronous>, transform_indices = @transform_1, window_bounds = array<i64: 4, 32, 8>}, {pipeline_mode = #tpu.pipeline_mode<synchronous>, transform_indices = @transform_2, window_bounds = array<i64: 4, 1, 8>}, {pipeline_mode = #tpu.pipeline_mode<synchronous>, transform_indices = @transform_3, window_bounds = array<i64: 4, 32, 8>}, {pipeline_mode = #tpu.pipeline_mode<synchronous>, transform_indices = @transform_4, window_bounds = array<i64: 4, 1, 8>}, {pipeline_mode = #tpu.pipeline_mode<synchronous>, transform_indices = @transform_5, window_bounds = array<i64: 4, 32, 8>}, {pipeline_mode = #tpu.pipeline_mode<synchronous>, transform_indices = @transform_6, window_bounds = array<i64: 4, 1, 8>}, {pipeline_mode = #tpu.pipeline_mode<synchronous>, transform_indices = @transform_7, window_bounds = array<i64: 4, 8, 32>}, {pipeline_mode = #tpu.pipeline_mode<synchronous>, transform_indices = @transform_8, window_bounds = array<i64: 1, 32>}, {pipeline_mode = #tpu.pipeline_mode<synchronous>, transform_indices = @transform_9, window_bounds = array<i64: 1, 32>}, {pipeline_mode = #tpu.pipeline_mode<synchronous>, transform_indices = @transform_10, window_bounds = array<i64: 1, 32>}, {pipeline_mode = #tpu.pipeline_mode<synchronous>, transform_indices = @transform_11, window_bounds = array<i64: 32, 128>}, {pipeline_mode = #tpu.pipeline_mode<synchronous>, transform_indices = @transform_12, window_bounds = array<i64: 1, 128>}, {pipeline_mode = #tpu.pipeline_mode<synchronous>, transform_indices = @transform_13, window_bounds = array<i64: 1, 128>}, {pipeline_mode = #tpu.pipeline_mode<synchronous>, transform_indices = @transform_14, window_bounds = array<i64: 1, 128>}, {pipeline_mode = #tpu.pipeline_mode<synchronous>, transform_indices = @transform_15, window_bounds = array<i64: 128, 32>}, {pipeline_mode = #tpu.pipeline_mode<synchronous>, transform_indices = @transform_16, window_bounds = array<i64: 1, 32>}, {pipeline_mode = #tpu.pipeline_mode<synchronous>, transform_indices = @transform_17, window_bounds = array<i64: 1, 32>}, {pipeline_mode = #tpu.pipeline_mode<synchronous>, transform_indices = @transform_18, window_bounds = array<i64: 1, 32>}, {pipeline_mode = #tpu.pipeline_mode<synchronous>, transform_indices = @transform_19, window_bounds = array<i64: 32, 128>}, {pipeline_mode = #tpu.pipeline_mode<synchronous>, transform_indices = @transform_20, window_bounds = array<i64: 1, 128>}, {pipeline_mode = #tpu.pipeline_mode<synchronous>, transform_indices = @transform_21, window_bounds = array<i64: 1, 128>}, {pipeline_mode = #tpu.pipeline_mode<synchronous>, transform_indices = @transform_22, window_bounds = array<i64: 1, 128>}, {pipeline_mode = #tpu.pipeline_mode<synchronous>, transform_indices = @transform_23, window_bounds = array<i64: 128, 32>}, {pipeline_mode = #tpu.pipeline_mode<synchronous>, transform_indices = @transform_24, window_bounds = array<i64: 1, 32>}, {pipeline_mode = #tpu.pipeline_mode<synchronous>, transform_indices = @transform_25, window_bounds = array<i64: 1, 32>}, {pipeline_mode = #tpu.pipeline_mode<synchronous>, transform_indices = @transform_26, window_bounds = array<i64: 1, 32>}, {pipeline_mode = #tpu.pipeline_mode<synchronous>, transform_indices = @transform_27, window_bounds = array<i64: 32, 32>}, {pipeline_mode = #tpu.pipeline_mode<synchronous>, transform_indices = @transform_28, window_bounds = array<i64: 1, 32>}, {pipeline_mode = #tpu.pipeline_mode<synchronous>, transform_indices = @transform_29, window_bounds = array<i64: 1, 32>}, {pipeline_mode = #tpu.pipeline_mode<synchronous>, transform_indices = @transform_30, window_bounds = array<i64: 1, 32>}, {transform_indices = @transform_31, window_bounds = array<i64: 3>}, {transform_indices = @transform_32, window_bounds = array<i64: 1, 8, 32>}]} {
    %c0_i32 = arith.constant 0 : i32
    %0 = arith.cmpi eq, %arg1, %c0_i32 : i32
    %1 = arith.extui %0 : i1 to i32
    %c0_i32_0 = arith.constant 0 : i32
    %2 = arith.cmpi ne, %1, %c0_i32_0 : i32
    scf.if %2 {
      %c0_137 = arith.constant 0 : index
      %c0_138 = arith.constant 0 : index
      %c0_139 = arith.constant 0 : index
      %300 = vector.load %arg2[%c0_137, %c0_138, %c0_139] : memref<1x8x32xf32, #tpu.memory_space<vmem>>, vector<1x8x32xf32>
      %301 = vector.shape_cast %300 : vector<1x8x32xf32> to vector<8x32xf32>
      %c0_140 = arith.constant 0 : index
      %c0_141 = arith.constant 0 : index
      %302 = vector.load %arg35[%c0_140, %c0_141] : memref<8x32xf32, #tpu.memory_space<vmem>>, vector<8x32xf32>
      tpu.vector_store %arg35[%c0_140, %c0_141], %301 {strides = array<i32>} : memref<8x32xf32, #tpu.memory_space<vmem>>, vector<8x32xf32>,
    } else {
    }
    %c0 = arith.constant 0 : index
    %c0_1 = arith.constant 0 : index
    %3 = vector.load %arg35[%c0, %c0_1] : memref<8x32xf32, #tpu.memory_space<vmem>>, vector<8x32xf32>
    %4 = arith.truncf %3 : vector<8x32xf32> to vector<8x32xbf16>
    %5 = vector.shape_cast %4 : vector<8x32xbf16> to vector<1x8x32xbf16>
    %6 = vector.shape_cast %5 : vector<1x8x32xbf16> to vector<1x8x32xbf16>
    %7 = vector.broadcast %6 : vector<1x8x32xbf16> to vector<4x8x32xbf16>
    %c0_2 = arith.constant 0 : index
    %c0_3 = arith.constant 0 : index
    %c0_4 = arith.constant 0 : index
    %8 = vector.load %arg3[%c0_2, %c0_3, %c0_4] : memref<4x32x8xbf16, #tpu.memory_space<vmem>>, vector<4x32x8xbf16>
    "tpu.trace_start"() <{level = 10 : i32, message = "nsh,nhd->nsd"}> : () -> ()
    %cst = arith.constant dense<0.000000e+00> : vector<4x8x8xf32>
    %9 = tpu.matmul %7, %8, %cst {dimension_numbers = #tpu.dot_dimension_numbers<[2], [1], [1], [2], [0, 0, 0, 1, 1, 2], [0], [0]>} : vector<4x8x32xbf16>, vector<4x32x8xbf16>, vector<4x8x8xf32> -> vector<4x8x8xf32>
    "tpu.trace_stop"() : () -> ()
    %c0_5 = arith.constant 0 : index
    %c0_6 = arith.constant 0 : index
    %c0_7 = arith.constant 0 : index
    %10 = vector.load %arg4[%c0_5, %c0_6, %c0_7] : memref<4x1x8xf32, #tpu.memory_space<vmem>>, vector<4x1x8xf32>
    %11 = vector.broadcast %10 : vector<4x1x8xf32> to vector<4x8x8xf32>
    %12 = arith.addf %9, %11 : vector<4x8x8xf32>
    %c0_8 = arith.constant 0 : index
    %c0_9 = arith.constant 0 : index
    %c0_10 = arith.constant 0 : index
    %13 = vector.load %arg5[%c0_8, %c0_9, %c0_10] : memref<4x32x8xbf16, #tpu.memory_space<vmem>>, vector<4x32x8xbf16>
    "tpu.trace_start"() <{level = 10 : i32, message = "nsh,nhd->nsd"}> : () -> ()
    %cst_11 = arith.constant dense<0.000000e+00> : vector<4x8x8xf32>
    %14 = tpu.matmul %7, %13, %cst_11 {dimension_numbers = #tpu.dot_dimension_numbers<[2], [1], [1], [2], [0, 0, 0, 1, 1, 2], [0], [0]>} : vector<4x8x32xbf16>, vector<4x32x8xbf16>, vector<4x8x8xf32> -> vector<4x8x8xf32>
    "tpu.trace_stop"() : () -> ()
    %c0_12 = arith.constant 0 : index
    %c0_13 = arith.constant 0 : index
    %c0_14 = arith.constant 0 : index
    %15 = vector.load %arg6[%c0_12, %c0_13, %c0_14] : memref<4x1x8xf32, #tpu.memory_space<vmem>>, vector<4x1x8xf32>
    %16 = vector.broadcast %15 : vector<4x1x8xf32> to vector<4x8x8xf32>
    %17 = arith.addf %14, %16 : vector<4x8x8xf32>
    %c0_15 = arith.constant 0 : index
    %c0_16 = arith.constant 0 : index
    %c0_17 = arith.constant 0 : index
    %18 = vector.load %arg7[%c0_15, %c0_16, %c0_17] : memref<4x32x8xbf16, #tpu.memory_space<vmem>>, vector<4x32x8xbf16>
    "tpu.trace_start"() <{level = 10 : i32, message = "nsh,nhd->nsd"}> : () -> ()
    %cst_18 = arith.constant dense<0.000000e+00> : vector<4x8x8xf32>
    %19 = tpu.matmul %7, %18, %cst_18 {dimension_numbers = #tpu.dot_dimension_numbers<[2], [1], [1], [2], [0, 0, 0, 1, 1, 2], [0], [0]>} : vector<4x8x32xbf16>, vector<4x32x8xbf16>, vector<4x8x8xf32> -> vector<4x8x8xf32>
    "tpu.trace_stop"() : () -> ()
    %c0_19 = arith.constant 0 : index
    %c0_20 = arith.constant 0 : index
    %c0_21 = arith.constant 0 : index
    %20 = vector.load %arg8[%c0_19, %c0_20, %c0_21] : memref<4x1x8xf32, #tpu.memory_space<vmem>>, vector<4x1x8xf32>
    %21 = vector.broadcast %20 : vector<4x1x8xf32> to vector<4x8x8xf32>
    %22 = arith.addf %19, %21 : vector<4x8x8xf32>
    %cst_22 = arith.constant 0.353553385 : f32
    %23 = vector.broadcast %cst_22 : f32 to vector<4x8x8xf32>
    %24 = arith.mulf %12, %23 : vector<4x8x8xf32>
    %25 = arith.truncf %24 : vector<4x8x8xf32> to vector<4x8x8xbf16>
    %26 = arith.truncf %17 : vector<4x8x8xf32> to vector<4x8x8xbf16>
    "tpu.trace_start"() <{level = 10 : i32, message = "nqd,nkd->nqk"}> : () -> ()
    %cst_23 = arith.constant dense<0.000000e+00> : vector<4x8x8xf32>
    %27 = tpu.matmul %25, %26, %cst_23 {dimension_numbers = #tpu.dot_dimension_numbers<[2], [2], [1], [1], [0, 0, 0, 1, 1, 1], [0], [0]>} : vector<4x8x8xbf16>, vector<4x8x8xbf16>, vector<4x8x8xf32> -> vector<4x8x8xf32>
    "tpu.trace_stop"() : () -> ()
    %cst_24 = arith.constant dense<0xFF800000> : vector<4x8xf32>
    %28 = vector.multi_reduction <maximumf>, %27, %cst_24 [2] : vector<4x8x8xf32> to vector<4x8xf32>
    %29 = vector.shape_cast %28 : vector<4x8xf32> to vector<4x8x1xf32>
    %30 = vector.broadcast %29 : vector<4x8x1xf32> to vector<4x8x8xf32>
    %31 = arith.subf %27, %30 : vector<4x8x8xf32>
    %32 = math.exp %31 : vector<4x8x8xf32>
    %cst_25 = arith.constant dense<0.000000e+00> : vector<4x8xf32>
    %33 = vector.multi_reduction <add>, %32, %cst_25 [2] : vector<4x8x8xf32> to vector<4x8xf32>
    %34 = vector.shape_cast %33 : vector<4x8xf32> to vector<4x8x1xf32>
    %35 = tpu.reciprocal %34 {approx = true} : vector<4x8x1xf32> -> vector<4x8x1xf32>
    %36 = vector.broadcast %35 : vector<4x8x1xf32> to vector<4x8x8xf32>
    %37 = arith.mulf %32, %36 : vector<4x8x8xf32>
    %38 = arith.truncf %37 : vector<4x8x8xf32> to vector<4x8x8xbf16>
    %39 = arith.truncf %22 : vector<4x8x8xf32> to vector<4x8x8xbf16>
    "tpu.trace_start"() <{level = 10 : i32, message = "nqk,nkd->nqd"}> : () -> ()
    %cst_26 = arith.constant dense<0.000000e+00> : vector<4x8x8xf32>
    %40 = tpu.matmul %38, %39, %cst_26 {dimension_numbers = #tpu.dot_dimension_numbers<[2], [1], [1], [2], [0, 0, 0, 1, 1, 2], [0], [0]>} : vector<4x8x8xbf16>, vector<4x8x8xbf16>, vector<4x8x8xf32> -> vector<4x8x8xf32>
    "tpu.trace_stop"() : () -> ()
    %41 = arith.truncf %40 : vector<4x8x8xf32> to vector<4x8x8xbf16>
    %c0_27 = arith.constant 0 : index
    %c0_28 = arith.constant 0 : index
    %c0_29 = arith.constant 0 : index
    %42 = vector.load %arg9[%c0_27, %c0_28, %c0_29] : memref<4x8x32xbf16, #tpu.memory_space<vmem>>, vector<4x8x32xbf16>
    "tpu.trace_start"() <{level = 10 : i32, message = "nqd,ndh->nqh"}> : () -> ()
    %cst_30 = arith.constant dense<0.000000e+00> : vector<4x8x32xf32>
    %43 = tpu.matmul %41, %42, %cst_30 {dimension_numbers = #tpu.dot_dimension_numbers<[2], [1], [1], [2], [0, 0, 0, 1, 1, 2], [0], [0]>} : vector<4x8x8xbf16>, vector<4x8x32xbf16>, vector<4x8x32xf32> -> vector<4x8x32xf32>
    "tpu.trace_stop"() : () -> ()
    %cst_31 = arith.constant dense<0.000000e+00> : vector<8x32xf32>
    %44 = vector.multi_reduction <add>, %43, %cst_31 [0] : vector<4x8x32xf32> to vector<8x32xf32>
    %c0_32 = arith.constant 0 : index
    %c0_33 = arith.constant 0 : index
    %45 = vector.load %arg10[%c0_32, %c0_33] : memref<1x32xf32, #tpu.memory_space<vmem>>, vector<1x32xf32>
    %46 = vector.broadcast %45 : vector<1x32xf32> to vector<8x32xf32>
    %47 = arith.addf %44, %46 : vector<8x32xf32>
    %48 = arith.addf %47, %3 : vector<8x32xf32>
    %c0_34 = arith.constant 0 : index
    %c0_35 = arith.constant 0 : index
    %49 = vector.load %arg11[%c0_34, %c0_35] : memref<1x32xf32, #tpu.memory_space<vmem>>, vector<1x32xf32>
    %c0_36 = arith.constant 0 : index
    %c0_37 = arith.constant 0 : index
    %50 = vector.load %arg12[%c0_36, %c0_37] : memref<1x32xf32, #tpu.memory_space<vmem>>, vector<1x32xf32>
    %cst_38 = arith.constant dense<0.000000e+00> : vector<8xf32>
    %51 = vector.multi_reduction <add>, %48, %cst_38 [1] : vector<8x32xf32> to vector<8xf32>
    %52 = vector.shape_cast %51 : vector<8xf32> to vector<8x1xf32>
    %cst_39 = arith.constant 3.200000e+01 : f32
    %53 = vector.broadcast %cst_39 : f32 to vector<8x1xf32>
    %54 = arith.divf %52, %53 : vector<8x1xf32>
    %55 = vector.broadcast %54 : vector<8x1xf32> to vector<8x32xf32>
    %56 = arith.subf %48, %55 : vector<8x32xf32>
    %57 = arith.mulf %56, %56 : vector<8x32xf32>
    %cst_40 = arith.constant dense<0.000000e+00> : vector<8xf32>
    %58 = vector.multi_reduction <add>, %57, %cst_40 [1] : vector<8x32xf32> to vector<8xf32>
    %59 = vector.shape_cast %58 : vector<8xf32> to vector<8x1xf32>
    %cst_41 = arith.constant 3.200000e+01 : f32
    %60 = vector.broadcast %cst_41 : f32 to vector<8x1xf32>
    %61 = arith.divf %59, %60 : vector<8x1xf32>
    %62 = vector.broadcast %54 : vector<8x1xf32> to vector<8x32xf32>
    %63 = arith.subf %48, %62 : vector<8x32xf32>
    %cst_42 = arith.constant 9.99999974E-6 : f32
    %64 = vector.broadcast %cst_42 : f32 to vector<8x1xf32>
    %65 = arith.addf %61, %64 : vector<8x1xf32>
    %66 = math.rsqrt %65 : vector<8x1xf32>
    %67 = vector.broadcast %66 : vector<8x1xf32> to vector<8x32xf32>
    %68 = arith.mulf %63, %67 : vector<8x32xf32>
    %69 = vector.broadcast %49 : vector<1x32xf32> to vector<8x32xf32>
    %70 = arith.mulf %68, %69 : vector<8x32xf32>
    %71 = vector.broadcast %50 : vector<1x32xf32> to vector<8x32xf32>
    %72 = arith.addf %70, %71 : vector<8x32xf32>
    %73 = arith.truncf %72 : vector<8x32xf32> to vector<8x32xbf16>
    %c0_43 = arith.constant 0 : index
    %c0_44 = arith.constant 0 : index
    %74 = vector.load %arg13[%c0_43, %c0_44] : memref<32x128xbf16, #tpu.memory_space<vmem>>, vector<32x128xbf16>
    %cst_45 = arith.constant dense<0.000000e+00> : vector<8x128xf32>
    %75 = tpu.matmul %73, %74, %cst_45 {dimension_numbers = #tpu.dot_dimension_numbers<[1], [0], [0], [1], [0, 0, 1, 1], [], []>} : vector<8x32xbf16>, vector<32x128xbf16>, vector<8x128xf32> -> vector<8x128xf32>
    %c0_46 = arith.constant 0 : index
    %c0_47 = arith.constant 0 : index
    %76 = vector.load %arg14[%c0_46, %c0_47] : memref<1x128xf32, #tpu.memory_space<vmem>>, vector<1x128xf32>
    %77 = vector.broadcast %76 : vector<1x128xf32> to vector<8x128xf32>
    %78 = arith.addf %75, %77 : vector<8x128xf32>
    %c0_48 = arith.constant 0 : index
    %c0_49 = arith.constant 0 : index
    %79 = vector.load %arg15[%c0_48, %c0_49] : memref<1x128xf32, #tpu.memory_space<vmem>>, vector<1x128xf32>
    %c0_50 = arith.constant 0 : index
    %c0_51 = arith.constant 0 : index
    %80 = vector.load %arg16[%c0_50, %c0_51] : memref<1x128xf32, #tpu.memory_space<vmem>>, vector<1x128xf32>
    %cst_52 = arith.constant dense<0.000000e+00> : vector<8xf32>
    %81 = vector.multi_reduction <add>, %78, %cst_52 [1] : vector<8x128xf32> to vector<8xf32>
    %82 = vector.shape_cast %81 : vector<8xf32> to vector<8x1xf32>
    %cst_53 = arith.constant 1.280000e+02 : f32
    %83 = vector.broadcast %cst_53 : f32 to vector<8x1xf32>
    %84 = arith.divf %82, %83 : vector<8x1xf32>
    %85 = vector.broadcast %84 : vector<8x1xf32> to vector<8x128xf32>
    %86 = arith.subf %78, %85 : vector<8x128xf32>
    %87 = arith.mulf %86, %86 : vector<8x128xf32>
    %cst_54 = arith.constant dense<0.000000e+00> : vector<8xf32>
    %88 = vector.multi_reduction <add>, %87, %cst_54 [1] : vector<8x128xf32> to vector<8xf32>
    %89 = vector.shape_cast %88 : vector<8xf32> to vector<8x1xf32>
    %cst_55 = arith.constant 1.280000e+02 : f32
    %90 = vector.broadcast %cst_55 : f32 to vector<8x1xf32>
    %91 = arith.divf %89, %90 : vector<8x1xf32>
    %92 = vector.broadcast %84 : vector<8x1xf32> to vector<8x128xf32>
    %93 = arith.subf %78, %92 : vector<8x128xf32>
    %cst_56 = arith.constant 9.99999974E-6 : f32
    %94 = vector.broadcast %cst_56 : f32 to vector<8x1xf32>
    %95 = arith.addf %91, %94 : vector<8x1xf32>
    %96 = math.rsqrt %95 : vector<8x1xf32>
    %97 = vector.broadcast %96 : vector<8x1xf32> to vector<8x128xf32>
    %98 = arith.mulf %93, %97 : vector<8x128xf32>
    %99 = vector.broadcast %79 : vector<1x128xf32> to vector<8x128xf32>
    %100 = arith.mulf %98, %99 : vector<8x128xf32>
    %101 = vector.broadcast %80 : vector<1x128xf32> to vector<8x128xf32>
    %102 = arith.addf %100, %101 : vector<8x128xf32>
    %103 = math.exp %102 : vector<8x128xf32>
    %cst_57 = arith.constant 1.000000e+00 : f32
    %104 = vector.broadcast %cst_57 : f32 to vector<8x128xf32>
    %105 = arith.addf %104, %103 : vector<8x128xf32>
    %106 = arith.mulf %105, %105 : vector<8x128xf32>
    %cst_58 = arith.constant 1.000000e+00 : f32
    %107 = vector.broadcast %cst_58 : f32 to vector<8x128xf32>
    %108 = arith.addf %106, %107 : vector<8x128xf32>
    %109 = tpu.reciprocal %108 {approx = true} : vector<8x128xf32> -> vector<8x128xf32>
    %cst_59 = arith.constant 2.000000e+00 : f32
    %110 = vector.broadcast %cst_59 : f32 to vector<8x128xf32>
    %111 = arith.mulf %110, %109 : vector<8x128xf32>
    %cst_60 = arith.constant 1.000000e+00 : f32
    %112 = vector.broadcast %cst_60 : f32 to vector<8x128xf32>
    %113 = arith.subf %112, %111 : vector<8x128xf32>
    %114 = arith.mulf %102, %113 : vector<8x128xf32>
    %115 = arith.truncf %114 : vector<8x128xf32> to vector<8x128xbf16>
    %c0_61 = arith.constant 0 : index
    %c0_62 = arith.constant 0 : index
    %116 = vector.load %arg17[%c0_61, %c0_62] : memref<128x32xbf16, #tpu.memory_space<vmem>>, vector<128x32xbf16>
    %cst_63 = arith.constant dense<0.000000e+00> : vector<8x32xf32>
    %117 = tpu.matmul %115, %116, %cst_63 {dimension_numbers = #tpu.dot_dimension_numbers<[1], [0], [0], [1], [0, 0, 1, 1], [], []>} : vector<8x128xbf16>, vector<128x32xbf16>, vector<8x32xf32> -> vector<8x32xf32>
    %c0_64 = arith.constant 0 : index
    %c0_65 = arith.constant 0 : index
    %118 = vector.load %arg18[%c0_64, %c0_65] : memref<1x32xf32, #tpu.memory_space<vmem>>, vector<1x32xf32>
    %119 = vector.broadcast %118 : vector<1x32xf32> to vector<8x32xf32>
    %120 = arith.addf %117, %119 : vector<8x32xf32>
    %121 = math.exp %120 : vector<8x32xf32>
    %cst_66 = arith.constant 1.000000e+00 : f32
    %122 = vector.broadcast %cst_66 : f32 to vector<8x32xf32>
    %123 = arith.addf %122, %121 : vector<8x32xf32>
    %124 = arith.mulf %123, %123 : vector<8x32xf32>
    %cst_67 = arith.constant 1.000000e+00 : f32
    %125 = vector.broadcast %cst_67 : f32 to vector<8x32xf32>
    %126 = arith.addf %124, %125 : vector<8x32xf32>
    %127 = tpu.reciprocal %126 {approx = true} : vector<8x32xf32> -> vector<8x32xf32>
    %cst_68 = arith.constant 2.000000e+00 : f32
    %128 = vector.broadcast %cst_68 : f32 to vector<8x32xf32>
    %129 = arith.mulf %128, %127 : vector<8x32xf32>
    %cst_69 = arith.constant 1.000000e+00 : f32
    %130 = vector.broadcast %cst_69 : f32 to vector<8x32xf32>
    %131 = arith.subf %130, %129 : vector<8x32xf32>
    %132 = arith.mulf %120, %131 : vector<8x32xf32>
    %133 = arith.addf %132, %72 : vector<8x32xf32>
    %c0_70 = arith.constant 0 : index
    %c0_71 = arith.constant 0 : index
    %134 = vector.load %arg19[%c0_70, %c0_71] : memref<1x32xf32, #tpu.memory_space<vmem>>, vector<1x32xf32>
    %c0_72 = arith.constant 0 : index
    %c0_73 = arith.constant 0 : index
    %135 = vector.load %arg20[%c0_72, %c0_73] : memref<1x32xf32, #tpu.memory_space<vmem>>, vector<1x32xf32>
    %cst_74 = arith.constant dense<0.000000e+00> : vector<8xf32>
    %136 = vector.multi_reduction <add>, %133, %cst_74 [1] : vector<8x32xf32> to vector<8xf32>
    %137 = vector.shape_cast %136 : vector<8xf32> to vector<8x1xf32>
    %cst_75 = arith.constant 3.200000e+01 : f32
    %138 = vector.broadcast %cst_75 : f32 to vector<8x1xf32>
    %139 = arith.divf %137, %138 : vector<8x1xf32>
    %140 = vector.broadcast %139 : vector<8x1xf32> to vector<8x32xf32>
    %141 = arith.subf %133, %140 : vector<8x32xf32>
    %142 = arith.mulf %141, %141 : vector<8x32xf32>
    %cst_76 = arith.constant dense<0.000000e+00> : vector<8xf32>
    %143 = vector.multi_reduction <add>, %142, %cst_76 [1] : vector<8x32xf32> to vector<8xf32>
    %144 = vector.shape_cast %143 : vector<8xf32> to vector<8x1xf32>
    %cst_77 = arith.constant 3.200000e+01 : f32
    %145 = vector.broadcast %cst_77 : f32 to vector<8x1xf32>
    %146 = arith.divf %144, %145 : vector<8x1xf32>
    %147 = vector.broadcast %139 : vector<8x1xf32> to vector<8x32xf32>
    %148 = arith.subf %133, %147 : vector<8x32xf32>
    %cst_78 = arith.constant 9.99999974E-6 : f32
    %149 = vector.broadcast %cst_78 : f32 to vector<8x1xf32>
    %150 = arith.addf %146, %149 : vector<8x1xf32>
    %151 = math.rsqrt %150 : vector<8x1xf32>
    %152 = vector.broadcast %151 : vector<8x1xf32> to vector<8x32xf32>
    %153 = arith.mulf %148, %152 : vector<8x32xf32>
    %154 = vector.broadcast %134 : vector<1x32xf32> to vector<8x32xf32>
    %155 = arith.mulf %153, %154 : vector<8x32xf32>
    %156 = vector.broadcast %135 : vector<1x32xf32> to vector<8x32xf32>
    %157 = arith.addf %155, %156 : vector<8x32xf32>
    %158 = arith.truncf %3 : vector<8x32xf32> to vector<8x32xbf16>
    %c0_79 = arith.constant 0 : index
    %c0_80 = arith.constant 0 : index
    %159 = vector.load %arg21[%c0_79, %c0_80] : memref<32x128xbf16, #tpu.memory_space<vmem>>, vector<32x128xbf16>
    %cst_81 = arith.constant dense<0.000000e+00> : vector<8x128xf32>
    %160 = tpu.matmul %158, %159, %cst_81 {dimension_numbers = #tpu.dot_dimension_numbers<[1], [0], [0], [1], [0, 0, 1, 1], [], []>} : vector<8x32xbf16>, vector<32x128xbf16>, vector<8x128xf32> -> vector<8x128xf32>
    %c0_82 = arith.constant 0 : index
    %c0_83 = arith.constant 0 : index
    %161 = vector.load %arg22[%c0_82, %c0_83] : memref<1x128xf32, #tpu.memory_space<vmem>>, vector<1x128xf32>
    %162 = vector.broadcast %161 : vector<1x128xf32> to vector<8x128xf32>
    %163 = arith.addf %160, %162 : vector<8x128xf32>
    %c0_84 = arith.constant 0 : index
    %c0_85 = arith.constant 0 : index
    %164 = vector.load %arg23[%c0_84, %c0_85] : memref<1x128xf32, #tpu.memory_space<vmem>>, vector<1x128xf32>
    %c0_86 = arith.constant 0 : index
    %c0_87 = arith.constant 0 : index
    %165 = vector.load %arg24[%c0_86, %c0_87] : memref<1x128xf32, #tpu.memory_space<vmem>>, vector<1x128xf32>
    %cst_88 = arith.constant dense<0.000000e+00> : vector<8xf32>
    %166 = vector.multi_reduction <add>, %163, %cst_88 [1] : vector<8x128xf32> to vector<8xf32>
    %167 = vector.shape_cast %166 : vector<8xf32> to vector<8x1xf32>
    %cst_89 = arith.constant 1.280000e+02 : f32
    %168 = vector.broadcast %cst_89 : f32 to vector<8x1xf32>
    %169 = arith.divf %167, %168 : vector<8x1xf32>
    %170 = vector.broadcast %169 : vector<8x1xf32> to vector<8x128xf32>
    %171 = arith.subf %163, %170 : vector<8x128xf32>
    %172 = arith.mulf %171, %171 : vector<8x128xf32>
    %cst_90 = arith.constant dense<0.000000e+00> : vector<8xf32>
    %173 = vector.multi_reduction <add>, %172, %cst_90 [1] : vector<8x128xf32> to vector<8xf32>
    %174 = vector.shape_cast %173 : vector<8xf32> to vector<8x1xf32>
    %cst_91 = arith.constant 1.280000e+02 : f32
    %175 = vector.broadcast %cst_91 : f32 to vector<8x1xf32>
    %176 = arith.divf %174, %175 : vector<8x1xf32>
    %177 = vector.broadcast %169 : vector<8x1xf32> to vector<8x128xf32>
    %178 = arith.subf %163, %177 : vector<8x128xf32>
    %cst_92 = arith.constant 9.99999974E-6 : f32
    %179 = vector.broadcast %cst_92 : f32 to vector<8x1xf32>
    %180 = arith.addf %176, %179 : vector<8x1xf32>
    %181 = math.rsqrt %180 : vector<8x1xf32>
    %182 = vector.broadcast %181 : vector<8x1xf32> to vector<8x128xf32>
    %183 = arith.mulf %178, %182 : vector<8x128xf32>
    %184 = vector.broadcast %164 : vector<1x128xf32> to vector<8x128xf32>
    %185 = arith.mulf %183, %184 : vector<8x128xf32>
    %186 = vector.broadcast %165 : vector<1x128xf32> to vector<8x128xf32>
    %187 = arith.addf %185, %186 : vector<8x128xf32>
    %188 = math.exp %187 : vector<8x128xf32>
    %cst_93 = arith.constant 1.000000e+00 : f32
    %189 = vector.broadcast %cst_93 : f32 to vector<8x128xf32>
    %190 = arith.addf %189, %188 : vector<8x128xf32>
    %191 = arith.mulf %190, %190 : vector<8x128xf32>
    %cst_94 = arith.constant 1.000000e+00 : f32
    %192 = vector.broadcast %cst_94 : f32 to vector<8x128xf32>
    %193 = arith.addf %191, %192 : vector<8x128xf32>
    %194 = tpu.reciprocal %193 {approx = true} : vector<8x128xf32> -> vector<8x128xf32>
    %cst_95 = arith.constant 2.000000e+00 : f32
    %195 = vector.broadcast %cst_95 : f32 to vector<8x128xf32>
    %196 = arith.mulf %195, %194 : vector<8x128xf32>
    %cst_96 = arith.constant 1.000000e+00 : f32
    %197 = vector.broadcast %cst_96 : f32 to vector<8x128xf32>
    %198 = arith.subf %197, %196 : vector<8x128xf32>
    %199 = arith.mulf %187, %198 : vector<8x128xf32>
    %200 = arith.truncf %199 : vector<8x128xf32> to vector<8x128xbf16>
    %c0_97 = arith.constant 0 : index
    %c0_98 = arith.constant 0 : index
    %201 = vector.load %arg25[%c0_97, %c0_98] : memref<128x32xbf16, #tpu.memory_space<vmem>>, vector<128x32xbf16>
    %cst_99 = arith.constant dense<0.000000e+00> : vector<8x32xf32>
    %202 = tpu.matmul %200, %201, %cst_99 {dimension_numbers = #tpu.dot_dimension_numbers<[1], [0], [0], [1], [0, 0, 1, 1], [], []>} : vector<8x128xbf16>, vector<128x32xbf16>, vector<8x32xf32> -> vector<8x32xf32>
    %c0_100 = arith.constant 0 : index
    %c0_101 = arith.constant 0 : index
    %203 = vector.load %arg26[%c0_100, %c0_101] : memref<1x32xf32, #tpu.memory_space<vmem>>, vector<1x32xf32>
    %204 = vector.broadcast %203 : vector<1x32xf32> to vector<8x32xf32>
    %205 = arith.addf %202, %204 : vector<8x32xf32>
    %206 = math.exp %205 : vector<8x32xf32>
    %cst_102 = arith.constant 1.000000e+00 : f32
    %207 = vector.broadcast %cst_102 : f32 to vector<8x32xf32>
    %208 = arith.addf %207, %206 : vector<8x32xf32>
    %209 = arith.mulf %208, %208 : vector<8x32xf32>
    %cst_103 = arith.constant 1.000000e+00 : f32
    %210 = vector.broadcast %cst_103 : f32 to vector<8x32xf32>
    %211 = arith.addf %209, %210 : vector<8x32xf32>
    %212 = tpu.reciprocal %211 {approx = true} : vector<8x32xf32> -> vector<8x32xf32>
    %cst_104 = arith.constant 2.000000e+00 : f32
    %213 = vector.broadcast %cst_104 : f32 to vector<8x32xf32>
    %214 = arith.mulf %213, %212 : vector<8x32xf32>
    %cst_105 = arith.constant 1.000000e+00 : f32
    %215 = vector.broadcast %cst_105 : f32 to vector<8x32xf32>
    %216 = arith.subf %215, %214 : vector<8x32xf32>
    %217 = arith.mulf %205, %216 : vector<8x32xf32>
    %218 = arith.addf %217, %3 : vector<8x32xf32>
    %c0_106 = arith.constant 0 : index
    %c0_107 = arith.constant 0 : index
    %219 = vector.load %arg27[%c0_106, %c0_107] : memref<1x32xf32, #tpu.memory_space<vmem>>, vector<1x32xf32>
    %c0_108 = arith.constant 0 : index
    %c0_109 = arith.constant 0 : index
    %220 = vector.load %arg28[%c0_108, %c0_109] : memref<1x32xf32, #tpu.memory_space<vmem>>, vector<1x32xf32>
    %cst_110 = arith.constant dense<0.000000e+00> : vector<8xf32>
    %221 = vector.multi_reduction <add>, %218, %cst_110 [1] : vector<8x32xf32> to vector<8xf32>
    %222 = vector.shape_cast %221 : vector<8xf32> to vector<8x1xf32>
    %cst_111 = arith.constant 3.200000e+01 : f32
    %223 = vector.broadcast %cst_111 : f32 to vector<8x1xf32>
    %224 = arith.divf %222, %223 : vector<8x1xf32>
    %225 = vector.broadcast %224 : vector<8x1xf32> to vector<8x32xf32>
    %226 = arith.subf %218, %225 : vector<8x32xf32>
    %227 = arith.mulf %226, %226 : vector<8x32xf32>
    %cst_112 = arith.constant dense<0.000000e+00> : vector<8xf32>
    %228 = vector.multi_reduction <add>, %227, %cst_112 [1] : vector<8x32xf32> to vector<8xf32>
    %229 = vector.shape_cast %228 : vector<8xf32> to vector<8x1xf32>
    %cst_113 = arith.constant 3.200000e+01 : f32
    %230 = vector.broadcast %cst_113 : f32 to vector<8x1xf32>
    %231 = arith.divf %229, %230 : vector<8x1xf32>
    %232 = vector.broadcast %224 : vector<8x1xf32> to vector<8x32xf32>
    %233 = arith.subf %218, %232 : vector<8x32xf32>
    %cst_114 = arith.constant 9.99999974E-6 : f32
    %234 = vector.broadcast %cst_114 : f32 to vector<8x1xf32>
    %235 = arith.addf %231, %234 : vector<8x1xf32>
    %236 = math.rsqrt %235 : vector<8x1xf32>
    %237 = vector.broadcast %236 : vector<8x1xf32> to vector<8x32xf32>
    %238 = arith.mulf %233, %237 : vector<8x32xf32>
    %239 = vector.broadcast %219 : vector<1x32xf32> to vector<8x32xf32>
    %240 = arith.mulf %238, %239 : vector<8x32xf32>
    %241 = vector.broadcast %220 : vector<1x32xf32> to vector<8x32xf32>
    %242 = arith.addf %240, %241 : vector<8x32xf32>
    %c0_115 = arith.constant 0 : index
    %c0_116 = arith.constant 0 : index
    %243 = vector.load %arg29[%c0_115, %c0_116] : memref<32x32xbf16, #tpu.memory_space<vmem>>, vector<32x32xbf16>
    %cst_117 = arith.constant dense<0.000000e+00> : vector<8x32xf32>
    %244 = tpu.matmul %4, %243, %cst_117 {dimension_numbers = #tpu.dot_dimension_numbers<[1], [0], [0], [1], [0, 0, 1, 1], [], []>} : vector<8x32xbf16>, vector<32x32xbf16>, vector<8x32xf32> -> vector<8x32xf32>
    %c0_118 = arith.constant 0 : index
    %c0_119 = arith.constant 0 : index
    %245 = vector.load %arg30[%c0_118, %c0_119] : memref<1x32xf32, #tpu.memory_space<vmem>>, vector<1x32xf32>
    %246 = vector.broadcast %245 : vector<1x32xf32> to vector<8x32xf32>
    %247 = arith.addf %244, %246 : vector<8x32xf32>
    %248 = math.exp %247 : vector<8x32xf32>
    %cst_120 = arith.constant 1.000000e+00 : f32
    %249 = vector.broadcast %cst_120 : f32 to vector<8x32xf32>
    %250 = arith.addf %249, %248 : vector<8x32xf32>
    %251 = arith.mulf %250, %250 : vector<8x32xf32>
    %cst_121 = arith.constant 1.000000e+00 : f32
    %252 = vector.broadcast %cst_121 : f32 to vector<8x32xf32>
    %253 = arith.addf %251, %252 : vector<8x32xf32>
    %254 = tpu.reciprocal %253 {approx = true} : vector<8x32xf32> -> vector<8x32xf32>
    %cst_122 = arith.constant 2.000000e+00 : f32
    %255 = vector.broadcast %cst_122 : f32 to vector<8x32xf32>
    %256 = arith.mulf %255, %254 : vector<8x32xf32>
    %cst_123 = arith.constant 1.000000e+00 : f32
    %257 = vector.broadcast %cst_123 : f32 to vector<8x32xf32>
    %258 = arith.subf %257, %256 : vector<8x32xf32>
    %259 = arith.mulf %247, %258 : vector<8x32xf32>
    %260 = arith.addf %259, %3 : vector<8x32xf32>
    %c0_124 = arith.constant 0 : index
    %c0_125 = arith.constant 0 : index
    %261 = vector.load %arg31[%c0_124, %c0_125] : memref<1x32xf32, #tpu.memory_space<vmem>>, vector<1x32xf32>
    %c0_126 = arith.constant 0 : index
    %c0_127 = arith.constant 0 : index
    %262 = vector.load %arg32[%c0_126, %c0_127] : memref<1x32xf32, #tpu.memory_space<vmem>>, vector<1x32xf32>
    %cst_128 = arith.constant dense<0.000000e+00> : vector<8xf32>
    %263 = vector.multi_reduction <add>, %260, %cst_128 [1] : vector<8x32xf32> to vector<8xf32>
    %264 = vector.shape_cast %263 : vector<8xf32> to vector<8x1xf32>
    %cst_129 = arith.constant 3.200000e+01 : f32
    %265 = vector.broadcast %cst_129 : f32 to vector<8x1xf32>
    %266 = arith.divf %264, %265 : vector<8x1xf32>
    %267 = vector.broadcast %266 : vector<8x1xf32> to vector<8x32xf32>
    %268 = arith.subf %260, %267 : vector<8x32xf32>
    %269 = arith.mulf %268, %268 : vector<8x32xf32>
    %cst_130 = arith.constant dense<0.000000e+00> : vector<8xf32>
    %270 = vector.multi_reduction <add>, %269, %cst_130 [1] : vector<8x32xf32> to vector<8xf32>
    %271 = vector.shape_cast %270 : vector<8xf32> to vector<8x1xf32>
    %cst_131 = arith.constant 3.200000e+01 : f32
    %272 = vector.broadcast %cst_131 : f32 to vector<8x1xf32>
    %273 = arith.divf %271, %272 : vector<8x1xf32>
    %274 = vector.broadcast %266 : vector<8x1xf32> to vector<8x32xf32>
    %275 = arith.subf %260, %274 : vector<8x32xf32>
    %cst_132 = arith.constant 9.99999974E-6 : f32
    %276 = vector.broadcast %cst_132 : f32 to vector<8x1xf32>
    %277 = arith.addf %273, %276 : vector<8x1xf32>
    %278 = math.rsqrt %277 : vector<8x1xf32>
    %279 = vector.broadcast %278 : vector<8x1xf32> to vector<8x32xf32>
    %280 = arith.mulf %275, %279 : vector<8x32xf32>
    %281 = vector.broadcast %261 : vector<1x32xf32> to vector<8x32xf32>
    %282 = arith.mulf %280, %281 : vector<8x32xf32>
    %283 = vector.broadcast %262 : vector<1x32xf32> to vector<8x32xf32>
    %284 = arith.addf %282, %283 : vector<8x32xf32>
    %c0_133 = arith.constant 0 : index
    %285 = memref.load %arg33[%c0_133] : memref<3xf32, #tpu.memory_space<smem>>
    %286 = vector.broadcast %285 : f32 to vector<8x32xf32>
    %287 = arith.mulf %157, %286 : vector<8x32xf32>
    %c1 = arith.constant 1 : index
    %288 = memref.load %arg33[%c1] : memref<3xf32, #tpu.memory_space<smem>>
    %289 = vector.broadcast %288 : f32 to vector<8x32xf32>
    %290 = arith.mulf %242, %289 : vector<8x32xf32>
    %291 = arith.addf %287, %290 : vector<8x32xf32>
    %c2 = arith.constant 2 : index
    %292 = memref.load %arg33[%c2] : memref<3xf32, #tpu.memory_space<smem>>
    %293 = vector.broadcast %292 : f32 to vector<8x32xf32>
    %294 = arith.mulf %284, %293 : vector<8x32xf32>
    %295 = arith.addf %291, %294 : vector<8x32xf32>
    %c0_134 = arith.constant 0 : index
    %c0_135 = arith.constant 0 : index
    %296 = vector.load %arg35[%c0_134, %c0_135] : memref<8x32xf32, #tpu.memory_space<vmem>>, vector<8x32xf32>
    tpu.vector_store %arg35[%c0_134, %c0_135], %295 {strides = array<i32>} : memref<8x32xf32, #tpu.memory_space<vmem>>, vector<8x32xf32>,
    %c1_i32 = arith.constant 1 : i32
    %297 = arith.cmpi eq, %arg1, %c1_i32 : i32
    %298 = arith.extui %297 : i1 to i32
    %c0_i32_136 = arith.constant 0 : i32
    %299 = arith.cmpi ne, %298, %c0_i32_136 : i32
    scf.if %299 {
      %c0_137 = arith.constant 0 : index
      %c0_138 = arith.constant 0 : index
      %c0_139 = arith.constant 0 : index
      %300 = vector.load %arg34[%c0_137, %c0_138, %c0_139] : memref<1x8x32xf32, #tpu.memory_space<vmem>>, vector<1x8x32xf32>
      %301 = vector.shape_cast %300 : vector<1x8x32xf32> to vector<8x32xf32>
      %302 = vector.shape_cast %295 : vector<8x32xf32> to vector<1x8x32xf32>
      tpu.vector_store %arg34[%c0_137, %c0_138, %c0_139], %302 {strides = array<i32>} : memref<1x8x32xf32, #tpu.memory_space<vmem>>, vector<1x8x32xf32>,
    } else {
    }
    return
  }
  func.func @transform_0(%arg0: i32, %arg1: i32) -> (i32, i32, i32) {
    %c0_i32 = arith.constant 0 : i32
    %c0_i32_0 = arith.constant 0 : i32
    %c0_i32_1 = arith.constant 0 : i32
    return %arg0, %c0_i32, %c0_i32_0 : i32, i32, i32
  }
  func.func @transform_1(%arg0: i32, %arg1: i32) -> (i32, i32, i32) {
    %c0_i32 = arith.constant 0 : i32
    %c0_i32_0 = arith.constant 0 : i32
    %c0_i32_1 = arith.constant 0 : i32
    %c0_i32_2 = arith.constant 0 : i32
    return %c0_i32, %c0_i32_0, %c0_i32_1 : i32, i32, i32
  }
  func.func @transform_2(%arg0: i32, %arg1: i32) -> (i32, i32, i32) {
    %c0_i32 = arith.constant 0 : i32
    %c0_i32_0 = arith.constant 0 : i32
    %c0_i32_1 = arith.constant 0 : i32
    %c0_i32_2 = arith.constant 0 : i32
    return %c0_i32, %c0_i32_0, %c0_i32_1 : i32, i32, i32
  }
  func.func @transform_3(%arg0: i32, %arg1: i32) -> (i32, i32, i32) {
    %c0_i32 = arith.constant 0 : i32
    %c0_i32_0 = arith.constant 0 : i32
    %c0_i32_1 = arith.constant 0 : i32
    %c0_i32_2 = arith.constant 0 : i32
    return %c0_i32, %c0_i32_0, %c0_i32_1 : i32, i32, i32
  }
  func.func @transform_4(%arg0: i32, %arg1: i32) -> (i32, i32, i32) {
    %c0_i32 = arith.constant 0 : i32
    %c0_i32_0 = arith.constant 0 : i32
    %c0_i32_1 = arith.constant 0 : i32
    %c0_i32_2 = arith.constant 0 : i32
    return %c0_i32, %c0_i32_0, %c0_i32_1 : i32, i32, i32
  }
  func.func @transform_5(%arg0: i32, %arg1: i32) -> (i32, i32, i32) {
    %c0_i32 = arith.constant 0 : i32
    %c0_i32_0 = arith.constant 0 : i32
    %c0_i32_1 = arith.constant 0 : i32
    %c0_i32_2 = arith.constant 0 : i32
    return %c0_i32, %c0_i32_0, %c0_i32_1 : i32, i32, i32
  }
  func.func @transform_6(%arg0: i32, %arg1: i32) -> (i32, i32, i32) {
    %c0_i32 = arith.constant 0 : i32
    %c0_i32_0 = arith.constant 0 : i32
    %c0_i32_1 = arith.constant 0 : i32
    %c0_i32_2 = arith.constant 0 : i32
    return %c0_i32, %c0_i32_0, %c0_i32_1 : i32, i32, i32
  }
  func.func @transform_7(%arg0: i32, %arg1: i32) -> (i32, i32, i32) {
    %c0_i32 = arith.constant 0 : i32
    %c0_i32_0 = arith.constant 0 : i32
    %c0_i32_1 = arith.constant 0 : i32
    %c0_i32_2 = arith.constant 0 : i32
    return %c0_i32, %c0_i32_0, %c0_i32_1 : i32, i32, i32
  }
  func.func @transform_8(%arg0: i32, %arg1: i32) -> (i32, i32) {
    %c0_i32 = arith.constant 0 : i32
    %c0_i32_0 = arith.constant 0 : i32
    %c0_i32_1 = arith.constant 0 : i32
    return %c0_i32, %c0_i32_0 : i32, i32
  }
  func.func @transform_9(%arg0: i32, %arg1: i32) -> (i32, i32) {
    %c0_i32 = arith.constant 0 : i32
    %c0_i32_0 = arith.constant 0 : i32
    %c0_i32_1 = arith.constant 0 : i32
    return %c0_i32, %c0_i32_0 : i32, i32
  }
  func.func @transform_10(%arg0: i32, %arg1: i32) -> (i32, i32) {
    %c0_i32 = arith.constant 0 : i32
    %c0_i32_0 = arith.constant 0 : i32
    %c0_i32_1 = arith.constant 0 : i32
    return %c0_i32, %c0_i32_0 : i32, i32
  }
  func.func @transform_11(%arg0: i32, %arg1: i32) -> (i32, i32) {
    %c0_i32 = arith.constant 0 : i32
    %c0_i32_0 = arith.constant 0 : i32
    %c0_i32_1 = arith.constant 0 : i32
    return %c0_i32, %c0_i32_0 : i32, i32
  }
  func.func @transform_12(%arg0: i32, %arg1: i32) -> (i32, i32) {
    %c0_i32 = arith.constant 0 : i32
    %c0_i32_0 = arith.constant 0 : i32
    %c0_i32_1 = arith.constant 0 : i32
    return %c0_i32, %c0_i32_0 : i32, i32
  }
  func.func @transform_13(%arg0: i32, %arg1: i32) -> (i32, i32) {
    %c0_i32 = arith.constant 0 : i32
    %c0_i32_0 = arith.constant 0 : i32
    %c0_i32_1 = arith.constant 0 : i32
    return %c0_i32, %c0_i32_0 : i32, i32
  }
  func.func @transform_14(%arg0: i32, %arg1: i32) -> (i32, i32) {
    %c0_i32 = arith.constant 0 : i32
    %c0_i32_0 = arith.constant 0 : i32
    %c0_i32_1 = arith.constant 0 : i32
    return %c0_i32, %c0_i32_0 : i32, i32
  }
  func.func @transform_15(%arg0: i32, %arg1: i32) -> (i32, i32) {
    %c0_i32 = arith.constant 0 : i32
    %c0_i32_0 = arith.constant 0 : i32
    %c0_i32_1 = arith.constant 0 : i32
    return %c0_i32, %c0_i32_0 : i32, i32
  }
  func.func @transform_16(%arg0: i32, %arg1: i32) -> (i32, i32) {
    %c0_i32 = arith.constant 0 : i32
    %c0_i32_0 = arith.constant 0 : i32
    %c0_i32_1 = arith.constant 0 : i32
    return %c0_i32, %c0_i32_0 : i32, i32
  }
  func.func @transform_17(%arg0: i32, %arg1: i32) -> (i32, i32) {
    %c0_i32 = arith.constant 0 : i32
    %c0_i32_0 = arith.constant 0 : i32
    %c0_i32_1 = arith.constant 0 : i32
    return %c0_i32, %c0_i32_0 : i32, i32
  }
  func.func @transform_18(%arg0: i32, %arg1: i32) -> (i32, i32) {
    %c0_i32 = arith.constant 0 : i32
    %c0_i32_0 = arith.constant 0 : i32
    %c0_i32_1 = arith.constant 0 : i32
    return %c0_i32, %c0_i32_0 : i32, i32
  }
  func.func @transform_19(%arg0: i32, %arg1: i32) -> (i32, i32) {
    %c0_i32 = arith.constant 0 : i32
    %c0_i32_0 = arith.constant 0 : i32
    %c0_i32_1 = arith.constant 0 : i32
    return %c0_i32, %c0_i32_0 : i32, i32
  }
  func.func @transform_20(%arg0: i32, %arg1: i32) -> (i32, i32) {
    %c0_i32 = arith.constant 0 : i32
    %c0_i32_0 = arith.constant 0 : i32
    %c0_i32_1 = arith.constant 0 : i32
    return %c0_i32, %c0_i32_0 : i32, i32
  }
  func.func @transform_21(%arg0: i32, %arg1: i32) -> (i32, i32) {
    %c0_i32 = arith.constant 0 : i32
    %c0_i32_0 = arith.constant 0 : i32
    %c0_i32_1 = arith.constant 0 : i32
    return %c0_i32, %c0_i32_0 : i32, i32
  }
  func.func @transform_22(%arg0: i32, %arg1: i32) -> (i32, i32) {
    %c0_i32 = arith.constant 0 : i32
    %c0_i32_0 = arith.constant 0 : i32
    %c0_i32_1 = arith.constant 0 : i32
    return %c0_i32, %c0_i32_0 : i32, i32
  }
  func.func @transform_23(%arg0: i32, %arg1: i32) -> (i32, i32) {
    %c0_i32 = arith.constant 0 : i32
    %c0_i32_0 = arith.constant 0 : i32
    %c0_i32_1 = arith.constant 0 : i32
    return %c0_i32, %c0_i32_0 : i32, i32
  }
  func.func @transform_24(%arg0: i32, %arg1: i32) -> (i32, i32) {
    %c0_i32 = arith.constant 0 : i32
    %c0_i32_0 = arith.constant 0 : i32
    %c0_i32_1 = arith.constant 0 : i32
    return %c0_i32, %c0_i32_0 : i32, i32
  }
  func.func @transform_25(%arg0: i32, %arg1: i32) -> (i32, i32) {
    %c0_i32 = arith.constant 0 : i32
    %c0_i32_0 = arith.constant 0 : i32
    %c0_i32_1 = arith.constant 0 : i32
    return %c0_i32, %c0_i32_0 : i32, i32
  }
  func.func @transform_26(%arg0: i32, %arg1: i32) -> (i32, i32) {
    %c0_i32 = arith.constant 0 : i32
    %c0_i32_0 = arith.constant 0 : i32
    %c0_i32_1 = arith.constant 0 : i32
    return %c0_i32, %c0_i32_0 : i32, i32
  }
  func.func @transform_27(%arg0: i32, %arg1: i32) -> (i32, i32) {
    %c0_i32 = arith.constant 0 : i32
    %c0_i32_0 = arith.constant 0 : i32
    %c0_i32_1 = arith.constant 0 : i32
    return %c0_i32, %c0_i32_0 : i32, i32
  }
  func.func @transform_28(%arg0: i32, %arg1: i32) -> (i32, i32) {
    %c0_i32 = arith.constant 0 : i32
    %c0_i32_0 = arith.constant 0 : i32
    %c0_i32_1 = arith.constant 0 : i32
    return %c0_i32, %c0_i32_0 : i32, i32
  }
  func.func @transform_29(%arg0: i32, %arg1: i32) -> (i32, i32) {
    %c0_i32 = arith.constant 0 : i32
    %c0_i32_0 = arith.constant 0 : i32
    %c0_i32_1 = arith.constant 0 : i32
    return %c0_i32, %c0_i32_0 : i32, i32
  }
  func.func @transform_30(%arg0: i32, %arg1: i32) -> (i32, i32) {
    %c0_i32 = arith.constant 0 : i32
    %c0_i32_0 = arith.constant 0 : i32
    %c0_i32_1 = arith.constant 0 : i32
    return %c0_i32, %c0_i32_0 : i32, i32
  }
  func.func @transform_31(%arg0: i32, %arg1: i32) -> i32 {
    %c0_i32 = arith.constant 0 : i32
    %c0_i32_0 = arith.constant 0 : i32
    return %c0_i32 : i32
  }
  func.func @transform_32(%arg0: i32, %arg1: i32) -> (i32, i32, i32) {
    %c0_i32 = arith.constant 0 : i32
    %c0_i32_0 = arith.constant 0 : i32
    %c0_i32_1 = arith.constant 0 : i32
    return %arg0, %c0_i32, %c0_i32_0 : i32, i32, i32
  }
}

module attributes {stable_mosaic.version = 11 : i64} {
  func.func @head_kernel(%arg0: i32, %arg1: memref<2x128xf32, #tpu.memory_space<vmem>>, %arg2: memref<1x128xf32, #tpu.memory_space<vmem>>, %arg3: memref<1x128xf32, #tpu.memory_space<vmem>>, %arg4: memref<1x128xf32, #tpu.memory_space<vmem>>, %arg5: memref<1x128xf32, #tpu.memory_space<vmem>>, %arg6: memref<128x128xbf16, #tpu.memory_space<vmem>>, %arg7: memref<1x128xf32, #tpu.memory_space<vmem>>, %arg8: memref<2x128xf32, #tpu.memory_space<vmem>>, %arg9: memref<2x128xf32, #tpu.memory_space<vmem>>) attributes {dimension_semantics = [#tpu.dimension_semantics<arbitrary>], iteration_bounds = array<i64: 2>, scalar_prefetch = 0 : i64, scratch_operands = 1 : i64, tpu.core_type = #tpu.core_type<tc>, window_params = [{transform_indices = @transform_0, window_bounds = array<i64: 2, 128>}, {transform_indices = @transform_1, window_bounds = array<i64: 1, 128>}, {transform_indices = @transform_2, window_bounds = array<i64: 1, 128>}, {transform_indices = @transform_3, window_bounds = array<i64: 1, 128>}, {transform_indices = @transform_4, window_bounds = array<i64: 1, 128>}, {transform_indices = @transform_5, window_bounds = array<i64: 128, 128>}, {pipeline_mode = #tpu.pipeline_mode<synchronous>, transform_indices = @transform_6, window_bounds = array<i64: 1, 128>}, {pipeline_mode = #tpu.pipeline_mode<synchronous>, transform_indices = @transform_7, window_bounds = array<i64: 2, 128>}]} {
    %c0_i32 = arith.constant 0 : i32
    %0 = arith.cmpi eq, %arg0, %c0_i32 : i32
    %1 = arith.extui %0 : i1 to i32
    %c0_i32_0 = arith.constant 0 : i32
    %2 = arith.cmpi ne, %1, %c0_i32_0 : i32
    scf.if %2 {
      %cst_22 = arith.constant 0.000000e+00 : f32
      %40 = vector.broadcast %cst_22 : f32 to vector<2x128xf32>
      %c0_23 = arith.constant 0 : index
      %c0_24 = arith.constant 0 : index
      %41 = vector.load %arg9[%c0_23, %c0_24] : memref<2x128xf32, #tpu.memory_space<vmem>>, vector<2x128xf32>
      tpu.vector_store %arg9[%c0_23, %c0_24], %40 {strides = array<i32>} : memref<2x128xf32, #tpu.memory_space<vmem>>, vector<2x128xf32>,
    } else {
    }
    %c0 = arith.constant 0 : index
    %c0_1 = arith.constant 0 : index
    %3 = vector.load %arg1[%c0, %c0_1] : memref<2x128xf32, #tpu.memory_space<vmem>>, vector<2x128xf32>
    %c0_2 = arith.constant 0 : index
    %c0_3 = arith.constant 0 : index
    %4 = vector.load %arg4[%c0_2, %c0_3] : memref<1x128xf32, #tpu.memory_space<vmem>>, vector<1x128xf32>
    %5 = vector.broadcast %4 : vector<1x128xf32> to vector<2x128xf32>
    %6 = arith.subf %3, %5 : vector<2x128xf32>
    %c0_4 = arith.constant 0 : index
    %c0_5 = arith.constant 0 : index
    %7 = vector.load %arg5[%c0_4, %c0_5] : memref<1x128xf32, #tpu.memory_space<vmem>>, vector<1x128xf32>
    %cst = arith.constant 9.99999974E-6 : f32
    %8 = vector.broadcast %cst : f32 to vector<1x128xf32>
    %9 = arith.addf %7, %8 : vector<1x128xf32>
    %10 = math.rsqrt %9 : vector<1x128xf32>
    %11 = vector.broadcast %10 : vector<1x128xf32> to vector<2x128xf32>
    %12 = arith.mulf %6, %11 : vector<2x128xf32>
    %c0_6 = arith.constant 0 : index
    %c0_7 = arith.constant 0 : index
    %13 = vector.load %arg2[%c0_6, %c0_7] : memref<1x128xf32, #tpu.memory_space<vmem>>, vector<1x128xf32>
    %14 = vector.broadcast %13 : vector<1x128xf32> to vector<2x128xf32>
    %15 = arith.mulf %12, %14 : vector<2x128xf32>
    %c0_8 = arith.constant 0 : index
    %c0_9 = arith.constant 0 : index
    %16 = vector.load %arg3[%c0_8, %c0_9] : memref<1x128xf32, #tpu.memory_space<vmem>>, vector<1x128xf32>
    %17 = vector.broadcast %16 : vector<1x128xf32> to vector<2x128xf32>
    %18 = arith.addf %15, %17 : vector<2x128xf32>
    %19 = math.exp %18 : vector<2x128xf32>
    %cst_10 = arith.constant 1.000000e+00 : f32
    %20 = vector.broadcast %cst_10 : f32 to vector<2x128xf32>
    %21 = arith.addf %20, %19 : vector<2x128xf32>
    %22 = arith.mulf %21, %21 : vector<2x128xf32>
    %cst_11 = arith.constant 1.000000e+00 : f32
    %23 = vector.broadcast %cst_11 : f32 to vector<2x128xf32>
    %24 = arith.addf %22, %23 : vector<2x128xf32>
    %25 = tpu.reciprocal %24 {approx = true} : vector<2x128xf32> -> vector<2x128xf32>
    %cst_12 = arith.constant 2.000000e+00 : f32
    %26 = vector.broadcast %cst_12 : f32 to vector<2x128xf32>
    %27 = arith.mulf %26, %25 : vector<2x128xf32>
    %cst_13 = arith.constant 1.000000e+00 : f32
    %28 = vector.broadcast %cst_13 : f32 to vector<2x128xf32>
    %29 = arith.subf %28, %27 : vector<2x128xf32>
    %30 = arith.mulf %18, %29 : vector<2x128xf32>
    %c0_14 = arith.constant 0 : index
    %c0_15 = arith.constant 0 : index
    %31 = vector.load %arg9[%c0_14, %c0_15] : memref<2x128xf32, #tpu.memory_space<vmem>>, vector<2x128xf32>
    %32 = arith.truncf %30 : vector<2x128xf32> to vector<2x128xbf16>
    %c0_16 = arith.constant 0 : index
    %c0_17 = arith.constant 0 : index
    %33 = vector.load %arg6[%c0_16, %c0_17] : memref<128x128xbf16, #tpu.memory_space<vmem>>, vector<128x128xbf16>
    %cst_18 = arith.constant dense<0.000000e+00> : vector<2x128xf32>
    %34 = tpu.matmul %32, %33, %cst_18 {dimension_numbers = #tpu.dot_dimension_numbers<[1], [0], [0], [1], [0, 0, 1, 1], [], []>} : vector<2x128xbf16>, vector<128x128xbf16>, vector<2x128xf32> -> vector<2x128xf32>
    %35 = arith.addf %31, %34 : vector<2x128xf32>
    %c0_19 = arith.constant 0 : index
    %c0_20 = arith.constant 0 : index
    %36 = vector.load %arg9[%c0_19, %c0_20] : memref<2x128xf32, #tpu.memory_space<vmem>>, vector<2x128xf32>
    tpu.vector_store %arg9[%c0_19, %c0_20], %35 {strides = array<i32>} : memref<2x128xf32, #tpu.memory_space<vmem>>, vector<2x128xf32>,
    %c1_i32 = arith.constant 1 : i32
    %37 = arith.cmpi eq, %arg0, %c1_i32 : i32
    %38 = arith.extui %37 : i1 to i32
    %c0_i32_21 = arith.constant 0 : i32
    %39 = arith.cmpi ne, %38, %c0_i32_21 : i32
    scf.if %39 {
      %c0_22 = arith.constant 0 : index
      %c0_23 = arith.constant 0 : index
      %40 = vector.load %arg9[%c0_22, %c0_23] : memref<2x128xf32, #tpu.memory_space<vmem>>, vector<2x128xf32>
      %c0_24 = arith.constant 0 : index
      %c0_25 = arith.constant 0 : index
      %41 = vector.load %arg7[%c0_24, %c0_25] : memref<1x128xf32, #tpu.memory_space<vmem>>, vector<1x128xf32>
      %42 = vector.broadcast %41 : vector<1x128xf32> to vector<2x128xf32>
      %43 = arith.addf %40, %42 : vector<2x128xf32>
      %44 = tpu.iota {dimensions = array<i32: 1>} : vector<2x128xi32>
      %c5_i32 = arith.constant 5 : i32
      %45 = vector.broadcast %c5_i32 : i32 to vector<2x128xi32>
      %46 = arith.cmpi slt, %44, %45 : vector<2x128xi32>
      %cst_26 = arith.constant -1.000000e+30 : f32
      %47 = vector.broadcast %cst_26 : f32 to vector<2x128xf32>
      %48 = arith.select %46, %43, %47 : vector<2x128xi1>, vector<2x128xf32>
      %cst_27 = arith.constant dense<0xFF800000> : vector<2xf32>
      %49 = vector.multi_reduction <maximumf>, %48, %cst_27 [1] : vector<2x128xf32> to vector<2xf32>
      %50 = vector.shape_cast %49 : vector<2xf32> to vector<2x1xf32>
      %51 = vector.broadcast %50 : vector<2x1xf32> to vector<2x128xf32>
      %52 = arith.subf %48, %51 : vector<2x128xf32>
      %53 = math.exp %52 : vector<2x128xf32>
      %cst_28 = arith.constant dense<0.000000e+00> : vector<2xf32>
      %54 = vector.multi_reduction <add>, %53, %cst_28 [1] : vector<2x128xf32> to vector<2xf32>
      %55 = vector.shape_cast %54 : vector<2xf32> to vector<2x1xf32>
      %56 = vector.broadcast %55 : vector<2x1xf32> to vector<2x128xf32>
      %57 = arith.divf %53, %56 : vector<2x128xf32>
      %c0_29 = arith.constant 0 : index
      %c0_30 = arith.constant 0 : index
      %58 = vector.load %arg8[%c0_29, %c0_30] : memref<2x128xf32, #tpu.memory_space<vmem>>, vector<2x128xf32>
      tpu.vector_store %arg8[%c0_29, %c0_30], %57 {strides = array<i32>} : memref<2x128xf32, #tpu.memory_space<vmem>>, vector<2x128xf32>,
    } else {
    }
    return
  }
  func.func @transform_0(%arg0: i32) -> (i32, i32) {
    %c0_i32 = arith.constant 0 : i32
    %c0_i32_0 = arith.constant 0 : i32
    return %c0_i32, %arg0 : i32, i32
  }
  func.func @transform_1(%arg0: i32) -> (i32, i32) {
    %c0_i32 = arith.constant 0 : i32
    %c0_i32_0 = arith.constant 0 : i32
    return %c0_i32, %arg0 : i32, i32
  }
  func.func @transform_2(%arg0: i32) -> (i32, i32) {
    %c0_i32 = arith.constant 0 : i32
    %c0_i32_0 = arith.constant 0 : i32
    return %c0_i32, %arg0 : i32, i32
  }
  func.func @transform_3(%arg0: i32) -> (i32, i32) {
    %c0_i32 = arith.constant 0 : i32
    %c0_i32_0 = arith.constant 0 : i32
    return %c0_i32, %arg0 : i32, i32
  }
  func.func @transform_4(%arg0: i32) -> (i32, i32) {
    %c0_i32 = arith.constant 0 : i32
    %c0_i32_0 = arith.constant 0 : i32
    return %c0_i32, %arg0 : i32, i32
  }
  func.func @transform_5(%arg0: i32) -> (i32, i32) {
    %c0_i32 = arith.constant 0 : i32
    %c0_i32_0 = arith.constant 0 : i32
    return %arg0, %c0_i32 : i32, i32
  }
  func.func @transform_6(%arg0: i32) -> (i32, i32) {
    %c0_i32 = arith.constant 0 : i32
    %c0_i32_0 = arith.constant 0 : i32
    %c0_i32_1 = arith.constant 0 : i32
    return %c0_i32, %c0_i32_0 : i32, i32
  }
  func.func @transform_7(%arg0: i32) -> (i32, i32) {
    %c0_i32 = arith.constant 0 : i32
    %c0_i32_0 = arith.constant 0 : i32
    %c0_i32_1 = arith.constant 0 : i32
    return %c0_i32, %c0_i32_0 : i32, i32
  }
}

</mosaic_0001>

<llo_original>
// kernel: albert_forward.7
$region0: #{albert_forward.7}
  #allocation0 [shape = 'u32[]', space=smem, size = 0x4, offset = 0x4, fixed_abs, tag = 'smem constant byte address 0x4 - core index']
  #allocation1 [shape = 'u32[144,128]{1,0:T(1,128)}', space=vmem, size = 0x12000, scoped, tag = 'internal scratch']
  #allocation2 [shape = 'f32[2,128]{1,0:T(2,128)}', space=vmem, size = 0x400, scoped, tag = 'scratch operand']
  %s0 = inlined_call_operand.vmem [shape: f32[2,256], index: 0, kind: input, shape index: {}]
  %s1 = inlined_call_operand.vmem [shape: f32[1,256], index: 1, kind: input, shape index: {}]
  %s2 = inlined_call_operand.vmem [shape: f32[1,256], index: 2, kind: input, shape index: {}]
  %s3 = inlined_call_operand.vmem [shape: f32[1,256], index: 3, kind: input, shape index: {}]
  %s4 = inlined_call_operand.vmem [shape: f32[1,256], index: 4, kind: input, shape index: {}]
  %s5 = inlined_call_operand.hbm [shape: bf16[256,128], index: 5, kind: input, shape index: {}]
  %s6 = inlined_call_operand.vmem [shape: f32[1,128], index: 6, kind: input, shape index: {}]
  %s7 = inlined_call_operand.hbm [shape: f32[2,128], index: 7, kind: output, shape index: {}]
  %s8 = sld [smem:[#allocation0]]
  $region73: #{albert_forward.7} parent=0
    _
  %s10 = ssub.s32 1, %s8
  %s11 = scalar_select 0, %s10, %s8
  $region1: #{albert_forward.7} parent=0
    #allocation3 [shape = 'u8[65536]{0}', space=vmem, size = 0x10000, scoped, tag = 'input window, operand 5']
    #allocation4 [shape = 's32[2]{0}', space=sflag, size = 0x8, scoped, tag = 'scoped memory for albert_forward.7']
    #allocation5 [shape = 's32[2]{0}', space=sflag, size = 0x8, scoped, tag = 'scoped memory for albert_forward.7']
    #allocation6 [shape = 'u8[1024]{0}', space=vmem, size = 0x400, scoped, tag = 'output window, operand 0, single buffered']
    %12 = vsyncpa [#allocation4], 0
    %s13 = scalar_lea.sflag [#allocation4], 1
    %14 = vsyncpa %s13, 0
    %15 = vsyncpa [#allocation5], 0
    loop: start=0, step=1, limit=4
    $region2: #{albert_forward.7} parent=1 // loop_pre_header
      _
    $region3: #{albert_forward.7} parent=1 // loop_header
      %s17 = sphi 0, %s21
      %p18 = scmp.ge.s32.totalorder %s17, 4
      %s27 = sphi 0, %s29
      %s30 = sphi 0, %s27
      %s31 = sphi 0, %s30
      %s47 = sphi 0, %s31
      %s53 = sphi 0, %s55
      %s56 = sphi 0, %s53
      %s57 = sphi 0, %s56
      %s73 = sphi 0, %s57
      %s79 = sphi 0, %s81
      %s82 = sphi 0, %s79
      %s83 = sphi 0, %s82
      %s99 = sphi 0, %s83
      %s105 = sphi 0, %s107
      %s108 = sphi 0, %s105
      %s109 = sphi 0, %s108
      %s125 = sphi 0, %s109
      %s131 = sphi 0, %s133
      %s134 = sphi 0, %s131
      %s135 = sphi 0, %s134
      %s151 = sphi 0, %s135
      %s157 = sphi 0, %s159
      %s160 = sphi 0, %s157
      %s161 = sphi 0, %s160
      %s177 = sphi 0, %s161
      %s181 = sphi 0, %s181
      %s183 = sphi 0, %s181
      %s184 = sphi 0, %s183
      %s198 = sphi 0, %s184
      %s202 = sphi 0, %s202
      %s204 = sphi 0, %s202
      %s205 = sphi 0, %s204
      %s219 = sphi 0, %s205
    $region4: #{albert_forward.7} parent=1 // loop_header_branch
      %20 = sbr.rel (%p18) target = $region8
    $region5: #{albert_forward.7} parent=1 // loop_body
      %s22 = ssub.s32 %s17, 1
      %s23 = ssub.s32 %s17, 2
      %s24 = sadd.s32 %s17, 1
      %s25 = ssub.s32 %s17, %s24
      %p26 = scmp.eq.s32.totalorder %s25, 0
      %s28 = sadd.s32 %s27, 1
      %s29 = scalar_select %p26, %s27, %s28
      %p32 = pneg %p26
      %p33 = scmp.eq.s32.totalorder %s17, 1
      %p34 = por %p32, %p33
      %p35 = scmp.ne.s32.totalorder %s27, %s30
      %p36 = scmp.eq.s32.totalorder %s17, 0
      %p37 = por %p35, %p36
      %p38 = scmp.ne.s32.totalorder %s27, %s30
      %p39 = scmp.eq.s32.totalorder %s22, 1
      %p40 = por %p38, %p39
      %p41 = scmp.ne.s32.totalorder %s30, %s31
      %p42 = scmp.eq.s32.totalorder %s22, 0
      %p43 = por %p41, %p42
      %p44 = scmp.ne.s32.totalorder %s30, %s31
      %p45 = scmp.eq.s32.totalorder %s23, 1
      %p46 = por %p44, %p45
      %p48 = scmp.ne.s32.totalorder %s31, %s47
      %p49 = scmp.eq.s32.totalorder %s23, 0
      %p50 = por %p48, %p49
      %s51 = ssub.s32 %s17, %s24
      %p52 = scmp.eq.s32.totalorder %s51, 0
      %s54 = sadd.s32 %s53, 1
      %s55 = scalar_select %p52, %s53, %s54
      %p58 = pneg %p52
      %p59 = scmp.eq.s32.totalorder %s17, 1
      %p60 = por %p58, %p59
      %p61 = scmp.ne.s32.totalorder %s53, %s56
      %p62 = scmp.eq.s32.totalorder %s17, 0
      %p63 = por %p61, %p62
      %p64 = scmp.ne.s32.totalorder %s53, %s56
      %p65 = scmp.eq.s32.totalorder %s22, 1
      %p66 = por %p64, %p65
      %p67 = scmp.ne.s32.totalorder %s56, %s57
      %p68 = scmp.eq.s32.totalorder %s22, 0
      %p69 = por %p67, %p68
      %p70 = scmp.ne.s32.totalorder %s56, %s57
      %p71 = scmp.eq.s32.totalorder %s23, 1
      %p72 = por %p70, %p71
      %p74 = scmp.ne.s32.totalorder %s57, %s73
      %p75 = scmp.eq.s32.totalorder %s23, 0
      %p76 = por %p74, %p75
      %s77 = ssub.s32 %s17, %s24
      %p78 = scmp.eq.s32.totalorder %s77, 0
      %s80 = sadd.s32 %s79, 1
      %s81 = scalar_select %p78, %s79, %s80
      %p84 = pneg %p78
      %p85 = scmp.eq.s32.totalorder %s17, 1
      %p86 = por %p84, %p85
      %p87 = scmp.ne.s32.totalorder %s79, %s82
      %p88 = scmp.eq.s32.totalorder %s17, 0
      %p89 = por %p87, %p88
      %p90 = scmp.ne.s32.totalorder %s79, %s82
      %p91 = scmp.eq.s32.totalorder %s22, 1
      %p92 = por %p90, %p91
      %p93 = scmp.ne.s32.totalorder %s82, %s83
      %p94 = scmp.eq.s32.totalorder %s22, 0
      %p95 = por %p93, %p94
      %p96 = scmp.ne.s32.totalorder %s82, %s83
      %p97 = scmp.eq.s32.totalorder %s23, 1
      %p98 = por %p96, %p97
      %p100 = scmp.ne.s32.totalorder %s83, %s99
      %p101 = scmp.eq.s32.totalorder %s23, 0
      %p102 = por %p100, %p101
      %s103 = ssub.s32 %s17, %s24
      %p104 = scmp.eq.s32.totalorder %s103, 0
      %s106 = sadd.s32 %s105, 1
      %s107 = scalar_select %p104, %s105, %s106
      %p110 = pneg %p104
      %p111 = scmp.eq.s32.totalorder %s17, 1
      %p112 = por %p110, %p111
      %p113 = scmp.ne.s32.totalorder %s105, %s108
      %p114 = scmp.eq.s32.totalorder %s17, 0
      %p115 = por %p113, %p114
      %p116 = scmp.ne.s32.totalorder %s105, %s108
      %p117 = scmp.eq.s32.totalorder %s22, 1
      %p118 = por %p116, %p117
      %p119 = scmp.ne.s32.totalorder %s108, %s109
      %p120 = scmp.eq.s32.totalorder %s22, 0
      %p121 = por %p119, %p120
      %p122 = scmp.ne.s32.totalorder %s108, %s109
      %p123 = scmp.eq.s32.totalorder %s23, 1
      %p124 = por %p122, %p123
      %p126 = scmp.ne.s32.totalorder %s109, %s125
      %p127 = scmp.eq.s32.totalorder %s23, 0
      %p128 = por %p126, %p127
      %s129 = ssub.s32 %s17, %s24
      %p130 = scmp.eq.s32.totalorder %s129, 0
      %s132 = sadd.s32 %s131, 1
      %s133 = scalar_select %p130, %s131, %s132
      %p136 = pneg %p130
      %p137 = scmp.eq.s32.totalorder %s17, 1
      %p138 = por %p136, %p137
      %p139 = scmp.ne.s32.totalorder %s131, %s134
      %p140 = scmp.eq.s32.totalorder %s17, 0
      %p141 = por %p139, %p140
      %p142 = scmp.ne.s32.totalorder %s131, %s134
      %p143 = scmp.eq.s32.totalorder %s22, 1
      %p144 = por %p142, %p143
      %p145 = scmp.ne.s32.totalorder %s134, %s135
      %p146 = scmp.eq.s32.totalorder %s22, 0
      %p147 = por %p145, %p146
      %p148 = scmp.ne.s32.totalorder %s134, %s135
      %p149 = scmp.eq.s32.totalorder %s23, 1
      %p150 = por %p148, %p149
      %p152 = scmp.ne.s32.totalorder %s135, %s151
      %p153 = scmp.eq.s32.totalorder %s23, 0
      %p154 = por %p152, %p153
      %s155 = ssub.s32 %s17, %s24
      %p156 = scmp.eq.s32.totalorder %s155, 0
      %s158 = sadd.s32 %s157, 1
      %s159 = scalar_select %p156, %s157, %s158
      %p162 = pneg %p156
      %p163 = scmp.eq.s32.totalorder %s17, 1
      %p164 = por %p162, %p163
      %p165 = scmp.ne.s32.totalorder %s157, %s160
      %p166 = scmp.eq.s32.totalorder %s17, 0
      %p167 = por %p165, %p166
      %p168 = scmp.ne.s32.totalorder %s157, %s160
      %p169 = scmp.eq.s32.totalorder %s22, 1
      %p170 = por %p168, %p169
      %p171 = scmp.ne.s32.totalorder %s160, %s161
      %p172 = scmp.eq.s32.totalorder %s22, 0
      %p173 = por %p171, %p172
      %p174 = scmp.ne.s32.totalorder %s160, %s161
      %p175 = scmp.eq.s32.totalorder %s23, 1
      %p176 = por %p174, %p175
      %p178 = scmp.ne.s32.totalorder %s161, %s177
      %p179 = scmp.eq.s32.totalorder %s23, 0
      %p180 = por %p178, %p179
      %s182 = sadd.s32 %s181, 1
      %p185 = scmp.eq.s32.totalorder %s17, 1
      %p186 = scmp.ne.s32.totalorder %s181, %s183
      %p187 = scmp.eq.s32.totalorder %s17, 0
      %p188 = por %p186, %p187
      %p189 = scmp.ne.s32.totalorder %s181, %s183
      %p190 = scmp.eq.s32.totalorder %s22, 1
      %p191 = por %p189, %p190
      %p192 = scmp.ne.s32.totalorder %s183, %s184
      %p193 = scmp.eq.s32.totalorder %s22, 0
      %p194 = por %p192, %p193
      %p195 = scmp.ne.s32.totalorder %s183, %s184
      %p196 = scmp.eq.s32.totalorder %s23, 1
      %p197 = por %p195, %p196
      %p199 = scmp.ne.s32.totalorder %s184, %s198
      %p200 = scmp.eq.s32.totalorder %s23, 0
      %p201 = por %p199, %p200
      %s203 = sadd.s32 %s202, 1
      %p206 = scmp.eq.s32.totalorder %s17, 1
      %p207 = scmp.ne.s32.totalorder %s202, %s204
      %p208 = scmp.eq.s32.totalorder %s17, 0
      %p209 = por %p207, %p208
      %p210 = scmp.ne.s32.totalorder %s202, %s204
      %p211 = scmp.eq.s32.totalorder %s22, 1
      %p212 = por %p210, %p211
      %p213 = scmp.ne.s32.totalorder %s204, %s205
      %p214 = scmp.eq.s32.totalorder %s22, 0
      %p215 = por %p213, %p214
      %p216 = scmp.ne.s32.totalorder %s204, %s205
      %p217 = scmp.eq.s32.totalorder %s23, 1
      %p218 = por %p216, %p217
      %p220 = scmp.ne.s32.totalorder %s205, %s219
      %p221 = scmp.eq.s32.totalorder %s23, 0
      %p222 = por %p220, %p221
      %p223 = scmp.le.s32.totalorder 1, %s17
      %p224 = scmp.lt.s32.totalorder %s17, 3
      %p225 = pnand %p223, %p224
      %p226 = pneg %p225
      // Predicated region
      $region9: #{albert_forward.7} parent=5 // pred_check
        _
      $region10: #{albert_forward.7} parent=5 // pred_check_branch
        %228 = sbr.rel (%p225) target = $region12
      $region11: #{albert_forward.7} parent=5 // pred_region
        %s229 = ssub.s32 %s17, 1
        // Predicated region
        $region13: #{albert_forward.7} parent=11 // pred_check
          %p230 = pneg %p194
        $region14: #{albert_forward.7} parent=11 // pred_check_branch
          %232 = sbr.rel (%p230) target = $region16
        $region15: #{albert_forward.7} parent=11 // pred_region
          _
        $region16: #{albert_forward.7} parent=11 // pred_fallthru
          _
      $region12: #{albert_forward.7} parent=5 // pred_fallthru
        _
      %p233 = scmp.lt.s32.totalorder %s17, 2
      // Predicated region
      $region17: #{albert_forward.7} parent=5 // pred_check
        %p234 = pneg %p233
      $region18: #{albert_forward.7} parent=5 // pred_check_branch
        %236 = sbr.rel (%p234) target = $region20
      $region19: #{albert_forward.7} parent=5 // pred_region
        // Predicated region
        $region21: #{albert_forward.7} parent=19 // pred_check
          %p237 = pneg %p37
        $region22: #{albert_forward.7} parent=19 // pred_check_branch
          %239 = sbr.rel (%p237) target = $region24
        $region23: #{albert_forward.7} parent=19 // pred_region
          %p240 = scmp.lt.s32.totalorder %s17, 1
          %s241 = scalar_select %p240, %s17, 1
          %s242 = smul.addr %s241, 2
          %s243 = scalar_lea.vmem %s0, %s242
        $region24: #{albert_forward.7} parent=19 // pred_fallthru
          _
        // Predicated region
        $region25: #{albert_forward.7} parent=19 // pred_check
          %p244 = pneg %p63
        $region26: #{albert_forward.7} parent=19 // pred_check_branch
          %246 = sbr.rel (%p244) target = $region28
        $region27: #{albert_forward.7} parent=19 // pred_region
          %p247 = scmp.lt.s32.totalorder %s17, 1
          %s248 = scalar_select %p247, %s17, 1
          %s249 = scalar_lea.vmem %s1, %s248
        $region28: #{albert_forward.7} parent=19 // pred_fallthru
          _
        // Predicated region
        $region29: #{albert_forward.7} parent=19 // pred_check
          %p250 = pneg %p89
        $region30: #{albert_forward.7} parent=19 // pred_check_branch
          %252 = sbr.rel (%p250) target = $region32
        $region31: #{albert_forward.7} parent=19 // pred_region
          %p253 = scmp.lt.s32.totalorder %s17, 1
          %s254 = scalar_select %p253, %s17, 1
          %s255 = scalar_lea.vmem %s2, %s254
        $region32: #{albert_forward.7} parent=19 // pred_fallthru
          _
        // Predicated region
        $region33: #{albert_forward.7} parent=19 // pred_check
          %p256 = pneg %p115
        $region34: #{albert_forward.7} parent=19 // pred_check_branch
          %258 = sbr.rel (%p256) target = $region36
        $region35: #{albert_forward.7} parent=19 // pred_region
          %p259 = scmp.lt.s32.totalorder %s17, 1
          %s260 = scalar_select %p259, %s17, 1
          %s261 = scalar_lea.vmem %s3, %s260
        $region36: #{albert_forward.7} parent=19 // pred_fallthru
          _
        // Predicated region
        $region37: #{albert_forward.7} parent=19 // pred_check
          %p262 = pneg %p141
        $region38: #{albert_forward.7} parent=19 // pred_check_branch
          %264 = sbr.rel (%p262) target = $region40
        $region39: #{albert_forward.7} parent=19 // pred_region
          %p265 = scmp.lt.s32.totalorder %s17, 1
          %s266 = scalar_select %p265, %s17, 1
          %s267 = scalar_lea.vmem %s4, %s266
        $region40: #{albert_forward.7} parent=19 // pred_fallthru
          _
        // Predicated region
        $region41: #{albert_forward.7} parent=19 // pred_check
          %p268 = pneg %p167
        $region42: #{albert_forward.7} parent=19 // pred_check_branch
          %270 = sbr.rel (%p268) target = $region44
        $region43: #{albert_forward.7} parent=19 // pred_region
          %s271 = sand.u32 %s157, 1
          %s272 = scalar_lea.sflag [#allocation4], %s271
          %s273 = sand.u32 %s157, 1
          %s274 = smul.addr %s273, 64
          %s275 = scalar_lea.vmem [#allocation3], %s274
          %s276 = smul.u32 16, %s17
          %s278 = ssub.s32 1024, 1024
          %279 = vsyncadd %s272, %s278
          %s280 = smul.addr %s276, 64
          %s281 = scalar_lea.hbm %s5, %s280
          %s282 = sshll.u32 %s275, 4
          %s283 = int_to_ptr.vmem [resolvable:$true] %s282
          %288 = dma.hbm_to_vmem [thread:$0]  %s281, 1024, %s283, %s272, 64, 64, 4
        $region44: #{albert_forward.7} parent=19 // pred_fallthru
          _
      $region20: #{albert_forward.7} parent=5 // pred_fallthru
        _
      %p289 = scmp.le.s32.totalorder 1, %s17
      %p290 = scmp.lt.s32.totalorder %s17, 3
      %p291 = pnand %p289, %p290
      %p292 = pneg %p291
      // Predicated region
      $region45: #{albert_forward.7} parent=5 // pred_check
        _
      $region46: #{albert_forward.7} parent=5 // pred_check_branch
        %294 = sbr.rel (%p291) target = $region48
      $region47: #{albert_forward.7} parent=5 // pred_region
        %s295 = ssub.s32 %s17, 1
        %s296 = sand.u32 %s160, 1
        %s297 = scalar_lea.sflag [#allocation4], %s296
        %s298 = sand.u32 %s160, 1
        %s299 = smul.addr %s298, 64
        %s300 = scalar_lea.vmem [#allocation3], %s299
        // Predicated region
        $region49: #{albert_forward.7} parent=47 // pred_check
          %p301 = pneg %p173
        $region50: #{albert_forward.7} parent=47 // pred_check_branch
          %303 = sbr.rel (%p301) target = $region52
        $region51: #{albert_forward.7} parent=47 // pred_region
          %304 = dma.done %s297, 1024
        $region52: #{albert_forward.7} parent=47 // pred_fallthru
          _
        %p305 = scmp.lt.s32.totalorder %s22, 1
        %s306 = scalar_select %p305, %s22, 1
        %s307 = smul.addr %s306, 2
        %s308 = scalar_lea.vmem %s0, %s307
        %p309 = pneg %p43
        %p310 = pneg %p40
        %p311 = scmp.lt.s32.totalorder %s22, 1
        %s312 = scalar_select %p311, %s22, 1
        %s313 = scalar_lea.vmem %s1, %s312
        %p314 = pneg %p69
        %p315 = pneg %p66
        %p316 = scmp.lt.s32.totalorder %s22, 1
        %s317 = scalar_select %p316, %s22, 1
        %s318 = scalar_lea.vmem %s2, %s317
        %p319 = pneg %p95
        %p320 = pneg %p92
        %p321 = scmp.lt.s32.totalorder %s22, 1
        %s322 = scalar_select %p321, %s22, 1
        %s323 = scalar_lea.vmem %s3, %s322
        %p324 = pneg %p121
        %p325 = pneg %p118
        %p326 = scmp.lt.s32.totalorder %s22, 1
        %s327 = scalar_select %p326, %s22, 1
        %s328 = scalar_lea.vmem %s4, %s327
        %p329 = pneg %p147
        %p330 = pneg %p144
        %s331 = sand.u32 %s160, 1
        %s332 = scalar_lea.sflag [#allocation4], %s331
        %s333 = sand.u32 %s160, 1
        %s334 = smul.addr %s333, 64
        %s335 = scalar_lea.vmem [#allocation3], %s334
        %p336 = pneg %p173
        %p337 = pneg %p170
        %p338 = pneg %p194
        %p339 = pneg %p191
        %p340 = pneg %p215
        %p341 = pneg %p212
        %p342 = scmp.lt.s32.totalorder %s22, 1
        %s343 = scalar_select %p342, %s22, 1
        %s344 = smul.addr %s343, 2
        %s345 = scalar_lea.vmem %s0, %s344
        %p346 = scmp.lt.s32.totalorder %s22, 1
        %s347 = scalar_select %p346, %s22, 1
        %s348 = scalar_lea.vmem %s1, %s347
        %p349 = scmp.lt.s32.totalorder %s22, 1
        %s350 = scalar_select %p349, %s22, 1
        %s351 = scalar_lea.vmem %s2, %s350
        %p352 = scmp.lt.s32.totalorder %s22, 1
        %s353 = scalar_select %p352, %s22, 1
        %s354 = scalar_lea.vmem %s3, %s353
        %p355 = scmp.lt.s32.totalorder %s22, 1
        %s356 = scalar_select %p355, %s22, 1
        %s357 = scalar_lea.vmem %s4, %s356
        %s358 = smul.u32 16, %s22
        %p360 = scmp.eq.s32.totalorder %s22, 0
        // Predicated region
        $region53: #{albert_forward.7} parent=47 // pred_check
          %p361 = pneg %p360
        $region54: #{albert_forward.7} parent=47 // pred_check_branch
          %363 = sbr.rel (%p361) target = $region56
        $region55: #{albert_forward.7} parent=47 // pred_region
          %364 = vst [vmem:[#allocation2] sm:$0x3] 0.0
        $region56: #{albert_forward.7} parent=47 // pred_fallthru
          _
        %v365 = vld [vmem:[%s345] sm:$0x3]
        %v366 = vld [vmem:[%s354] sm:$0x1]
        %v368 = vlaneseq
        %v369 = vshrl.u32 %v368, 7
        %v370 = vsub.s32 0, %v369
        %v371 = vrot.slane %v366, %v370
        %v373 = vsub.f32 %v365, %v371
        %v374 = vld [vmem:[%s357] sm:$0x1]
        %v375 = vadd.f32 %v374, 1e-05
        %v376 = vrsqrt.pop %v375
        %v378 = vlaneseq
        %v379 = vshrl.u32 %v378, 7
        %v380 = vsub.s32 0, %v379
        %v381 = vrot.slane %v376, %v380
        %v383 = vmul.f32 %v373, %v381
        %v384 = vld [vmem:[%s348] sm:$0x1]
        %v386 = vlaneseq
        %v387 = vshrl.u32 %v386, 7
        %v388 = vsub.s32 0, %v387
        %v389 = vrot.slane %v384, %v388
        %v391 = vmul.f32 %v383, %v389
        %v392 = vld [vmem:[%s351] sm:$0x1]
        %v394 = vlaneseq
        %v395 = vshrl.u32 %v394, 7
        %v396 = vsub.s32 0, %v395
        %v397 = vrot.slane %v392, %v396
        %v399 = vadd.f32 %v391, %v397
        %v400 = vmul.f32 %v399, 1.442695
        %v401 = vpow.pop %v400
        %v402 = vadd.f32 %v401, 1.0
        %v403 = vmul.f32 %v402, %v402
        %v404 = vadd.f32 %v403, 1.0
        %v405 = vrcp.pop %v404
        %v406 = vmul.f32 %v405, 2.0
        %v407 = vsub.f32 1.0, %v406
        %v408 = vmul.f32 %v399, %v407
        %v409 = vld [vmem:[#allocation2] sm:$0x3]
        %v410 = vpack.c.bf16 %v408, %v408
        %v411 = vld [vmem:[%s300] sm:$0xf]
        %v412 = vld [vmem:[%s300 + $0x4] sm:$0xf]
        %v413 = vld [vmem:[%s300 + $0x8] sm:$0xf]
        %v414 = vld [vmem:[%s300 + $0xc] sm:$0xf]
        %v415 = vld [vmem:[%s300 + $0x10] sm:$0xf]
        %v416 = vld [vmem:[%s300 + $0x14] sm:$0xf]
        %v417 = vld [vmem:[%s300 + $0x18] sm:$0xf]
        %v418 = vld [vmem:[%s300 + $0x1c] sm:$0xf]
        %v419 = vld [vmem:[%s300 + $0x20] sm:$0xf]
        %v420 = vld [vmem:[%s300 + $0x24] sm:$0xf]
        %v421 = vld [vmem:[%s300 + $0x28] sm:$0xf]
        %v422 = vld [vmem:[%s300 + $0x2c] sm:$0xf]
        %v423 = vld [vmem:[%s300 + $0x30] sm:$0xf]
        %v424 = vld [vmem:[%s300 + $0x34] sm:$0xf]
        %v425 = vld [vmem:[%s300 + $0x38] sm:$0xf]
        %v426 = vld [vmem:[%s300 + $0x3c] sm:$0xf]
        %v443 = vunpack.c.l.b16 %v411
        %v444 = vunpack.c.l.b16 %v412
        %v445 = vunpack.c.l.b16 %v413
        %v446 = vunpack.c.l.b16 %v414
        %v447 = vunpack.c.l.b16 %v415
        %v448 = vunpack.c.l.b16 %v416
        %v449 = vunpack.c.l.b16 %v417
        %v450 = vunpack.c.l.b16 %v418
        %v451 = vunpack.c.l.b16 %v419
        %v452 = vunpack.c.l.b16 %v420
        %v453 = vunpack.c.l.b16 %v421
        %v454 = vunpack.c.l.b16 %v422
        %v455 = vunpack.c.l.b16 %v423
        %v456 = vunpack.c.l.b16 %v424
        %v457 = vunpack.c.l.b16 %v425
        %v458 = vunpack.c.l.b16 %v426
        %v459 = vpack.c.b16 %v444, %v443
        %v460 = vpack.c.b16 %v446, %v445
        %v461 = vpack.c.b16 %v448, %v447
        %v462 = vpack.c.b16 %v450, %v449
        %v463 = vpack.c.b16 %v452, %v451
        %v464 = vpack.c.b16 %v454, %v453
        %v465 = vpack.c.b16 %v456, %v455
        %v466 = vpack.c.b16 %v458, %v457
        %475 = vmatprep.subr.bf16.mxu0 0
        %476 = vmatpush1.bf16.msra.mxu0 %v459
        %477 = vmatprep.subr.bf16.mxu0 0
        %478 = vmatpush1.bf16.msra.mxu0 %v460
        %479 = vmatprep.subr.bf16.mxu0 0
        %480 = vmatpush1.bf16.msra.mxu0 %v461
        %481 = vmatprep.subr.bf16.mxu0 0
        %482 = vmatpush1.bf16.msra.mxu0 %v462
        %483 = vmatprep.subr.bf16.mxu0 0
        %484 = vmatpush1.bf16.msra.mxu0 %v463
        %485 = vmatprep.subr.bf16.mxu0 0
        %486 = vmatpush1.bf16.msra.mxu0 %v464
        %487 = vmatprep.subr.bf16.mxu0 0
        %488 = vmatpush1.bf16.msra.mxu0 %v465
        %489 = vmatprep.subr.bf16.mxu0 0
        %490 = vmatpush1.bf16.msra.mxu0 %v466
        %491 = vmatprep.subr.bf16.mxu0 0
        %492 = vmatpush1.bf16.msra.mxu0 0
        %493 = vmatprep.subr.bf16.mxu0 0
        %494 = vmatpush1.bf16.msra.mxu0 0
        %495 = vmatprep.subr.bf16.mxu0 0
        %496 = vmatpush1.bf16.msra.mxu0 0
        %497 = vmatprep.subr.bf16.mxu0 0
        %498 = vmatpush1.bf16.msra.mxu0 0
        %499 = vmatprep.subr.bf16.mxu0 0
        %500 = vmatpush1.bf16.msra.mxu0 0
        %501 = vmatprep.subr.bf16.mxu0 0
        %502 = vmatpush1.bf16.msra.mxu0 0
        %503 = vmatprep.subr.bf16.mxu0 0
        %504 = vmatpush1.bf16.msra.mxu0 0
        %505 = vmatprep.subr.bf16.mxu0 0
        %506 = vmatpush1.bf16.msra.mxu0 0
        %507 = vmatprep.mubr.bf16.mxu0 0
        %508 = vmatmul.mubr.bf16.gmra.mrb[0].mxu0 %v410
        %v509 = vpop.f32.mrb[0].mxu0
        %v510 = vadd.f32 0.0, %v509
        %v511 = vpop.f32.mrb[0].mxu0
        %v512 = vpop.f32.mrb[0].mxu0
        %v513 = vpop.f32.mrb[0].mxu0
        %514 = vdwg.mxu0
        %v515 = vadd.f32 %v409, %v510
        %516 = vst [vmem:[#allocation2] sm:$0x3] %v515
        %p517 = scmp.eq.s32.totalorder %s22, 1
        // Predicated region
        $region57: #{albert_forward.7} parent=47 // pred_check
          %p518 = pneg %p517
        $region58: #{albert_forward.7} parent=47 // pred_check_branch
          %520 = sbr.rel (%p518) target = $region60
        $region59: #{albert_forward.7} parent=47 // pred_region
          %v521 = vld [vmem:[#allocation2] sm:$0x3]
          %v522 = vld [vmem:[%s6] sm:$0x1]
          %v524 = vlaneseq
          %v525 = vshrl.u32 %v524, 7
          %v526 = vsub.s32 0, %v525
          %v527 = vrot.slane %v522, %v526
          %v529 = vadd.f32 %v521, %v527
          %v530 = vlaneseq
          %v531 = vand.u32 %v530, 127
          %vm532 = vcmp.lt.s32.totalorder %v531, 5
          %v533 = vsel %vm532, %v529, -1e+30
          %vm534 = vcmask 1041408
          %v535 = vsel %vm534, %v533, -inf
          %536 = vmax.xlane.f32.xlu0 %v535
          %v537 = vpop.xlane.xlu0 %536
          %v538 = vsub.f32 %v533, %v537
          %v539 = vmul.f32 %v538, 1.442695
          %v540 = vpow.pop %v539
          %v541 = vsel %vm534, %v540, 0.0
          %542 = vadd.xlane.f32.xlu0 %v541
          %v543 = vpop.xlane.xlu0 %542
          %v544 = vrcp.pop %v543
          %v545 = vmul.f32 %v540, %v544
          %546 = vst [vmem:[#allocation6] sm:$0x3] %v545
        $region60: #{albert_forward.7} parent=47 // pred_fallthru
          _
        // Predicated region
        $region61: #{albert_forward.7} parent=47 // pred_check
          %p547 = pneg %p212
        $region62: #{albert_forward.7} parent=47 // pred_check_branch
          %549 = sbr.rel (%p547) target = $region64
        $region63: #{albert_forward.7} parent=47 // pred_region
          %s551 = ssub.s32 32, 32
          %552 = vsyncadd [#allocation5], %s551
          %s554 = sshll.u32 [#allocation6], 4
          %s555 = int_to_ptr.vmem [resolvable:$true] %s554
          %557 = dma.vmem_to_hbm [thread:$0]  %s555, 32, %s7, [#allocation5]
        $region64: #{albert_forward.7} parent=47 // pred_fallthru
          _
        // Predicated region
        $region65: #{albert_forward.7} parent=47 // pred_check
          %p558 = pneg %p212
        $region66: #{albert_forward.7} parent=47 // pred_check_branch
          %560 = sbr.rel (%p558) target = $region68
        $region67: #{albert_forward.7} parent=47 // pred_region
          %561 = dma.done [#allocation5], 32
        $region68: #{albert_forward.7} parent=47 // pred_fallthru
          _
      $region48: #{albert_forward.7} parent=5 // pred_fallthru
        _
      %p562 = scmp.le.s32.totalorder 2, %s17
      // Predicated region
      $region69: #{albert_forward.7} parent=5 // pred_check
        %p563 = pneg %p562
      $region70: #{albert_forward.7} parent=5 // pred_check_branch
        %565 = sbr.rel (%p563) target = $region72
      $region71: #{albert_forward.7} parent=5 // pred_region
        %s566 = ssub.s32 %s17, 2
      $region72: #{albert_forward.7} parent=5 // pred_fallthru
        _
    $region6: #{albert_forward.7} parent=1 // loop_footer
      %s21 = sadd.s32 1, %s17
    $region7: #{albert_forward.7} parent=1 // loop_footer_branch
      %16 = sbr.rel target = $region3
    $region8: #{albert_forward.7} parent=1 // loop_exit
      _
    %567 = vsyncpa [#allocation4], 1
    %s568 = scalar_lea.sflag [#allocation4], 1
    %569 = vsyncpa %s568, 1
    %570 = vsyncpa [#allocation5], 1
    %s571 = scalar_lea.sflag [#allocation5], 1
    %572 = vsyncpa %s571, 1

// kernel: albert_forward.4
$region0: #{albert_forward.4}
  #allocation0 [shape = 'u32[]', space=smem, size = 0x4, offset = 0x4, fixed_abs, tag = 'smem constant byte address 0x4 - core index']
  #allocation1 [shape = 'u32[144,128]{1,0:T(1,128)}', space=vmem, size = 0x12000, scoped, tag = 'internal scratch']
  %s0 = inlined_call_operand.vmem [shape: f32[2,8,16], index: 0, kind: input, shape index: {}]
  %s1 = inlined_call_operand.vmem [shape: bf16[16,32], index: 1, kind: input, shape index: {}]
  %s2 = inlined_call_operand.vmem [shape: f32[1,32], index: 2, kind: input, shape index: {}]
  %s3 = inlined_call_operand.vmem [shape: f32[8,32], index: 3, kind: input, shape index: {}]
  %s4 = inlined_call_operand.hbm [shape: f32[2,8,32], index: 4, kind: output, shape index: {}]
  %s5 = sld [smem:[#allocation0]]
  $region26: #{albert_forward.4} parent=0
    _
  %s7 = ssub.s32 1, %s5
  %s8 = scalar_select 0, %s7, %s5
  $region1: #{albert_forward.4} parent=0
    #allocation2 [shape = 'u8[8192]{0}', space=vmem, size = 0x2000, scoped, tag = 'output window, operand 0, single buffered']
    #allocation3 [shape = 's32[1]{0}', space=sflag, size = 0x4, scoped, tag = 'scoped memory for albert_forward.4']
    %9 = vsyncpa [#allocation3], 0
    // Predicated region
    $region2: #{albert_forward.4} parent=1 // pred_check
      _
    $region3: #{albert_forward.4} parent=1 // pred_check_branch
      %11 = sbr.rel (0) target = $region5
    $region4: #{albert_forward.4} parent=1 // pred_region
      _
    $region5: #{albert_forward.4} parent=1 // pred_fallthru
      _
    // Predicated region
    $region6: #{albert_forward.4} parent=1 // pred_check
      _
    $region7: #{albert_forward.4} parent=1 // pred_check_branch
      %13 = sbr.rel (0) target = $region9
    $region8: #{albert_forward.4} parent=1 // pred_region
      _
    $region9: #{albert_forward.4} parent=1 // pred_fallthru
      _
    // Predicated region
    $region10: #{albert_forward.4} parent=1 // pred_check
      _
    $region11: #{albert_forward.4} parent=1 // pred_check_branch
      %15 = sbr.rel (0) target = $region13
    $region12: #{albert_forward.4} parent=1 // pred_region
      _
    $region13: #{albert_forward.4} parent=1 // pred_fallthru
      _
    // Predicated region
    $region14: #{albert_forward.4} parent=1 // pred_check
      _
    $region15: #{albert_forward.4} parent=1 // pred_check_branch
      %17 = sbr.rel (0) target = $region17
    $region16: #{albert_forward.4} parent=1 // pred_region
      _
    $region17: #{albert_forward.4} parent=1 // pred_fallthru
      _
    %v19 = vld [vmem:[%s0] sm:$0xff]
    %v20 = vld [vmem:[%s0 + $0x8] sm:$0xff]
    %v21 = vpack.c.bf16 %v20, %v19
    %v22 = vld [vmem:[%s1] sm:$0xf]
    %v23 = vld [vmem:[%s1 + $0x4] sm:$0xf]
    %v24 = vld [vmem:[%s2] sm:$0x1]
    %v26 = vlaneseq
    %v27 = vshrl.u32 %v26, 7
    %v28 = vsub.s32 0, %v27
    %v29 = vrot.slane %v24, %v28
    %v33 = vunpack.c.l.b16 %v22
    %v34 = vunpack.c.l.b16 %v23
    %v35 = vpack.c.b16 %v34, %v33
    %vm37 = vcmask 130048
    %v39 = vsel %vm37, %v21, 0
    %41 = vmatprep.subr.bf16.mxu0 0
    %42 = vmatpush1.bf16.msra.mxu0 %v35
    %43 = vmatprep.subr.bf16.mxu0 0
    %44 = vmatpush1.bf16.msra.mxu0 0
    %45 = vmatprep.subr.bf16.mxu0 0
    %46 = vmatpush1.bf16.msra.mxu0 0
    %47 = vmatprep.subr.bf16.mxu0 0
    %48 = vmatpush1.bf16.msra.mxu0 0
    %49 = vmatprep.subr.bf16.mxu0 0
    %50 = vmatpush1.bf16.msra.mxu0 0
    %51 = vmatprep.subr.bf16.mxu0 0
    %52 = vmatpush1.bf16.msra.mxu0 0
    %53 = vmatprep.subr.bf16.mxu0 0
    %54 = vmatpush1.bf16.msra.mxu0 0
    %55 = vmatprep.subr.bf16.mxu0 0
    %56 = vmatpush1.bf16.msra.mxu0 0
    %57 = vmatprep.subr.bf16.mxu0 0
    %58 = vmatpush1.bf16.msra.mxu0 0
    %59 = vmatprep.subr.bf16.mxu0 0
    %60 = vmatpush1.bf16.msra.mxu0 0
    %61 = vmatprep.subr.bf16.mxu0 0
    %62 = vmatpush1.bf16.msra.mxu0 0
    %63 = vmatprep.subr.bf16.mxu0 0
    %64 = vmatpush1.bf16.msra.mxu0 0
    %65 = vmatprep.subr.bf16.mxu0 0
    %66 = vmatpush1.bf16.msra.mxu0 0
    %67 = vmatprep.subr.bf16.mxu0 0
    %68 = vmatpush1.bf16.msra.mxu0 0
    %69 = vmatprep.subr.bf16.mxu0 0
    %70 = vmatpush1.bf16.msra.mxu0 0
    %71 = vmatprep.subr.bf16.mxu0 0
    %72 = vmatpush1.bf16.msra.mxu0 0
    %73 = vmatprep.mubr.bf16.mxu0 0
    %74 = vmatmul.mubr.bf16.gmra.mrb[0].mxu0 %v39
    %v75 = vpop.f32.mrb[0].mxu0
    %v76 = vadd.f32 %v29, %v75
    %v77 = vpop.f32.mrb[0].mxu0
    %v78 = vpop.f32.mrb[0].mxu0
    %v79 = vadd.f32 %v29, %v78
    %v80 = vpop.f32.mrb[0].mxu0
    %81 = vdwg.mxu0
    %v82 = vld [vmem:[%s3] sm:$0xff]
    %v83 = vadd.f32 %v76, %v82
    %v84 = vadd.f32 %v79, %v82
    %vm85 = vcmask 261120
    %86 = vst.msk [vmem:[#allocation2] sm:$0xff] %vm85, %v83
    %87 = vst.msk [vmem:[#allocation2 + $0x8] sm:$0xff] %vm85, %v84
    // Predicated region
    $region18: #{albert_forward.4} parent=1 // pred_check
      _
    $region19: #{albert_forward.4} parent=1 // pred_check_branch
      %89 = sbr.rel (0) target = $region21
    $region20: #{albert_forward.4} parent=1 // pred_region
      %s91 = ssub.s32 256, 256
      %92 = vsyncadd [#allocation3], %s91
      %s93 = sshll.u32 [#allocation2], 4
      %s94 = int_to_ptr.vmem [resolvable:$true] %s93
      %99 = dma.vmem_to_hbm [thread:$0]  %s94, 256, %s4, [#allocation3], 128, 128, 8
    $region21: #{albert_forward.4} parent=1 // pred_fallthru
      _
    // Predicated region
    $region22: #{albert_forward.4} parent=1 // pred_check
      _
    $region23: #{albert_forward.4} parent=1 // pred_check_branch
      %101 = sbr.rel (0) target = $region25
    $region24: #{albert_forward.4} parent=1 // pred_region
      %102 = dma.done [#allocation3], 256
    $region25: #{albert_forward.4} parent=1 // pred_fallthru
      _
    %103 = vsyncpa [#allocation3], 1

// kernel: albert_forward.5
$region0: #{albert_forward.5}
  #allocation0 [shape = 'u32[]', space=smem, size = 0x4, offset = 0x4, fixed_abs, tag = 'smem constant byte address 0x4 - core index']
  #allocation1 [shape = 'u32[144,128]{1,0:T(1,128)}', space=vmem, size = 0x12000, scoped, tag = 'internal scratch']
  #allocation2 [shape = 'f32[8,32]{1,0:T(8,128)}', space=vmem, size = 0x1000, scoped, tag = 'scratch operand']
  %s0 = inlined_call_operand.smem [shape: u32[33], index: -1, kind: input, shape index: {}]
  %s1 = sld [smem:[%s0]]
  %s2 = scalar_lea.smem %s0, 1
  %s3 = sld [smem:[%s2]]
  %s4 = scalar_lea.smem %s0, 2
  %s5 = sld [smem:[%s4]]
  %s6 = scalar_lea.smem %s0, 3
  %s7 = sld [smem:[%s6]]
  %s8 = scalar_lea.smem %s0, 4
  %s9 = sld [smem:[%s8]]
  %s10 = scalar_lea.smem %s0, 5
  %s11 = sld [smem:[%s10]]
  %s12 = scalar_lea.smem %s0, 6
  %s13 = sld [smem:[%s12]]
  %s14 = scalar_lea.smem %s0, 7
  %s15 = sld [smem:[%s14]]
  %s16 = scalar_lea.smem %s0, 8
  %s17 = sld [smem:[%s16]]
  %s18 = scalar_lea.smem %s0, 9
  %s19 = sld [smem:[%s18]]
  %s20 = scalar_lea.smem %s0, 10
  %s21 = sld [smem:[%s20]]
  %s22 = scalar_lea.smem %s0, 11
  %s23 = sld [smem:[%s22]]
  %s24 = scalar_lea.smem %s0, 12
  %s25 = sld [smem:[%s24]]
  %s26 = scalar_lea.smem %s0, 13
  %s27 = sld [smem:[%s26]]
  %s28 = scalar_lea.smem %s0, 14
  %s29 = sld [smem:[%s28]]
  %s30 = scalar_lea.smem %s0, 15
  %s31 = sld [smem:[%s30]]
  %s32 = scalar_lea.smem %s0, 16
  %s33 = sld [smem:[%s32]]
  %s34 = scalar_lea.smem %s0, 17
  %s35 = sld [smem:[%s34]]
  %s36 = scalar_lea.smem %s0, 18
  %s37 = sld [smem:[%s36]]
  %s38 = scalar_lea.smem %s0, 19
  %s39 = sld [smem:[%s38]]
  %s40 = scalar_lea.smem %s0, 20
  %s41 = sld [smem:[%s40]]
  %s42 = scalar_lea.smem %s0, 21
  %s43 = sld [smem:[%s42]]
  %s44 = scalar_lea.smem %s0, 22
  %s45 = sld [smem:[%s44]]
  %s46 = scalar_lea.smem %s0, 23
  %s47 = sld [smem:[%s46]]
  %s48 = scalar_lea.smem %s0, 24
  %s49 = sld [smem:[%s48]]
  %s50 = scalar_lea.smem %s0, 25
  %s51 = sld [smem:[%s50]]
  %s52 = scalar_lea.smem %s0, 26
  %s53 = sld [smem:[%s52]]
  %s54 = scalar_lea.smem %s0, 27
  %s55 = sld [smem:[%s54]]
  %s56 = scalar_lea.smem %s0, 28
  %s57 = sld [smem:[%s56]]
  %s58 = scalar_lea.smem %s0, 29
  %s59 = sld [smem:[%s58]]
  %s60 = scalar_lea.smem %s0, 30
  %s61 = sld [smem:[%s60]]
  %s62 = scalar_lea.smem %s0, 31
  %s63 = sld [smem:[%s62]]
  %s64 = scalar_lea.smem %s0, 32
  %s65 = sld [smem:[%s64]]
  %s66 = sld [smem:[#allocation0]]
  $region297: #{albert_forward.5} parent=0
    _
  %s68 = ssub.s32 1, %s66
  %s69 = scalar_select 0, %s68, %s66
  $region1: #{albert_forward.5} parent=0
    #allocation3 [shape = 'u8[8192]{0}', space=vmem, size = 0x2000, scoped, tag = 'input window, operand 0']
    #allocation4 [shape = 's32[2]{0}', space=sflag, size = 0x8, scoped, tag = 'scoped memory for albert_forward.5']
    #allocation5 [shape = 's32[2]{0}', space=sflag, size = 0x8, scoped, tag = 'scoped memory for albert_forward.5']
    #allocation6 [shape = 's32[2]{0}', space=sflag, size = 0x8, scoped, tag = 'scoped memory for albert_forward.5']
    #allocation7 [shape = 'u8[32768]{0}', space=vmem, size = 0x8000, scoped, tag = 'input window, operand 1, single buffered']
    #allocation8 [shape = 's32[1]{0}', space=sflag, size = 0x4, scoped, tag = 'scoped memory for albert_forward.5']
    #allocation9 [shape = 'u8[2048]{0}', space=vmem, size = 0x800, scoped, tag = 'input window, operand 2, single buffered']
    #allocation10 [shape = 'u8[32768]{0}', space=vmem, size = 0x8000, scoped, tag = 'input window, operand 3, single buffered']
    #allocation11 [shape = 's32[1]{0}', space=sflag, size = 0x4, scoped, tag = 'scoped memory for albert_forward.5']
    #allocation12 [shape = 'u8[2048]{0}', space=vmem, size = 0x800, scoped, tag = 'input window, operand 4, single buffered']
    #allocation13 [shape = 'u8[32768]{0}', space=vmem, size = 0x8000, scoped, tag = 'input window, operand 5, single buffered']
    #allocation14 [shape = 's32[1]{0}', space=sflag, size = 0x4, scoped, tag = 'scoped memory for albert_forward.5']
    #allocation15 [shape = 'u8[2048]{0}', space=vmem, size = 0x800, scoped, tag = 'input window, operand 6, single buffered']
    #allocation16 [shape = 'u8[8192]{0}', space=vmem, size = 0x2000, scoped, tag = 'input window, operand 7, single buffered']
    #allocation17 [shape = 's32[1]{0}', space=sflag, size = 0x4, scoped, tag = 'scoped memory for albert_forward.5']
    #allocation18 [shape = 'u8[512]{0}', space=vmem, size = 0x400, scoped, tag = 'input window, operand 8, single buffered']
    #allocation19 [shape = 'u8[512]{0}', space=vmem, size = 0x400, scoped, tag = 'input window, operand 9, single buffered']
    #allocation20 [shape = 's32[1]{0}', space=sflag, size = 0x4, scoped, tag = 'scoped memory for albert_forward.5']
    #allocation21 [shape = 'u8[512]{0}', space=vmem, size = 0x400, scoped, tag = 'input window, operand 10, single buffered']
    #allocation22 [shape = 'u8[8192]{0}', space=vmem, size = 0x2000, scoped, tag = 'input window, operand 11, single buffered']
    #allocation23 [shape = 's32[1]{0}', space=sflag, size = 0x4, scoped, tag = 'scoped memory for albert_forward.5']
    #allocation24 [shape = 'u8[512]{0}', space=vmem, size = 0x400, scoped, tag = 'input window, operand 12, single buffered']
    #allocation25 [shape = 'u8[512]{0}', space=vmem, size = 0x400, scoped, tag = 'input window, operand 13, single buffered']
    #allocation26 [shape = 's32[1]{0}', space=sflag, size = 0x4, scoped, tag = 'scoped memory for albert_forward.5']
    #allocation27 [shape = 'u8[512]{0}', space=vmem, size = 0x400, scoped, tag = 'input window, operand 14, single buffered']
    #allocation28 [shape = 'u8[32768]{0}', space=vmem, size = 0x8000, scoped, tag = 'input window, operand 15, single buffered']
    #allocation29 [shape = 's32[1]{0}', space=sflag, size = 0x4, scoped, tag = 'scoped memory for albert_forward.5']
    #allocation30 [shape = 'u8[512]{0}', space=vmem, size = 0x400, scoped, tag = 'input window, operand 16, single buffered']
    #allocation31 [shape = 'u8[512]{0}', space=vmem, size = 0x400, scoped, tag = 'input window, operand 17, single buffered']
    #allocation32 [shape = 's32[1]{0}', space=sflag, size = 0x4, scoped, tag = 'scoped memory for albert_forward.5']
    #allocation33 [shape = 'u8[512]{0}', space=vmem, size = 0x400, scoped, tag = 'input window, operand 18, single buffered']
    #allocation34 [shape = 'u8[8192]{0}', space=vmem, size = 0x2000, scoped, tag = 'input window, operand 19, single buffered']
    #allocation35 [shape = 's32[1]{0}', space=sflag, size = 0x4, scoped, tag = 'scoped memory for albert_forward.5']
    #allocation36 [shape = 'u8[512]{0}', space=vmem, size = 0x400, scoped, tag = 'input window, operand 20, single buffered']
    #allocation37 [shape = 'u8[512]{0}', space=vmem, size = 0x400, scoped, tag = 'input window, operand 21, single buffered']
    #allocation38 [shape = 's32[1]{0}', space=sflag, size = 0x4, scoped, tag = 'scoped memory for albert_forward.5']
    #allocation39 [shape = 'u8[512]{0}', space=vmem, size = 0x400, scoped, tag = 'input window, operand 22, single buffered']
    #allocation40 [shape = 'u8[32768]{0}', space=vmem, size = 0x8000, scoped, tag = 'input window, operand 23, single buffered']
    #allocation41 [shape = 's32[1]{0}', space=sflag, size = 0x4, scoped, tag = 'scoped memory for albert_forward.5']
    #allocation42 [shape = 'u8[512]{0}', space=vmem, size = 0x400, scoped, tag = 'input window, operand 24, single buffered']
    #allocation43 [shape = 'u8[512]{0}', space=vmem, size = 0x400, scoped, tag = 'input window, operand 25, single buffered']
    #allocation44 [shape = 's32[1]{0}', space=sflag, size = 0x4, scoped, tag = 'scoped memory for albert_forward.5']
    #allocation45 [shape = 'u8[512]{0}', space=vmem, size = 0x400, scoped, tag = 'input window, operand 26, single buffered']
    #allocation46 [shape = 'u8[8192]{0}', space=vmem, size = 0x2000, scoped, tag = 'input window, operand 27, single buffered']
    #allocation47 [shape = 's32[1]{0}', space=sflag, size = 0x4, scoped, tag = 'scoped memory for albert_forward.5']
    #allocation48 [shape = 'u8[512]{0}', space=vmem, size = 0x400, scoped, tag = 'input window, operand 28, single buffered']
    #allocation49 [shape = 'u8[512]{0}', space=vmem, size = 0x400, scoped, tag = 'input window, operand 29, single buffered']
    #allocation50 [shape = 's32[1]{0}', space=sflag, size = 0x4, scoped, tag = 'scoped memory for albert_forward.5']
    #allocation51 [shape = 'u8[512]{0}', space=vmem, size = 0x400, scoped, tag = 'input window, operand 30, single buffered']
    #allocation52 [shape = 'u8[512]{0}', space=smem, size = 0x200, scoped, tag = 'input window, operand 31, single buffered']
    #allocation53 [shape = 'u8[8192]{0}', space=vmem, size = 0x2000, scoped, tag = 'output window, operand 0']
    %70 = vsyncpa [#allocation4], 0
    %s71 = scalar_lea.sflag [#allocation4], 1
    %72 = vsyncpa %s71, 0
    %73 = vsyncpa [#allocation8], 0
    %74 = vsyncpa [#allocation11], 0
    %75 = vsyncpa [#allocation14], 0
    %76 = vsyncpa [#allocation17], 0
    %77 = vsyncpa [#allocation20], 0
    %78 = vsyncpa [#allocation23], 0
    %79 = vsyncpa [#allocation26], 0
    %80 = vsyncpa [#allocation29], 0
    %81 = vsyncpa [#allocation32], 0
    %82 = vsyncpa [#allocation35], 0
    %83 = vsyncpa [#allocation38], 0
    %84 = vsyncpa [#allocation41], 0
    %85 = vsyncpa [#allocation44], 0
    %86 = vsyncpa [#allocation47], 0
    %87 = vsyncpa [#allocation50], 0
    %88 = vsyncpa [#allocation6], 0
    %89 = vsyncpa [#allocation5], 0
    %s90 = scalar_lea.sflag [#allocation5], 1
    %91 = vsyncpa %s90, 0
    loop: start=0, step=1, limit=6
    $region2: #{albert_forward.5} parent=1 // loop_pre_header
      _
    $region3: #{albert_forward.5} parent=1 // loop_header
      %s93 = sphi 0, %s97
      %p94 = scmp.ge.s32.totalorder %s93, 6
      %s100 = sphi 0, %s112
      %s101 = sphi 0, %s108
      %s102 = sphi 0, %s100
      %s103 = sphi 0, %s101
      %s104 = sphi 0, %s102
      %s105 = sphi 0, %s103
      %s115 = sphi 0, %s117
      %s118 = sphi 0, %s115
      %s119 = sphi 0, %s118
      %s135 = sphi 0, %s119
      %s139 = sphi 0, %s139
      %s141 = sphi 0, %s139
      %s142 = sphi 0, %s141
      %s156 = sphi 0, %s142
      %s160 = sphi 0, %s160
      %s162 = sphi 0, %s160
      %s163 = sphi 0, %s162
      %s177 = sphi 0, %s163
      %s181 = sphi 0, %s181
      %s183 = sphi 0, %s181
      %s184 = sphi 0, %s183
      %s198 = sphi 0, %s184
      %s202 = sphi 0, %s202
      %s204 = sphi 0, %s202
      %s205 = sphi 0, %s204
      %s219 = sphi 0, %s205
      %s223 = sphi 0, %s223
      %s225 = sphi 0, %s223
      %s226 = sphi 0, %s225
      %s240 = sphi 0, %s226
      %s244 = sphi 0, %s244
      %s246 = sphi 0, %s244
      %s247 = sphi 0, %s246
      %s261 = sphi 0, %s247
      %s265 = sphi 0, %s265
      %s267 = sphi 0, %s265
      %s268 = sphi 0, %s267
      %s282 = sphi 0, %s268
      %s286 = sphi 0, %s286
      %s288 = sphi 0, %s286
      %s289 = sphi 0, %s288
      %s303 = sphi 0, %s289
      %s307 = sphi 0, %s307
      %s309 = sphi 0, %s307
      %s310 = sphi 0, %s309
      %s324 = sphi 0, %s310
      %s328 = sphi 0, %s328
      %s330 = sphi 0, %s328
      %s331 = sphi 0, %s330
      %s345 = sphi 0, %s331
      %s349 = sphi 0, %s349
      %s351 = sphi 0, %s349
      %s352 = sphi 0, %s351
      %s366 = sphi 0, %s352
      %s370 = sphi 0, %s370
      %s372 = sphi 0, %s370
      %s373 = sphi 0, %s372
      %s387 = sphi 0, %s373
      %s391 = sphi 0, %s391
      %s393 = sphi 0, %s391
      %s394 = sphi 0, %s393
      %s408 = sphi 0, %s394
      %s412 = sphi 0, %s412
      %s414 = sphi 0, %s412
      %s415 = sphi 0, %s414
      %s429 = sphi 0, %s415
      %s433 = sphi 0, %s433
      %s435 = sphi 0, %s433
      %s436 = sphi 0, %s435
      %s450 = sphi 0, %s436
      %s454 = sphi 0, %s454
      %s456 = sphi 0, %s454
      %s457 = sphi 0, %s456
      %s471 = sphi 0, %s457
      %s475 = sphi 0, %s475
      %s477 = sphi 0, %s475
      %s478 = sphi 0, %s477
      %s492 = sphi 0, %s478
      %s496 = sphi 0, %s496
      %s498 = sphi 0, %s496
      %s499 = sphi 0, %s498
      %s513 = sphi 0, %s499
      %s517 = sphi 0, %s517
      %s519 = sphi 0, %s517
      %s520 = sphi 0, %s519
      %s534 = sphi 0, %s520
      %s538 = sphi 0, %s538
      %s540 = sphi 0, %s538
      %s541 = sphi 0, %s540
      %s555 = sphi 0, %s541
      %s559 = sphi 0, %s559
      %s561 = sphi 0, %s559
      %s562 = sphi 0, %s561
      %s576 = sphi 0, %s562
      %s580 = sphi 0, %s580
      %s582 = sphi 0, %s580
      %s583 = sphi 0, %s582
      %s597 = sphi 0, %s583
      %s601 = sphi 0, %s601
      %s603 = sphi 0, %s601
      %s604 = sphi 0, %s603
      %s618 = sphi 0, %s604
      %s622 = sphi 0, %s622
      %s624 = sphi 0, %s622
      %s625 = sphi 0, %s624
      %s639 = sphi 0, %s625
      %s643 = sphi 0, %s643
      %s645 = sphi 0, %s643
      %s646 = sphi 0, %s645
      %s660 = sphi 0, %s646
      %s664 = sphi 0, %s664
      %s666 = sphi 0, %s664
      %s667 = sphi 0, %s666
      %s681 = sphi 0, %s667
      %s685 = sphi 0, %s685
      %s687 = sphi 0, %s685
      %s688 = sphi 0, %s687
      %s702 = sphi 0, %s688
      %s706 = sphi 0, %s706
      %s708 = sphi 0, %s706
      %s709 = sphi 0, %s708
      %s723 = sphi 0, %s709
      %s727 = sphi 0, %s727
      %s729 = sphi 0, %s727
      %s730 = sphi 0, %s729
      %s744 = sphi 0, %s730
      %s748 = sphi 0, %s748
      %s750 = sphi 0, %s748
      %s751 = sphi 0, %s750
      %s765 = sphi 0, %s751
      %s769 = sphi 0, %s769
      %s771 = sphi 0, %s769
      %s772 = sphi 0, %s771
      %s786 = sphi 0, %s772
      %s792 = sphi 0, %s794
      %s795 = sphi 0, %s792
      %s796 = sphi 0, %s795
      %s812 = sphi 0, %s796
    $region4: #{albert_forward.5} parent=1 // loop_header_branch
      %96 = sbr.rel (%p94) target = $region8
    $region5: #{albert_forward.5} parent=1 // loop_body
      %s98 = ssub.s32 %s93, 1
      %s99 = ssub.s32 %s93, 2
      %s106 = sadd.s32 1, %s101
      %p107 = scmp.ge.s32.totalorder %s106, 2
      %s108 = scalar_select %p107, 0, %s106
      %s109 = sadd.s32 1, %s100
      %s110 = scalar_select %p107, %s109, %s100
      %p111 = scmp.ge.s32.totalorder %s110, 2
      %s112 = scalar_select %p111, 0, %s110
      %s113 = ssub.s32 %s100, %s112
      %p114 = scmp.eq.s32.totalorder %s113, 0
      %s116 = sadd.s32 %s115, 1
      %s117 = scalar_select %p114, %s115, %s116
      %p120 = pneg %p114
      %p121 = scmp.eq.s32.totalorder %s93, 3
      %p122 = por %p120, %p121
      %p123 = scmp.ne.s32.totalorder %s115, %s118
      %p124 = scmp.eq.s32.totalorder %s93, 0
      %p125 = por %p123, %p124
      %p126 = scmp.ne.s32.totalorder %s115, %s118
      %p127 = scmp.eq.s32.totalorder %s98, 3
      %p128 = por %p126, %p127
      %p129 = scmp.ne.s32.totalorder %s118, %s119
      %p130 = scmp.eq.s32.totalorder %s98, 0
      %p131 = por %p129, %p130
      %p132 = scmp.ne.s32.totalorder %s118, %s119
      %p133 = scmp.eq.s32.totalorder %s99, 3
      %p134 = por %p132, %p133
      %p136 = scmp.ne.s32.totalorder %s119, %s135
      %p137 = scmp.eq.s32.totalorder %s99, 0
      %p138 = por %p136, %p137
      %s140 = sadd.s32 %s139, 1
      %p143 = scmp.eq.s32.totalorder %s93, 3
      %p144 = scmp.ne.s32.totalorder %s139, %s141
      %p145 = scmp.eq.s32.totalorder %s93, 0
      %p146 = por %p144, %p145
      %p147 = scmp.ne.s32.totalorder %s139, %s141
      %p148 = scmp.eq.s32.totalorder %s98, 3
      %p149 = por %p147, %p148
      %p150 = scmp.ne.s32.totalorder %s141, %s142
      %p151 = scmp.eq.s32.totalorder %s98, 0
      %p152 = por %p150, %p151
      %p153 = scmp.ne.s32.totalorder %s141, %s142
      %p154 = scmp.eq.s32.totalorder %s99, 3
      %p155 = por %p153, %p154
      %p157 = scmp.ne.s32.totalorder %s142, %s156
      %p158 = scmp.eq.s32.totalorder %s99, 0
      %p159 = por %p157, %p158
      %s161 = sadd.s32 %s160, 1
      %p164 = scmp.eq.s32.totalorder %s93, 3
      %p165 = scmp.ne.s32.totalorder %s160, %s162
      %p166 = scmp.eq.s32.totalorder %s93, 0
      %p167 = por %p165, %p166
      %p168 = scmp.ne.s32.totalorder %s160, %s162
      %p169 = scmp.eq.s32.totalorder %s98, 3
      %p170 = por %p168, %p169
      %p171 = scmp.ne.s32.totalorder %s162, %s163
      %p172 = scmp.eq.s32.totalorder %s98, 0
      %p173 = por %p171, %p172
      %p174 = scmp.ne.s32.totalorder %s162, %s163
      %p175 = scmp.eq.s32.totalorder %s99, 3
      %p176 = por %p174, %p175
      %p178 = scmp.ne.s32.totalorder %s163, %s177
      %p179 = scmp.eq.s32.totalorder %s99, 0
      %p180 = por %p178, %p179
      %s182 = sadd.s32 %s181, 1
      %p185 = scmp.eq.s32.totalorder %s93, 3
      %p186 = scmp.ne.s32.totalorder %s181, %s183
      %p187 = scmp.eq.s32.totalorder %s93, 0
      %p188 = por %p186, %p187
      %p189 = scmp.ne.s32.totalorder %s181, %s183
      %p190 = scmp.eq.s32.totalorder %s98, 3
      %p191 = por %p189, %p190
      %p192 = scmp.ne.s32.totalorder %s183, %s184
      %p193 = scmp.eq.s32.totalorder %s98, 0
      %p194 = por %p192, %p193
      %p195 = scmp.ne.s32.totalorder %s183, %s184
      %p196 = scmp.eq.s32.totalorder %s99, 3
      %p197 = por %p195, %p196
      %p199 = scmp.ne.s32.totalorder %s184, %s198
      %p200 = scmp.eq.s32.totalorder %s99, 0
      %p201 = por %p199, %p200
      %s203 = sadd.s32 %s202, 1
      %p206 = scmp.eq.s32.totalorder %s93, 3
      %p207 = scmp.ne.s32.totalorder %s202, %s204
      %p208 = scmp.eq.s32.totalorder %s93, 0
      %p209 = por %p207, %p208
      %p210 = scmp.ne.s32.totalorder %s202, %s204
      %p211 = scmp.eq.s32.totalorder %s98, 3
      %p212 = por %p210, %p211
      %p213 = scmp.ne.s32.totalorder %s204, %s205
      %p214 = scmp.eq.s32.totalorder %s98, 0
      %p215 = por %p213, %p214
      %p216 = scmp.ne.s32.totalorder %s204, %s205
      %p217 = scmp.eq.s32.totalorder %s99, 3
      %p218 = por %p216, %p217
      %p220 = scmp.ne.s32.totalorder %s205, %s219
      %p221 = scmp.eq.s32.totalorder %s99, 0
      %p222 = por %p220, %p221
      %s224 = sadd.s32 %s223, 1
      %p227 = scmp.eq.s32.totalorder %s93, 3
      %p228 = scmp.ne.s32.totalorder %s223, %s225
      %p229 = scmp.eq.s32.totalorder %s93, 0
      %p230 = por %p228, %p229
      %p231 = scmp.ne.s32.totalorder %s223, %s225
      %p232 = scmp.eq.s32.totalorder %s98, 3
      %p233 = por %p231, %p232
      %p234 = scmp.ne.s32.totalorder %s225, %s226
      %p235 = scmp.eq.s32.totalorder %s98, 0
      %p236 = por %p234, %p235
      %p237 = scmp.ne.s32.totalorder %s225, %s226
      %p238 = scmp.eq.s32.totalorder %s99, 3
      %p239 = por %p237, %p238
      %p241 = scmp.ne.s32.totalorder %s226, %s240
      %p242 = scmp.eq.s32.totalorder %s99, 0
      %p243 = por %p241, %p242
      %s245 = sadd.s32 %s244, 1
      %p248 = scmp.eq.s32.totalorder %s93, 3
      %p249 = scmp.ne.s32.totalorder %s244, %s246
      %p250 = scmp.eq.s32.totalorder %s93, 0
      %p251 = por %p249, %p250
      %p252 = scmp.ne.s32.totalorder %s244, %s246
      %p253 = scmp.eq.s32.totalorder %s98, 3
      %p254 = por %p252, %p253
      %p255 = scmp.ne.s32.totalorder %s246, %s247
      %p256 = scmp.eq.s32.totalorder %s98, 0
      %p257 = por %p255, %p256
      %p258 = scmp.ne.s32.totalorder %s246, %s247
      %p259 = scmp.eq.s32.totalorder %s99, 3
      %p260 = por %p258, %p259
      %p262 = scmp.ne.s32.totalorder %s247, %s261
      %p263 = scmp.eq.s32.totalorder %s99, 0
      %p264 = por %p262, %p263
      %s266 = sadd.s32 %s265, 1
      %p269 = scmp.eq.s32.totalorder %s93, 3
      %p270 = scmp.ne.s32.totalorder %s265, %s267
      %p271 = scmp.eq.s32.totalorder %s93, 0
      %p272 = por %p270, %p271
      %p273 = scmp.ne.s32.totalorder %s265, %s267
      %p274 = scmp.eq.s32.totalorder %s98, 3
      %p275 = por %p273, %p274
      %p276 = scmp.ne.s32.totalorder %s267, %s268
      %p277 = scmp.eq.s32.totalorder %s98, 0
      %p278 = por %p276, %p277
      %p279 = scmp.ne.s32.totalorder %s267, %s268
      %p280 = scmp.eq.s32.totalorder %s99, 3
      %p281 = por %p279, %p280
      %p283 = scmp.ne.s32.totalorder %s268, %s282
      %p284 = scmp.eq.s32.totalorder %s99, 0
      %p285 = por %p283, %p284
      %s287 = sadd.s32 %s286, 1
      %p290 = scmp.eq.s32.totalorder %s93, 3
      %p291 = scmp.ne.s32.totalorder %s286, %s288
      %p292 = scmp.eq.s32.totalorder %s93, 0
      %p293 = por %p291, %p292
      %p294 = scmp.ne.s32.totalorder %s286, %s288
      %p295 = scmp.eq.s32.totalorder %s98, 3
      %p296 = por %p294, %p295
      %p297 = scmp.ne.s32.totalorder %s288, %s289
      %p298 = scmp.eq.s32.totalorder %s98, 0
      %p299 = por %p297, %p298
      %p300 = scmp.ne.s32.totalorder %s288, %s289
      %p301 = scmp.eq.s32.totalorder %s99, 3
      %p302 = por %p300, %p301
      %p304 = scmp.ne.s32.totalorder %s289, %s303
      %p305 = scmp.eq.s32.totalorder %s99, 0
      %p306 = por %p304, %p305
      %s308 = sadd.s32 %s307, 1
      %p311 = scmp.eq.s32.totalorder %s93, 3
      %p312 = scmp.ne.s32.totalorder %s307, %s309
      %p313 = scmp.eq.s32.totalorder %s93, 0
      %p314 = por %p312, %p313
      %p315 = scmp.ne.s32.totalorder %s307, %s309
      %p316 = scmp.eq.s32.totalorder %s98, 3
      %p317 = por %p315, %p316
      %p318 = scmp.ne.s32.totalorder %s309, %s310
      %p319 = scmp.eq.s32.totalorder %s98, 0
      %p320 = por %p318, %p319
      %p321 = scmp.ne.s32.totalorder %s309, %s310
      %p322 = scmp.eq.s32.totalorder %s99, 3
      %p323 = por %p321, %p322
      %p325 = scmp.ne.s32.totalorder %s310, %s324
      %p326 = scmp.eq.s32.totalorder %s99, 0
      %p327 = por %p325, %p326
      %s329 = sadd.s32 %s328, 1
      %p332 = scmp.eq.s32.totalorder %s93, 3
      %p333 = scmp.ne.s32.totalorder %s328, %s330
      %p334 = scmp.eq.s32.totalorder %s93, 0
      %p335 = por %p333, %p334
      %p336 = scmp.ne.s32.totalorder %s328, %s330
      %p337 = scmp.eq.s32.totalorder %s98, 3
      %p338 = por %p336, %p337
      %p339 = scmp.ne.s32.totalorder %s330, %s331
      %p340 = scmp.eq.s32.totalorder %s98, 0
      %p341 = por %p339, %p340
      %p342 = scmp.ne.s32.totalorder %s330, %s331
      %p343 = scmp.eq.s32.totalorder %s99, 3
      %p344 = por %p342, %p343
      %p346 = scmp.ne.s32.totalorder %s331, %s345
      %p347 = scmp.eq.s32.totalorder %s99, 0
      %p348 = por %p346, %p347
      %s350 = sadd.s32 %s349, 1
      %p353 = scmp.eq.s32.totalorder %s93, 3
      %p354 = scmp.ne.s32.totalorder %s349, %s351
      %p355 = scmp.eq.s32.totalorder %s93, 0
      %p356 = por %p354, %p355
      %p357 = scmp.ne.s32.totalorder %s349, %s351
      %p358 = scmp.eq.s32.totalorder %s98, 3
      %p359 = por %p357, %p358
      %p360 = scmp.ne.s32.totalorder %s351, %s352
      %p361 = scmp.eq.s32.totalorder %s98, 0
      %p362 = por %p360, %p361
      %p363 = scmp.ne.s32.totalorder %s351, %s352
      %p364 = scmp.eq.s32.totalorder %s99, 3
      %p365 = por %p363, %p364
      %p367 = scmp.ne.s32.totalorder %s352, %s366
      %p368 = scmp.eq.s32.totalorder %s99, 0
      %p369 = por %p367, %p368
      %s371 = sadd.s32 %s370, 1
      %p374 = scmp.eq.s32.totalorder %s93, 3
      %p375 = scmp.ne.s32.totalorder %s370, %s372
      %p376 = scmp.eq.s32.totalorder %s93, 0
      %p377 = por %p375, %p376
      %p378 = scmp.ne.s32.totalorder %s370, %s372
      %p379 = scmp.eq.s32.totalorder %s98, 3
      %p380 = por %p378, %p379
      %p381 = scmp.ne.s32.totalorder %s372, %s373
      %p382 = scmp.eq.s32.totalorder %s98, 0
      %p383 = por %p381, %p382
      %p384 = scmp.ne.s32.totalorder %s372, %s373
      %p385 = scmp.eq.s32.totalorder %s99, 3
      %p386 = por %p384, %p385
      %p388 = scmp.ne.s32.totalorder %s373, %s387
      %p389 = scmp.eq.s32.totalorder %s99, 0
      %p390 = por %p388, %p389
      %s392 = sadd.s32 %s391, 1
      %p395 = scmp.eq.s32.totalorder %s93, 3
      %p396 = scmp.ne.s32.totalorder %s391, %s393
      %p397 = scmp.eq.s32.totalorder %s93, 0
      %p398 = por %p396, %p397
      %p399 = scmp.ne.s32.totalorder %s391, %s393
      %p400 = scmp.eq.s32.totalorder %s98, 3
      %p401 = por %p399, %p400
      %p402 = scmp.ne.s32.totalorder %s393, %s394
      %p403 = scmp.eq.s32.totalorder %s98, 0
      %p404 = por %p402, %p403
      %p405 = scmp.ne.s32.totalorder %s393, %s394
      %p406 = scmp.eq.s32.totalorder %s99, 3
      %p407 = por %p405, %p406
      %p409 = scmp.ne.s32.totalorder %s394, %s408
      %p410 = scmp.eq.s32.totalorder %s99, 0
      %p411 = por %p409, %p410
      %s413 = sadd.s32 %s412, 1
      %p416 = scmp.eq.s32.totalorder %s93, 3
      %p417 = scmp.ne.s32.totalorder %s412, %s414
      %p418 = scmp.eq.s32.totalorder %s93, 0
      %p419 = por %p417, %p418
      %p420 = scmp.ne.s32.totalorder %s412, %s414
      %p421 = scmp.eq.s32.totalorder %s98, 3
      %p422 = por %p420, %p421
      %p423 = scmp.ne.s32.totalorder %s414, %s415
      %p424 = scmp.eq.s32.totalorder %s98, 0
      %p425 = por %p423, %p424
      %p426 = scmp.ne.s32.totalorder %s414, %s415
      %p427 = scmp.eq.s32.totalorder %s99, 3
      %p428 = por %p426, %p427
      %p430 = scmp.ne.s32.totalorder %s415, %s429
      %p431 = scmp.eq.s32.totalorder %s99, 0
      %p432 = por %p430, %p431
      %s434 = sadd.s32 %s433, 1
      %p437 = scmp.eq.s32.totalorder %s93, 3
      %p438 = scmp.ne.s32.totalorder %s433, %s435
      %p439 = scmp.eq.s32.totalorder %s93, 0
      %p440 = por %p438, %p439
      %p441 = scmp.ne.s32.totalorder %s433, %s435
      %p442 = scmp.eq.s32.totalorder %s98, 3
      %p443 = por %p441, %p442
      %p444 = scmp.ne.s32.totalorder %s435, %s436
      %p445 = scmp.eq.s32.totalorder %s98, 0
      %p446 = por %p444, %p445
      %p447 = scmp.ne.s32.totalorder %s435, %s436
      %p448 = scmp.eq.s32.totalorder %s99, 3
      %p449 = por %p447, %p448
      %p451 = scmp.ne.s32.totalorder %s436, %s450
      %p452 = scmp.eq.s32.totalorder %s99, 0
      %p453 = por %p451, %p452
      %s455 = sadd.s32 %s454, 1
      %p458 = scmp.eq.s32.totalorder %s93, 3
      %p459 = scmp.ne.s32.totalorder %s454, %s456
      %p460 = scmp.eq.s32.totalorder %s93, 0
      %p461 = por %p459, %p460
      %p462 = scmp.ne.s32.totalorder %s454, %s456
      %p463 = scmp.eq.s32.totalorder %s98, 3
      %p464 = por %p462, %p463
      %p465 = scmp.ne.s32.totalorder %s456, %s457
      %p466 = scmp.eq.s32.totalorder %s98, 0
      %p467 = por %p465, %p466
      %p468 = scmp.ne.s32.totalorder %s456, %s457
      %p469 = scmp.eq.s32.totalorder %s99, 3
      %p470 = por %p468, %p469
      %p472 = scmp.ne.s32.totalorder %s457, %s471
      %p473 = scmp.eq.s32.totalorder %s99, 0
      %p474 = por %p472, %p473
      %s476 = sadd.s32 %s475, 1
      %p479 = scmp.eq.s32.totalorder %s93, 3
      %p480 = scmp.ne.s32.totalorder %s475, %s477
      %p481 = scmp.eq.s32.totalorder %s93, 0
      %p482 = por %p480, %p481
      %p483 = scmp.ne.s32.totalorder %s475, %s477
      %p484 = scmp.eq.s32.totalorder %s98, 3
      %p485 = por %p483, %p484
      %p486 = scmp.ne.s32.totalorder %s477, %s478
      %p487 = scmp.eq.s32.totalorder %s98, 0
      %p488 = por %p486, %p487
      %p489 = scmp.ne.s32.totalorder %s477, %s478
      %p490 = scmp.eq.s32.totalorder %s99, 3
      %p491 = por %p489, %p490
      %p493 = scmp.ne.s32.totalorder %s478, %s492
      %p494 = scmp.eq.s32.totalorder %s99, 0
      %p495 = por %p493, %p494
      %s497 = sadd.s32 %s496, 1
      %p500 = scmp.eq.s32.totalorder %s93, 3
      %p501 = scmp.ne.s32.totalorder %s496, %s498
      %p502 = scmp.eq.s32.totalorder %s93, 0
      %p503 = por %p501, %p502
      %p504 = scmp.ne.s32.totalorder %s496, %s498
      %p505 = scmp.eq.s32.totalorder %s98, 3
      %p506 = por %p504, %p505
      %p507 = scmp.ne.s32.totalorder %s498, %s499
      %p508 = scmp.eq.s32.totalorder %s98, 0
      %p509 = por %p507, %p508
      %p510 = scmp.ne.s32.totalorder %s498, %s499
      %p511 = scmp.eq.s32.totalorder %s99, 3
      %p512 = por %p510, %p511
      %p514 = scmp.ne.s32.totalorder %s499, %s513
      %p515 = scmp.eq.s32.totalorder %s99, 0
      %p516 = por %p514, %p515
      %s518 = sadd.s32 %s517, 1
      %p521 = scmp.eq.s32.totalorder %s93, 3
      %p522 = scmp.ne.s32.totalorder %s517, %s519
      %p523 = scmp.eq.s32.totalorder %s93, 0
      %p524 = por %p522, %p523
      %p525 = scmp.ne.s32.totalorder %s517, %s519
      %p526 = scmp.eq.s32.totalorder %s98, 3
      %p527 = por %p525, %p526
      %p528 = scmp.ne.s32.totalorder %s519, %s520
      %p529 = scmp.eq.s32.totalorder %s98, 0
      %p530 = por %p528, %p529
      %p531 = scmp.ne.s32.totalorder %s519, %s520
      %p532 = scmp.eq.s32.totalorder %s99, 3
      %p533 = por %p531, %p532
      %p535 = scmp.ne.s32.totalorder %s520, %s534
      %p536 = scmp.eq.s32.totalorder %s99, 0
      %p537 = por %p535, %p536
      %s539 = sadd.s32 %s538, 1
      %p542 = scmp.eq.s32.totalorder %s93, 3
      %p543 = scmp.ne.s32.totalorder %s538, %s540
      %p544 = scmp.eq.s32.totalorder %s93, 0
      %p545 = por %p543, %p544
      %p546 = scmp.ne.s32.totalorder %s538, %s540
      %p547 = scmp.eq.s32.totalorder %s98, 3
      %p548 = por %p546, %p547
      %p549 = scmp.ne.s32.totalorder %s540, %s541
      %p550 = scmp.eq.s32.totalorder %s98, 0
      %p551 = por %p549, %p550
      %p552 = scmp.ne.s32.totalorder %s540, %s541
      %p553 = scmp.eq.s32.totalorder %s99, 3
      %p554 = por %p552, %p553
      %p556 = scmp.ne.s32.totalorder %s541, %s555
      %p557 = scmp.eq.s32.totalorder %s99, 0
      %p558 = por %p556, %p557
      %s560 = sadd.s32 %s559, 1
      %p563 = scmp.eq.s32.totalorder %s93, 3
      %p564 = scmp.ne.s32.totalorder %s559, %s561
      %p565 = scmp.eq.s32.totalorder %s93, 0
      %p566 = por %p564, %p565
      %p567 = scmp.ne.s32.totalorder %s559, %s561
      %p568 = scmp.eq.s32.totalorder %s98, 3
      %p569 = por %p567, %p568
      %p570 = scmp.ne.s32.totalorder %s561, %s562
      %p571 = scmp.eq.s32.totalorder %s98, 0
      %p572 = por %p570, %p571
      %p573 = scmp.ne.s32.totalorder %s561, %s562
      %p574 = scmp.eq.s32.totalorder %s99, 3
      %p575 = por %p573, %p574
      %p577 = scmp.ne.s32.totalorder %s562, %s576
      %p578 = scmp.eq.s32.totalorder %s99, 0
      %p579 = por %p577, %p578
      %s581 = sadd.s32 %s580, 1
      %p584 = scmp.eq.s32.totalorder %s93, 3
      %p585 = scmp.ne.s32.totalorder %s580, %s582
      %p586 = scmp.eq.s32.totalorder %s93, 0
      %p587 = por %p585, %p586
      %p588 = scmp.ne.s32.totalorder %s580, %s582
      %p589 = scmp.eq.s32.totalorder %s98, 3
      %p590 = por %p588, %p589
      %p591 = scmp.ne.s32.totalorder %s582, %s583
      %p592 = scmp.eq.s32.totalorder %s98, 0
      %p593 = por %p591, %p592
      %p594 = scmp.ne.s32.totalorder %s582, %s583
      %p595 = scmp.eq.s32.totalorder %s99, 3
      %p596 = por %p594, %p595
      %p598 = scmp.ne.s32.totalorder %s583, %s597
      %p599 = scmp.eq.s32.totalorder %s99, 0
      %p600 = por %p598, %p599
      %s602 = sadd.s32 %s601, 1
      %p605 = scmp.eq.s32.totalorder %s93, 3
      %p606 = scmp.ne.s32.totalorder %s601, %s603
      %p607 = scmp.eq.s32.totalorder %s93, 0
      %p608 = por %p606, %p607
      %p609 = scmp.ne.s32.totalorder %s601, %s603
      %p610 = scmp.eq.s32.totalorder %s98, 3
      %p611 = por %p609, %p610
      %p612 = scmp.ne.s32.totalorder %s603, %s604
      %p613 = scmp.eq.s32.totalorder %s98, 0
      %p614 = por %p612, %p613
      %p615 = scmp.ne.s32.totalorder %s603, %s604
      %p616 = scmp.eq.s32.totalorder %s99, 3
      %p617 = por %p615, %p616
      %p619 = scmp.ne.s32.totalorder %s604, %s618
      %p620 = scmp.eq.s32.totalorder %s99, 0
      %p621 = por %p619, %p620
      %s623 = sadd.s32 %s622, 1
      %p626 = scmp.eq.s32.totalorder %s93, 3
      %p627 = scmp.ne.s32.totalorder %s622, %s624
      %p628 = scmp.eq.s32.totalorder %s93, 0
      %p629 = por %p627, %p628
      %p630 = scmp.ne.s32.totalorder %s622, %s624
      %p631 = scmp.eq.s32.totalorder %s98, 3
      %p632 = por %p630, %p631
      %p633 = scmp.ne.s32.totalorder %s624, %s625
      %p634 = scmp.eq.s32.totalorder %s98, 0
      %p635 = por %p633, %p634
      %p636 = scmp.ne.s32.totalorder %s624, %s625
      %p637 = scmp.eq.s32.totalorder %s99, 3
      %p638 = por %p636, %p637
      %p640 = scmp.ne.s32.totalorder %s625, %s639
      %p641 = scmp.eq.s32.totalorder %s99, 0
      %p642 = por %p640, %p641
      %s644 = sadd.s32 %s643, 1
      %p647 = scmp.eq.s32.totalorder %s93, 3
      %p648 = scmp.ne.s32.totalorder %s643, %s645
      %p649 = scmp.eq.s32.totalorder %s93, 0
      %p650 = por %p648, %p649
      %p651 = scmp.ne.s32.totalorder %s643, %s645
      %p652 = scmp.eq.s32.totalorder %s98, 3
      %p653 = por %p651, %p652
      %p654 = scmp.ne.s32.totalorder %s645, %s646
      %p655 = scmp.eq.s32.totalorder %s98, 0
      %p656 = por %p654, %p655
      %p657 = scmp.ne.s32.totalorder %s645, %s646
      %p658 = scmp.eq.s32.totalorder %s99, 3
      %p659 = por %p657, %p658
      %p661 = scmp.ne.s32.totalorder %s646, %s660
      %p662 = scmp.eq.s32.totalorder %s99, 0
      %p663 = por %p661, %p662
      %s665 = sadd.s32 %s664, 1
      %p668 = scmp.eq.s32.totalorder %s93, 3
      %p669 = scmp.ne.s32.totalorder %s664, %s666
      %p670 = scmp.eq.s32.totalorder %s93, 0
      %p671 = por %p669, %p670
      %p672 = scmp.ne.s32.totalorder %s664, %s666
      %p673 = scmp.eq.s32.totalorder %s98, 3
      %p674 = por %p672, %p673
      %p675 = scmp.ne.s32.totalorder %s666, %s667
      %p676 = scmp.eq.s32.totalorder %s98, 0
      %p677 = por %p675, %p676
      %p678 = scmp.ne.s32.totalorder %s666, %s667
      %p679 = scmp.eq.s32.totalorder %s99, 3
      %p680 = por %p678, %p679
      %p682 = scmp.ne.s32.totalorder %s667, %s681
      %p683 = scmp.eq.s32.totalorder %s99, 0
      %p684 = por %p682, %p683
      %s686 = sadd.s32 %s685, 1
      %p689 = scmp.eq.s32.totalorder %s93, 3
      %p690 = scmp.ne.s32.totalorder %s685, %s687
      %p691 = scmp.eq.s32.totalorder %s93, 0
      %p692 = por %p690, %p691
      %p693 = scmp.ne.s32.totalorder %s685, %s687
      %p694 = scmp.eq.s32.totalorder %s98, 3
      %p695 = por %p693, %p694
      %p696 = scmp.ne.s32.totalorder %s687, %s688
      %p697 = scmp.eq.s32.totalorder %s98, 0
      %p698 = por %p696, %p697
      %p699 = scmp.ne.s32.totalorder %s687, %s688
      %p700 = scmp.eq.s32.totalorder %s99, 3
      %p701 = por %p699, %p700
      %p703 = scmp.ne.s32.totalorder %s688, %s702
      %p704 = scmp.eq.s32.totalorder %s99, 0
      %p705 = por %p703, %p704
      %s707 = sadd.s32 %s706, 1
      %p710 = scmp.eq.s32.totalorder %s93, 3
      %p711 = scmp.ne.s32.totalorder %s706, %s708
      %p712 = scmp.eq.s32.totalorder %s93, 0
      %p713 = por %p711, %p712
      %p714 = scmp.ne.s32.totalorder %s706, %s708
      %p715 = scmp.eq.s32.totalorder %s98, 3
      %p716 = por %p714, %p715
      %p717 = scmp.ne.s32.totalorder %s708, %s709
      %p718 = scmp.eq.s32.totalorder %s98, 0
      %p719 = por %p717, %p718
      %p720 = scmp.ne.s32.totalorder %s708, %s709
      %p721 = scmp.eq.s32.totalorder %s99, 3
      %p722 = por %p720, %p721
      %p724 = scmp.ne.s32.totalorder %s709, %s723
      %p725 = scmp.eq.s32.totalorder %s99, 0
      %p726 = por %p724, %p725
      %s728 = sadd.s32 %s727, 1
      %p731 = scmp.eq.s32.totalorder %s93, 3
      %p732 = scmp.ne.s32.totalorder %s727, %s729
      %p733 = scmp.eq.s32.totalorder %s93, 0
      %p734 = por %p732, %p733
      %p735 = scmp.ne.s32.totalorder %s727, %s729
      %p736 = scmp.eq.s32.totalorder %s98, 3
      %p737 = por %p735, %p736
      %p738 = scmp.ne.s32.totalorder %s729, %s730
      %p739 = scmp.eq.s32.totalorder %s98, 0
      %p740 = por %p738, %p739
      %p741 = scmp.ne.s32.totalorder %s729, %s730
      %p742 = scmp.eq.s32.totalorder %s99, 3
      %p743 = por %p741, %p742
      %p745 = scmp.ne.s32.totalorder %s730, %s744
      %p746 = scmp.eq.s32.totalorder %s99, 0
      %p747 = por %p745, %p746
      %s749 = sadd.s32 %s748, 1
      %p752 = scmp.eq.s32.totalorder %s93, 3
      %p753 = scmp.ne.s32.totalorder %s748, %s750
      %p754 = scmp.eq.s32.totalorder %s93, 0
      %p755 = por %p753, %p754
      %p756 = scmp.ne.s32.totalorder %s748, %s750
      %p757 = scmp.eq.s32.totalorder %s98, 3
      %p758 = por %p756, %p757
      %p759 = scmp.ne.s32.totalorder %s750, %s751
      %p760 = scmp.eq.s32.totalorder %s98, 0
      %p761 = por %p759, %p760
      %p762 = scmp.ne.s32.totalorder %s750, %s751
      %p763 = scmp.eq.s32.totalorder %s99, 3
      %p764 = por %p762, %p763
      %p766 = scmp.ne.s32.totalorder %s751, %s765
      %p767 = scmp.eq.s32.totalorder %s99, 0
      %p768 = por %p766, %p767
      %s770 = sadd.s32 %s769, 1
      %p773 = scmp.eq.s32.totalorder %s93, 3
      %p774 = scmp.ne.s32.totalorder %s769, %s771
      %p775 = scmp.eq.s32.totalorder %s93, 0
      %p776 = por %p774, %p775
      %p777 = scmp.ne.s32.totalorder %s769, %s771
      %p778 = scmp.eq.s32.totalorder %s98, 3
      %p779 = por %p777, %p778
      %p780 = scmp.ne.s32.totalorder %s771, %s772
      %p781 = scmp.eq.s32.totalorder %s98, 0
      %p782 = por %p780, %p781
      %p783 = scmp.ne.s32.totalorder %s771, %s772
      %p784 = scmp.eq.s32.totalorder %s99, 3
      %p785 = por %p783, %p784
      %p787 = scmp.ne.s32.totalorder %s772, %s786
      %p788 = scmp.eq.s32.totalorder %s99, 0
      %p789 = por %p787, %p788
      %s790 = ssub.s32 %s100, %s112
      %p791 = scmp.eq.s32.totalorder %s790, 0
      %s793 = sadd.s32 %s792, 1
      %s794 = scalar_select %p791, %s792, %s793
      %p797 = pneg %p791
      %p798 = scmp.eq.s32.totalorder %s93, 3
      %p799 = por %p797, %p798
      %p800 = scmp.ne.s32.totalorder %s792, %s795
      %p801 = scmp.eq.s32.totalorder %s93, 0
      %p802 = por %p800, %p801
      %p803 = scmp.ne.s32.totalorder %s792, %s795
      %p804 = scmp.eq.s32.totalorder %s98, 3
      %p805 = por %p803, %p804
      %p806 = scmp.ne.s32.totalorder %s795, %s796
      %p807 = scmp.eq.s32.totalorder %s98, 0
      %p808 = por %p806, %p807
      %p809 = scmp.ne.s32.totalorder %s795, %s796
      %p810 = scmp.eq.s32.totalorder %s99, 3
      %p811 = por %p809, %p810
      %p813 = scmp.ne.s32.totalorder %s796, %s812
      %p814 = scmp.eq.s32.totalorder %s99, 0
      %p815 = por %p813, %p814
      %p816 = scmp.le.s32.totalorder 1, %s93
      %p817 = scmp.lt.s32.totalorder %s93, 5
      %p818 = pnand %p816, %p817
      %p819 = pneg %p818
      // Predicated region
      $region9: #{albert_forward.5} parent=5 // pred_check
        _
      $region10: #{albert_forward.5} parent=5 // pred_check_branch
        %821 = sbr.rel (%p818) target = $region12
      $region11: #{albert_forward.5} parent=5 // pred_region
        %s822 = ssub.s32 %s93, 1
        // Predicated region
        $region13: #{albert_forward.5} parent=11 // pred_check
          %p823 = pneg %p152
        $region14: #{albert_forward.5} parent=11 // pred_check_branch
          %825 = sbr.rel (%p823) target = $region16
        $region15: #{albert_forward.5} parent=11 // pred_region
          %s827 = ssub.s32 1024, 1024
          %828 = vsyncadd [#allocation8], %s827
          %s829 = sshll.u32 [#allocation7], 4
          %s830 = int_to_ptr.vmem [resolvable:$true] %s829
          %835 = dma.hbm_to_vmem [thread:$0]  %s3, 1024, %s830, [#allocation8], 64, 64, 4
        $region16: #{albert_forward.5} parent=11 // pred_fallthru
          _
        // Predicated region
        $region17: #{albert_forward.5} parent=11 // pred_check
          %p836 = pneg %p173
        $region18: #{albert_forward.5} parent=11 // pred_check_branch
          %838 = sbr.rel (%p836) target = $region20
        $region19: #{albert_forward.5} parent=11 // pred_region
          %s840 = ssub.s32 64, 64
          %841 = vsyncadd [#allocation8], %s840
          %s842 = sshll.u32 [#allocation9], 4
          %s843 = int_to_ptr.vmem [resolvable:$true] %s842
          %848 = dma.hbm_to_vmem [thread:$0]  %s5, 64, %s843, [#allocation8], 16, 16, 1
        $region20: #{albert_forward.5} parent=11 // pred_fallthru
          _
        // Predicated region
        $region21: #{albert_forward.5} parent=11 // pred_check
          %p849 = pneg %p194
        $region22: #{albert_forward.5} parent=11 // pred_check_branch
          %851 = sbr.rel (%p849) target = $region24
        $region23: #{albert_forward.5} parent=11 // pred_region
          %s853 = ssub.s32 1024, 1024
          %854 = vsyncadd [#allocation11], %s853
          %s855 = sshll.u32 [#allocation10], 4
          %s856 = int_to_ptr.vmem [resolvable:$true] %s855
          %861 = dma.hbm_to_vmem [thread:$0]  %s7, 1024, %s856, [#allocation11], 64, 64, 4
        $region24: #{albert_forward.5} parent=11 // pred_fallthru
          _
        // Predicated region
        $region25: #{albert_forward.5} parent=11 // pred_check
          %p862 = pneg %p215
        $region26: #{albert_forward.5} parent=11 // pred_check_branch
          %864 = sbr.rel (%p862) target = $region28
        $region27: #{albert_forward.5} parent=11 // pred_region
          %s866 = ssub.s32 64, 64
          %867 = vsyncadd [#allocation11], %s866
          %s868 = sshll.u32 [#allocation12], 4
          %s869 = int_to_ptr.vmem [resolvable:$true] %s868
          %874 = dma.hbm_to_vmem [thread:$0]  %s9, 64, %s869, [#allocation11], 16, 16, 1
        $region28: #{albert_forward.5} parent=11 // pred_fallthru
          _
        // Predicated region
        $region29: #{albert_forward.5} parent=11 // pred_check
          %p875 = pneg %p236
        $region30: #{albert_forward.5} parent=11 // pred_check_branch
          %877 = sbr.rel (%p875) target = $region32
        $region31: #{albert_forward.5} parent=11 // pred_region
          %s879 = ssub.s32 1024, 1024
          %880 = vsyncadd [#allocation14], %s879
          %s881 = sshll.u32 [#allocation13], 4
          %s882 = int_to_ptr.vmem [resolvable:$true] %s881
          %887 = dma.hbm_to_vmem [thread:$0]  %s11, 1024, %s882, [#allocation14], 64, 64, 4
        $region32: #{albert_forward.5} parent=11 // pred_fallthru
          _
        // Predicated region
        $region33: #{albert_forward.5} parent=11 // pred_check
          %p888 = pneg %p257
        $region34: #{albert_forward.5} parent=11 // pred_check_branch
          %890 = sbr.rel (%p888) target = $region36
        $region35: #{albert_forward.5} parent=11 // pred_region
          %s892 = ssub.s32 64, 64
          %893 = vsyncadd [#allocation14], %s892
          %s894 = sshll.u32 [#allocation15], 4
          %s895 = int_to_ptr.vmem [resolvable:$true] %s894
          %900 = dma.hbm_to_vmem [thread:$0]  %s13, 64, %s895, [#allocation14], 16, 16, 1
        $region36: #{albert_forward.5} parent=11 // pred_fallthru
          _
        // Predicated region
        $region37: #{albert_forward.5} parent=11 // pred_check
          %p901 = pneg %p278
        $region38: #{albert_forward.5} parent=11 // pred_check_branch
          %903 = sbr.rel (%p901) target = $region40
        $region39: #{albert_forward.5} parent=11 // pred_region
          %s905 = ssub.s32 256, 256
          %906 = vsyncadd [#allocation17], %s905
          %s907 = sshll.u32 [#allocation16], 4
          %s908 = int_to_ptr.vmem [resolvable:$true] %s907
          %913 = dma.hbm_to_vmem [thread:$0]  %s15, 256, %s908, [#allocation17], 64, 64, 4
        $region40: #{albert_forward.5} parent=11 // pred_fallthru
          _
        // Predicated region
        $region41: #{albert_forward.5} parent=11 // pred_check
          %p914 = pneg %p299
        $region42: #{albert_forward.5} parent=11 // pred_check_branch
          %916 = sbr.rel (%p914) target = $region44
        $region43: #{albert_forward.5} parent=11 // pred_region
          %s918 = ssub.s32 16, 16
          %919 = vsyncadd [#allocation17], %s918
          %s921 = sshll.u32 [#allocation18], 4
          %s922 = int_to_ptr.vmem [resolvable:$true] %s921
          %924 = dma.hbm_to_vmem [thread:$0]  %s17, 16, %s922, [#allocation17]
        $region44: #{albert_forward.5} parent=11 // pred_fallthru
          _
        // Predicated region
        $region45: #{albert_forward.5} parent=11 // pred_check
          %p925 = pneg %p320
        $region46: #{albert_forward.5} parent=11 // pred_check_branch
          %927 = sbr.rel (%p925) target = $region48
        $region47: #{albert_forward.5} parent=11 // pred_region
          %s929 = ssub.s32 16, 16
          %930 = vsyncadd [#allocation20], %s929
          %s932 = sshll.u32 [#allocation19], 4
          %s933 = int_to_ptr.vmem [resolvable:$true] %s932
          %935 = dma.hbm_to_vmem [thread:$0]  %s19, 16, %s933, [#allocation20]
        $region48: #{albert_forward.5} parent=11 // pred_fallthru
          _
        // Predicated region
        $region49: #{albert_forward.5} parent=11 // pred_check
          %p936 = pneg %p341
        $region50: #{albert_forward.5} parent=11 // pred_check_branch
          %938 = sbr.rel (%p936) target = $region52
        $region51: #{albert_forward.5} parent=11 // pred_region
          %s940 = ssub.s32 16, 16
          %941 = vsyncadd [#allocation20], %s940
          %s943 = sshll.u32 [#allocation21], 4
          %s944 = int_to_ptr.vmem [resolvable:$true] %s943
          %946 = dma.hbm_to_vmem [thread:$0]  %s21, 16, %s944, [#allocation20]
        $region52: #{albert_forward.5} parent=11 // pred_fallthru
          _
        // Predicated region
        $region53: #{albert_forward.5} parent=11 // pred_check
          %p947 = pneg %p362
        $region54: #{albert_forward.5} parent=11 // pred_check_branch
          %949 = sbr.rel (%p947) target = $region56
        $region55: #{albert_forward.5} parent=11 // pred_region
          %s951 = ssub.s32 256, 256
          %952 = vsyncadd [#allocation23], %s951
          %s953 = sshll.u32 [#allocation22], 4
          %s954 = int_to_ptr.vmem [resolvable:$true] %s953
          %959 = dma.hbm_to_vmem [thread:$0]  %s23, 256, %s954, [#allocation23], 64, 64, 4
        $region56: #{albert_forward.5} parent=11 // pred_fallthru
          _
        // Predicated region
        $region57: #{albert_forward.5} parent=11 // pred_check
          %p960 = pneg %p383
        $region58: #{albert_forward.5} parent=11 // pred_check_branch
          %962 = sbr.rel (%p960) target = $region60
        $region59: #{albert_forward.5} parent=11 // pred_region
          %s964 = ssub.s32 16, 16
          %965 = vsyncadd [#allocation23], %s964
          %s967 = sshll.u32 [#allocation24], 4
          %s968 = int_to_ptr.vmem [resolvable:$true] %s967
          %970 = dma.hbm_to_vmem [thread:$0]  %s25, 16, %s968, [#allocation23]
        $region60: #{albert_forward.5} parent=11 // pred_fallthru
          _
        // Predicated region
        $region61: #{albert_forward.5} parent=11 // pred_check
          %p971 = pneg %p404
        $region62: #{albert_forward.5} parent=11 // pred_check_branch
          %973 = sbr.rel (%p971) target = $region64
        $region63: #{albert_forward.5} parent=11 // pred_region
          %s975 = ssub.s32 16, 16
          %976 = vsyncadd [#allocation26], %s975
          %s978 = sshll.u32 [#allocation25], 4
          %s979 = int_to_ptr.vmem [resolvable:$true] %s978
          %981 = dma.hbm_to_vmem [thread:$0]  %s27, 16, %s979, [#allocation26]
        $region64: #{albert_forward.5} parent=11 // pred_fallthru
          _
        // Predicated region
        $region65: #{albert_forward.5} parent=11 // pred_check
          %p982 = pneg %p425
        $region66: #{albert_forward.5} parent=11 // pred_check_branch
          %984 = sbr.rel (%p982) target = $region68
        $region67: #{albert_forward.5} parent=11 // pred_region
          %s986 = ssub.s32 16, 16
          %987 = vsyncadd [#allocation26], %s986
          %s989 = sshll.u32 [#allocation27], 4
          %s990 = int_to_ptr.vmem [resolvable:$true] %s989
          %992 = dma.hbm_to_vmem [thread:$0]  %s29, 16, %s990, [#allocation26]
        $region68: #{albert_forward.5} parent=11 // pred_fallthru
          _
        // Predicated region
        $region69: #{albert_forward.5} parent=11 // pred_check
          %p993 = pneg %p446
        $region70: #{albert_forward.5} parent=11 // pred_check_branch
          %995 = sbr.rel (%p993) target = $region72
        $region71: #{albert_forward.5} parent=11 // pred_region
          %s997 = ssub.s32 1024, 1024
          %998 = vsyncadd [#allocation29], %s997
          %s999 = sshll.u32 [#allocation28], 4
          %s1000 = int_to_ptr.vmem [resolvable:$true] %s999
          %1005 = dma.hbm_to_vmem [thread:$0]  %s31, 1024, %s1000, [#allocation29], 64, 64, 4
        $region72: #{albert_forward.5} parent=11 // pred_fallthru
          _
        // Predicated region
        $region73: #{albert_forward.5} parent=11 // pred_check
          %p1006 = pneg %p467
        $region74: #{albert_forward.5} parent=11 // pred_check_branch
          %1008 = sbr.rel (%p1006) target = $region76
        $region75: #{albert_forward.5} parent=11 // pred_region
          %s1010 = ssub.s32 16, 16
          %1011 = vsyncadd [#allocation29], %s1010
          %s1013 = sshll.u32 [#allocation30], 4
          %s1014 = int_to_ptr.vmem [resolvable:$true] %s1013
          %1016 = dma.hbm_to_vmem [thread:$0]  %s33, 16, %s1014, [#allocation29]
        $region76: #{albert_forward.5} parent=11 // pred_fallthru
          _
        // Predicated region
        $region77: #{albert_forward.5} parent=11 // pred_check
          %p1017 = pneg %p488
        $region78: #{albert_forward.5} parent=11 // pred_check_branch
          %1019 = sbr.rel (%p1017) target = $region80
        $region79: #{albert_forward.5} parent=11 // pred_region
          %s1021 = ssub.s32 16, 16
          %1022 = vsyncadd [#allocation32], %s1021
          %s1024 = sshll.u32 [#allocation31], 4
          %s1025 = int_to_ptr.vmem [resolvable:$true] %s1024
          %1027 = dma.hbm_to_vmem [thread:$0]  %s35, 16, %s1025, [#allocation32]
        $region80: #{albert_forward.5} parent=11 // pred_fallthru
          _
        // Predicated region
        $region81: #{albert_forward.5} parent=11 // pred_check
          %p1028 = pneg %p509
        $region82: #{albert_forward.5} parent=11 // pred_check_branch
          %1030 = sbr.rel (%p1028) target = $region84
        $region83: #{albert_forward.5} parent=11 // pred_region
          %s1032 = ssub.s32 16, 16
          %1033 = vsyncadd [#allocation32], %s1032
          %s1035 = sshll.u32 [#allocation33], 4
          %s1036 = int_to_ptr.vmem [resolvable:$true] %s1035
          %1038 = dma.hbm_to_vmem [thread:$0]  %s37, 16, %s1036, [#allocation32]
        $region84: #{albert_forward.5} parent=11 // pred_fallthru
          _
        // Predicated region
        $region85: #{albert_forward.5} parent=11 // pred_check
          %p1039 = pneg %p530
        $region86: #{albert_forward.5} parent=11 // pred_check_branch
          %1041 = sbr.rel (%p1039) target = $region88
        $region87: #{albert_forward.5} parent=11 // pred_region
          %s1043 = ssub.s32 256, 256
          %1044 = vsyncadd [#allocation35], %s1043
          %s1045 = sshll.u32 [#allocation34], 4
          %s1046 = int_to_ptr.vmem [resolvable:$true] %s1045
          %1051 = dma.hbm_to_vmem [thread:$0]  %s39, 256, %s1046, [#allocation35], 64, 64, 4
        $region88: #{albert_forward.5} parent=11 // pred_fallthru
          _
        // Predicated region
        $region89: #{albert_forward.5} parent=11 // pred_check
          %p1052 = pneg %p551
        $region90: #{albert_forward.5} parent=11 // pred_check_branch
          %1054 = sbr.rel (%p1052) target = $region92
        $region91: #{albert_forward.5} parent=11 // pred_region
          %s1056 = ssub.s32 16, 16
          %1057 = vsyncadd [#allocation35], %s1056
          %s1059 = sshll.u32 [#allocation36], 4
          %s1060 = int_to_ptr.vmem [resolvable:$true] %s1059
          %1062 = dma.hbm_to_vmem [thread:$0]  %s41, 16, %s1060, [#allocation35]
        $region92: #{albert_forward.5} parent=11 // pred_fallthru
          _
        // Predicated region
        $region93: #{albert_forward.5} parent=11 // pred_check
          %p1063 = pneg %p572
        $region94: #{albert_forward.5} parent=11 // pred_check_branch
          %1065 = sbr.rel (%p1063) target = $region96
        $region95: #{albert_forward.5} parent=11 // pred_region
          %s1067 = ssub.s32 16, 16
          %1068 = vsyncadd [#allocation38], %s1067
          %s1070 = sshll.u32 [#allocation37], 4
          %s1071 = int_to_ptr.vmem [resolvable:$true] %s1070
          %1073 = dma.hbm_to_vmem [thread:$0]  %s43, 16, %s1071, [#allocation38]
        $region96: #{albert_forward.5} parent=11 // pred_fallthru
          _
        // Predicated region
        $region97: #{albert_forward.5} parent=11 // pred_check
          %p1074 = pneg %p593
        $region98: #{albert_forward.5} parent=11 // pred_check_branch
          %1076 = sbr.rel (%p1074) target = $region100
        $region99: #{albert_forward.5} parent=11 // pred_region
          %s1078 = ssub.s32 16, 16
          %1079 = vsyncadd [#allocation38], %s1078
          %s1081 = sshll.u32 [#allocation39], 4
          %s1082 = int_to_ptr.vmem [resolvable:$true] %s1081
          %1084 = dma.hbm_to_vmem [thread:$0]  %s45, 16, %s1082, [#allocation38]
        $region100: #{albert_forward.5} parent=11 // pred_fallthru
          _
        // Predicated region
        $region101: #{albert_forward.5} parent=11 // pred_check
          %p1085 = pneg %p614
        $region102: #{albert_forward.5} parent=11 // pred_check_branch
          %1087 = sbr.rel (%p1085) target = $region104
        $region103: #{albert_forward.5} parent=11 // pred_region
          %s1089 = ssub.s32 1024, 1024
          %1090 = vsyncadd [#allocation41], %s1089
          %s1091 = sshll.u32 [#allocation40], 4
          %s1092 = int_to_ptr.vmem [resolvable:$true] %s1091
          %1097 = dma.hbm_to_vmem [thread:$0]  %s47, 1024, %s1092, [#allocation41], 64, 64, 4
        $region104: #{albert_forward.5} parent=11 // pred_fallthru
          _
        // Predicated region
        $region105: #{albert_forward.5} parent=11 // pred_check
          %p1098 = pneg %p635
        $region106: #{albert_forward.5} parent=11 // pred_check_branch
          %1100 = sbr.rel (%p1098) target = $region108
        $region107: #{albert_forward.5} parent=11 // pred_region
          %s1102 = ssub.s32 16, 16
          %1103 = vsyncadd [#allocation41], %s1102
          %s1105 = sshll.u32 [#allocation42], 4
          %s1106 = int_to_ptr.vmem [resolvable:$true] %s1105
          %1108 = dma.hbm_to_vmem [thread:$0]  %s49, 16, %s1106, [#allocation41]
        $region108: #{albert_forward.5} parent=11 // pred_fallthru
          _
        // Predicated region
        $region109: #{albert_forward.5} parent=11 // pred_check
          %p1109 = pneg %p656
        $region110: #{albert_forward.5} parent=11 // pred_check_branch
          %1111 = sbr.rel (%p1109) target = $region112
        $region111: #{albert_forward.5} parent=11 // pred_region
          %s1113 = ssub.s32 16, 16
          %1114 = vsyncadd [#allocation44], %s1113
          %s1116 = sshll.u32 [#allocation43], 4
          %s1117 = int_to_ptr.vmem [resolvable:$true] %s1116
          %1119 = dma.hbm_to_vmem [thread:$0]  %s51, 16, %s1117, [#allocation44]
        $region112: #{albert_forward.5} parent=11 // pred_fallthru
          _
        // Predicated region
        $region113: #{albert_forward.5} parent=11 // pred_check
          %p1120 = pneg %p677
        $region114: #{albert_forward.5} parent=11 // pred_check_branch
          %1122 = sbr.rel (%p1120) target = $region116
        $region115: #{albert_forward.5} parent=11 // pred_region
          %s1124 = ssub.s32 16, 16
          %1125 = vsyncadd [#allocation44], %s1124
          %s1127 = sshll.u32 [#allocation45], 4
          %s1128 = int_to_ptr.vmem [resolvable:$true] %s1127
          %1130 = dma.hbm_to_vmem [thread:$0]  %s53, 16, %s1128, [#allocation44]
        $region116: #{albert_forward.5} parent=11 // pred_fallthru
          _
        // Predicated region
        $region117: #{albert_forward.5} parent=11 // pred_check
          %p1131 = pneg %p698
        $region118: #{albert_forward.5} parent=11 // pred_check_branch
          %1133 = sbr.rel (%p1131) target = $region120
        $region119: #{albert_forward.5} parent=11 // pred_region
          %s1135 = ssub.s32 256, 256
          %1136 = vsyncadd [#allocation47], %s1135
          %s1137 = sshll.u32 [#allocation46], 4
          %s1138 = int_to_ptr.vmem [resolvable:$true] %s1137
          %1143 = dma.hbm_to_vmem [thread:$0]  %s55, 256, %s1138, [#allocation47], 64, 64, 4
        $region120: #{albert_forward.5} parent=11 // pred_fallthru
          _
        // Predicated region
        $region121: #{albert_forward.5} parent=11 // pred_check
          %p1144 = pneg %p719
        $region122: #{albert_forward.5} parent=11 // pred_check_branch
          %1146 = sbr.rel (%p1144) target = $region124
        $region123: #{albert_forward.5} parent=11 // pred_region
          %s1148 = ssub.s32 16, 16
          %1149 = vsyncadd [#allocation47], %s1148
          %s1151 = sshll.u32 [#allocation48], 4
          %s1152 = int_to_ptr.vmem [resolvable:$true] %s1151
          %1154 = dma.hbm_to_vmem [thread:$0]  %s57, 16, %s1152, [#allocation47]
        $region124: #{albert_forward.5} parent=11 // pred_fallthru
          _
        // Predicated region
        $region125: #{albert_forward.5} parent=11 // pred_check
          %p1155 = pneg %p740
        $region126: #{albert_forward.5} parent=11 // pred_check_branch
          %1157 = sbr.rel (%p1155) target = $region128
        $region127: #{albert_forward.5} parent=11 // pred_region
          %s1159 = ssub.s32 16, 16
          %1160 = vsyncadd [#allocation50], %s1159
          %s1162 = sshll.u32 [#allocation49], 4
          %s1163 = int_to_ptr.vmem [resolvable:$true] %s1162
          %1165 = dma.hbm_to_vmem [thread:$0]  %s59, 16, %s1163, [#allocation50]
        $region128: #{albert_forward.5} parent=11 // pred_fallthru
          _
        // Predicated region
        $region129: #{albert_forward.5} parent=11 // pred_check
          %p1166 = pneg %p761
        $region130: #{albert_forward.5} parent=11 // pred_check_branch
          %1168 = sbr.rel (%p1166) target = $region132
        $region131: #{albert_forward.5} parent=11 // pred_region
          %s1170 = ssub.s32 16, 16
          %1171 = vsyncadd [#allocation50], %s1170
          %s1173 = sshll.u32 [#allocation51], 4
          %s1174 = int_to_ptr.vmem [resolvable:$true] %s1173
          %1176 = dma.hbm_to_vmem [thread:$0]  %s61, 16, %s1174, [#allocation50]
        $region132: #{albert_forward.5} parent=11 // pred_fallthru
          _
        // Predicated region
        $region133: #{albert_forward.5} parent=11 // pred_check
          %p1177 = pneg %p782
        $region134: #{albert_forward.5} parent=11 // pred_check_branch
          %1179 = sbr.rel (%p1177) target = $region136
        $region135: #{albert_forward.5} parent=11 // pred_region
          %s1181 = ssub.s32 16, 16
          %1182 = vsyncadd [#allocation6], %s1181
          %1185 = dma.hbm_to_smem %s63, 16, [#allocation52], [#allocation6]
        $region136: #{albert_forward.5} parent=11 // pred_fallthru
          _
      $region12: #{albert_forward.5} parent=5 // pred_fallthru
        _
      %p1186 = scmp.lt.s32.totalorder %s93, 4
      // Predicated region
      $region137: #{albert_forward.5} parent=5 // pred_check
        %p1187 = pneg %p1186
      $region138: #{albert_forward.5} parent=5 // pred_check_branch
        %1189 = sbr.rel (%p1187) target = $region140
      $region139: #{albert_forward.5} parent=5 // pred_region
        // Predicated region
        $region141: #{albert_forward.5} parent=139 // pred_check
          %p1190 = pneg %p125
        $region142: #{albert_forward.5} parent=139 // pred_check_branch
          %1192 = sbr.rel (%p1190) target = $region144
        $region143: #{albert_forward.5} parent=139 // pred_region
          %s1193 = sand.u32 %s115, 1
          %s1194 = scalar_lea.sflag [#allocation4], %s1193
          %s1195 = sand.u32 %s115, 1
          %s1196 = smul.addr %s1195, 8
          %s1197 = scalar_lea.vmem [#allocation3], %s1196
          %s1199 = ssub.s32 128, 128
          %1200 = vsyncadd %s1194, %s1199
          %s1201 = smul.addr %s100, 128
          %s1202 = scalar_lea.hbm %s1, %s1201
          %s1204 = sshll.u32 %s1197, 4
          %s1205 = int_to_ptr.vmem [resolvable:$true] %s1204
          %1207 = dma.hbm_to_vmem [thread:$0]  %s1202, 128, %s1205, %s1194
        $region144: #{albert_forward.5} parent=139 // pred_fallthru
          _
      $region140: #{albert_forward.5} parent=5 // pred_fallthru
        _
      %p1208 = scmp.le.s32.totalorder 1, %s93
      %p1209 = scmp.lt.s32.totalorder %s93, 5
      %p1210 = pnand %p1208, %p1209
      %p1211 = pneg %p1210
      // Predicated region
      $region145: #{albert_forward.5} parent=5 // pred_check
        _
      $region146: #{albert_forward.5} parent=5 // pred_check_branch
        %1213 = sbr.rel (%p1210) target = $region148
      $region147: #{albert_forward.5} parent=5 // pred_region
        %s1214 = ssub.s32 %s93, 1
        %s1215 = sand.u32 %s118, 1
        %s1216 = scalar_lea.sflag [#allocation4], %s1215
        %s1217 = sand.u32 %s118, 1
        %s1218 = smul.addr %s1217, 8
        %s1219 = scalar_lea.vmem [#allocation3], %s1218
        // Predicated region
        $region149: #{albert_forward.5} parent=147 // pred_check
          %p1220 = pneg %p131
        $region150: #{albert_forward.5} parent=147 // pred_check_branch
          %1222 = sbr.rel (%p1220) target = $region152
        $region151: #{albert_forward.5} parent=147 // pred_region
          %1223 = dma.done %s1216, 128
        $region152: #{albert_forward.5} parent=147 // pred_fallthru
          _
        // Predicated region
        $region153: #{albert_forward.5} parent=147 // pred_check
          %p1224 = pneg %p152
        $region154: #{albert_forward.5} parent=147 // pred_check_branch
          %1226 = sbr.rel (%p1224) target = $region156
        $region155: #{albert_forward.5} parent=147 // pred_region
          %1227 = dma.done [#allocation8], 1024
        $region156: #{albert_forward.5} parent=147 // pred_fallthru
          _
        // Predicated region
        $region157: #{albert_forward.5} parent=147 // pred_check
          %p1228 = pneg %p173
        $region158: #{albert_forward.5} parent=147 // pred_check_branch
          %1230 = sbr.rel (%p1228) target = $region160
        $region159: #{albert_forward.5} parent=147 // pred_region
          %1231 = dma.done [#allocation8], 64
        $region160: #{albert_forward.5} parent=147 // pred_fallthru
          _
        // Predicated region
        $region161: #{albert_forward.5} parent=147 // pred_check
          %p1232 = pneg %p194
        $region162: #{albert_forward.5} parent=147 // pred_check_branch
          %1234 = sbr.rel (%p1232) target = $region164
        $region163: #{albert_forward.5} parent=147 // pred_region
          %1235 = dma.done [#allocation11], 1024
        $region164: #{albert_forward.5} parent=147 // pred_fallthru
          _
        // Predicated region
        $region165: #{albert_forward.5} parent=147 // pred_check
          %p1236 = pneg %p215
        $region166: #{albert_forward.5} parent=147 // pred_check_branch
          %1238 = sbr.rel (%p1236) target = $region168
        $region167: #{albert_forward.5} parent=147 // pred_region
          %1239 = dma.done [#allocation11], 64
        $region168: #{albert_forward.5} parent=147 // pred_fallthru
          _
        // Predicated region
        $region169: #{albert_forward.5} parent=147 // pred_check
          %p1240 = pneg %p236
        $region170: #{albert_forward.5} parent=147 // pred_check_branch
          %1242 = sbr.rel (%p1240) target = $region172
        $region171: #{albert_forward.5} parent=147 // pred_region
          %1243 = dma.done [#allocation14], 1024
        $region172: #{albert_forward.5} parent=147 // pred_fallthru
          _
        // Predicated region
        $region173: #{albert_forward.5} parent=147 // pred_check
          %p1244 = pneg %p257
        $region174: #{albert_forward.5} parent=147 // pred_check_branch
          %1246 = sbr.rel (%p1244) target = $region176
        $region175: #{albert_forward.5} parent=147 // pred_region
          %1247 = dma.done [#allocation14], 64
        $region176: #{albert_forward.5} parent=147 // pred_fallthru
          _
        // Predicated region
        $region177: #{albert_forward.5} parent=147 // pred_check
          %p1248 = pneg %p278
        $region178: #{albert_forward.5} parent=147 // pred_check_branch
          %1250 = sbr.rel (%p1248) target = $region180
        $region179: #{albert_forward.5} parent=147 // pred_region
          %1251 = dma.done [#allocation17], 256
        $region180: #{albert_forward.5} parent=147 // pred_fallthru
          _
        // Predicated region
        $region181: #{albert_forward.5} parent=147 // pred_check
          %p1252 = pneg %p299
        $region182: #{albert_forward.5} parent=147 // pred_check_branch
          %1254 = sbr.rel (%p1252) target = $region184
        $region183: #{albert_forward.5} parent=147 // pred_region
          %1255 = dma.done [#allocation17], 16
        $region184: #{albert_forward.5} parent=147 // pred_fallthru
          _
        // Predicated region
        $region185: #{albert_forward.5} parent=147 // pred_check
          %p1256 = pneg %p320
        $region186: #{albert_forward.5} parent=147 // pred_check_branch
          %1258 = sbr.rel (%p1256) target = $region188
        $region187: #{albert_forward.5} parent=147 // pred_region
          %1259 = dma.done [#allocation20], 16
        $region188: #{albert_forward.5} parent=147 // pred_fallthru
          _
        // Predicated region
        $region189: #{albert_forward.5} parent=147 // pred_check
          %p1260 = pneg %p341
        $region190: #{albert_forward.5} parent=147 // pred_check_branch
          %1262 = sbr.rel (%p1260) target = $region192
        $region191: #{albert_forward.5} parent=147 // pred_region
          %1263 = dma.done [#allocation20], 16
        $region192: #{albert_forward.5} parent=147 // pred_fallthru
          _
        // Predicated region
        $region193: #{albert_forward.5} parent=147 // pred_check
          %p1264 = pneg %p362
        $region194: #{albert_forward.5} parent=147 // pred_check_branch
          %1266 = sbr.rel (%p1264) target = $region196
        $region195: #{albert_forward.5} parent=147 // pred_region
          %1267 = dma.done [#allocation23], 256
        $region196: #{albert_forward.5} parent=147 // pred_fallthru
          _
        // Predicated region
        $region197: #{albert_forward.5} parent=147 // pred_check
          %p1268 = pneg %p383
        $region198: #{albert_forward.5} parent=147 // pred_check_branch
          %1270 = sbr.rel (%p1268) target = $region200
        $region199: #{albert_forward.5} parent=147 // pred_region
          %1271 = dma.done [#allocation23], 16
        $region200: #{albert_forward.5} parent=147 // pred_fallthru
          _
        // Predicated region
        $region201: #{albert_forward.5} parent=147 // pred_check
          %p1272 = pneg %p404
        $region202: #{albert_forward.5} parent=147 // pred_check_branch
          %1274 = sbr.rel (%p1272) target = $region204
        $region203: #{albert_forward.5} parent=147 // pred_region
          %1275 = dma.done [#allocation26], 16
        $region204: #{albert_forward.5} parent=147 // pred_fallthru
          _
        // Predicated region
        $region205: #{albert_forward.5} parent=147 // pred_check
          %p1276 = pneg %p425
        $region206: #{albert_forward.5} parent=147 // pred_check_branch
          %1278 = sbr.rel (%p1276) target = $region208
        $region207: #{albert_forward.5} parent=147 // pred_region
          %1279 = dma.done [#allocation26], 16
        $region208: #{albert_forward.5} parent=147 // pred_fallthru
          _
        // Predicated region
        $region209: #{albert_forward.5} parent=147 // pred_check
          %p1280 = pneg %p446
        $region210: #{albert_forward.5} parent=147 // pred_check_branch
          %1282 = sbr.rel (%p1280) target = $region212
        $region211: #{albert_forward.5} parent=147 // pred_region
          %1283 = dma.done [#allocation29], 1024
        $region212: #{albert_forward.5} parent=147 // pred_fallthru
          _
        // Predicated region
        $region213: #{albert_forward.5} parent=147 // pred_check
          %p1284 = pneg %p467
        $region214: #{albert_forward.5} parent=147 // pred_check_branch
          %1286 = sbr.rel (%p1284) target = $region216
        $region215: #{albert_forward.5} parent=147 // pred_region
          %1287 = dma.done [#allocation29], 16
        $region216: #{albert_forward.5} parent=147 // pred_fallthru
          _
        // Predicated region
        $region217: #{albert_forward.5} parent=147 // pred_check
          %p1288 = pneg %p488
        $region218: #{albert_forward.5} parent=147 // pred_check_branch
          %1290 = sbr.rel (%p1288) target = $region220
        $region219: #{albert_forward.5} parent=147 // pred_region
          %1291 = dma.done [#allocation32], 16
        $region220: #{albert_forward.5} parent=147 // pred_fallthru
          _
        // Predicated region
        $region221: #{albert_forward.5} parent=147 // pred_check
          %p1292 = pneg %p509
        $region222: #{albert_forward.5} parent=147 // pred_check_branch
          %1294 = sbr.rel (%p1292) target = $region224
        $region223: #{albert_forward.5} parent=147 // pred_region
          %1295 = dma.done [#allocation32], 16
        $region224: #{albert_forward.5} parent=147 // pred_fallthru
          _
        // Predicated region
        $region225: #{albert_forward.5} parent=147 // pred_check
          %p1296 = pneg %p530
        $region226: #{albert_forward.5} parent=147 // pred_check_branch
          %1298 = sbr.rel (%p1296) target = $region228
        $region227: #{albert_forward.5} parent=147 // pred_region
          %1299 = dma.done [#allocation35], 256
        $region228: #{albert_forward.5} parent=147 // pred_fallthru
          _
        // Predicated region
        $region229: #{albert_forward.5} parent=147 // pred_check
          %p1300 = pneg %p551
        $region230: #{albert_forward.5} parent=147 // pred_check_branch
          %1302 = sbr.rel (%p1300) target = $region232
        $region231: #{albert_forward.5} parent=147 // pred_region
          %1303 = dma.done [#allocation35], 16
        $region232: #{albert_forward.5} parent=147 // pred_fallthru
          _
        // Predicated region
        $region233: #{albert_forward.5} parent=147 // pred_check
          %p1304 = pneg %p572
        $region234: #{albert_forward.5} parent=147 // pred_check_branch
          %1306 = sbr.rel (%p1304) target = $region236
        $region235: #{albert_forward.5} parent=147 // pred_region
          %1307 = dma.done [#allocation38], 16
        $region236: #{albert_forward.5} parent=147 // pred_fallthru
          _
        // Predicated region
        $region237: #{albert_forward.5} parent=147 // pred_check
          %p1308 = pneg %p593
        $region238: #{albert_forward.5} parent=147 // pred_check_branch
          %1310 = sbr.rel (%p1308) target = $region240
        $region239: #{albert_forward.5} parent=147 // pred_region
          %1311 = dma.done [#allocation38], 16
        $region240: #{albert_forward.5} parent=147 // pred_fallthru
          _
        // Predicated region
        $region241: #{albert_forward.5} parent=147 // pred_check
          %p1312 = pneg %p614
        $region242: #{albert_forward.5} parent=147 // pred_check_branch
          %1314 = sbr.rel (%p1312) target = $region244
        $region243: #{albert_forward.5} parent=147 // pred_region
          %1315 = dma.done [#allocation41], 1024
        $region244: #{albert_forward.5} parent=147 // pred_fallthru
          _
        // Predicated region
        $region245: #{albert_forward.5} parent=147 // pred_check
          %p1316 = pneg %p635
        $region246: #{albert_forward.5} parent=147 // pred_check_branch
          %1318 = sbr.rel (%p1316) target = $region248
        $region247: #{albert_forward.5} parent=147 // pred_region
          %1319 = dma.done [#allocation41], 16
        $region248: #{albert_forward.5} parent=147 // pred_fallthru
          _
        // Predicated region
        $region249: #{albert_forward.5} parent=147 // pred_check
          %p1320 = pneg %p656
        $region250: #{albert_forward.5} parent=147 // pred_check_branch
          %1322 = sbr.rel (%p1320) target = $region252
        $region251: #{albert_forward.5} parent=147 // pred_region
          %1323 = dma.done [#allocation44], 16
        $region252: #{albert_forward.5} parent=147 // pred_fallthru
          _
        // Predicated region
        $region253: #{albert_forward.5} parent=147 // pred_check
          %p1324 = pneg %p677
        $region254: #{albert_forward.5} parent=147 // pred_check_branch
          %1326 = sbr.rel (%p1324) target = $region256
        $region255: #{albert_forward.5} parent=147 // pred_region
          %1327 = dma.done [#allocation44], 16
        $region256: #{albert_forward.5} parent=147 // pred_fallthru
          _
        // Predicated region
        $region257: #{albert_forward.5} parent=147 // pred_check
          %p1328 = pneg %p698
        $region258: #{albert_forward.5} parent=147 // pred_check_branch
          %1330 = sbr.rel (%p1328) target = $region260
        $region259: #{albert_forward.5} parent=147 // pred_region
          %1331 = dma.done [#allocation47], 256
        $region260: #{albert_forward.5} parent=147 // pred_fallthru
          _
        // Predicated region
        $region261: #{albert_forward.5} parent=147 // pred_check
          %p1332 = pneg %p719
        $region262: #{albert_forward.5} parent=147 // pred_check_branch
          %1334 = sbr.rel (%p1332) target = $region264
        $region263: #{albert_forward.5} parent=147 // pred_region
          %1335 = dma.done [#allocation47], 16
        $region264: #{albert_forward.5} parent=147 // pred_fallthru
          _
        // Predicated region
        $region265: #{albert_forward.5} parent=147 // pred_check
          %p1336 = pneg %p740
        $region266: #{albert_forward.5} parent=147 // pred_check_branch
          %1338 = sbr.rel (%p1336) target = $region268
        $region267: #{albert_forward.5} parent=147 // pred_region
          %1339 = dma.done [#allocation50], 16
        $region268: #{albert_forward.5} parent=147 // pred_fallthru
          _
        // Predicated region
        $region269: #{albert_forward.5} parent=147 // pred_check
          %p1340 = pneg %p761
        $region270: #{albert_forward.5} parent=147 // pred_check_branch
          %1342 = sbr.rel (%p1340) target = $region272
        $region271: #{albert_forward.5} parent=147 // pred_region
          %1343 = dma.done [#allocation50], 16
        $region272: #{albert_forward.5} parent=147 // pred_fallthru
          _
        // Predicated region
        $region273: #{albert_forward.5} parent=147 // pred_check
          %p1344 = pneg %p782
        $region274: #{albert_forward.5} parent=147 // pred_check_branch
          %1346 = sbr.rel (%p1344) target = $region276
        $region275: #{albert_forward.5} parent=147 // pred_region
          %1347 = dma.done [#allocation6], 16
        $region276: #{albert_forward.5} parent=147 // pred_fallthru
          _
        %1348 = sfence
        %s1349 = sand.u32 %s118, 1
        %s1350 = scalar_lea.sflag [#allocation4], %s1349
        %s1351 = sand.u32 %s118, 1
        %s1352 = smul.addr %s1351, 8
        %s1353 = scalar_lea.vmem [#allocation3], %s1352
        %p1354 = pneg %p131
        %p1355 = pneg %p128
        %p1356 = pneg %p152
        %p1357 = pneg %p149
        %p1358 = pneg %p173
        %p1359 = pneg %p170
        %p1360 = pneg %p194
        %p1361 = pneg %p191
        %p1362 = pneg %p215
        %p1363 = pneg %p212
        %p1364 = pneg %p236
        %p1365 = pneg %p233
        %p1366 = pneg %p257
        %p1367 = pneg %p254
        %p1368 = pneg %p278
        %p1369 = pneg %p275
        %p1370 = pneg %p299
        %p1371 = pneg %p296
        %p1372 = pneg %p320
        %p1373 = pneg %p317
        %p1374 = pneg %p341
        %p1375 = pneg %p338
        %p1376 = pneg %p362
        %p1377 = pneg %p359
        %p1378 = pneg %p383
        %p1379 = pneg %p380
        %p1380 = pneg %p404
        %p1381 = pneg %p401
        %p1382 = pneg %p425
        %p1383 = pneg %p422
        %p1384 = pneg %p446
        %p1385 = pneg %p443
        %p1386 = pneg %p467
        %p1387 = pneg %p464
        %p1388 = pneg %p488
        %p1389 = pneg %p485
        %p1390 = pneg %p509
        %p1391 = pneg %p506
        %p1392 = pneg %p530
        %p1393 = pneg %p527
        %p1394 = pneg %p551
        %p1395 = pneg %p548
        %p1396 = pneg %p572
        %p1397 = pneg %p569
        %p1398 = pneg %p593
        %p1399 = pneg %p590
        %p1400 = pneg %p614
        %p1401 = pneg %p611
        %p1402 = pneg %p635
        %p1403 = pneg %p632
        %p1404 = pneg %p656
        %p1405 = pneg %p653
        %p1406 = pneg %p677
        %p1407 = pneg %p674
        %p1408 = pneg %p698
        %p1409 = pneg %p695
        %p1410 = pneg %p719
        %p1411 = pneg %p716
        %p1412 = pneg %p740
        %p1413 = pneg %p737
        %p1414 = pneg %p761
        %p1415 = pneg %p758
        %p1416 = pneg %p782
        %p1417 = pneg %p779
        %p1418 = pneg %p808
        %p1419 = pneg %p805
        %s1420 = sand.u32 %s795, 1
        %s1421 = scalar_lea.sflag [#allocation5], %s1420
        %s1422 = sand.u32 %s795, 1
        %s1423 = smul.addr %s1422, 8
        %s1424 = scalar_lea.vmem [#allocation53], %s1423
        %p1426 = scmp.eq.s32.totalorder %s103, 0
        // Predicated region
        $region277: #{albert_forward.5} parent=147 // pred_check
          %p1427 = pneg %p1426
        $region278: #{albert_forward.5} parent=147 // pred_check_branch
          %1429 = sbr.rel (%p1427) target = $region280
        $region279: #{albert_forward.5} parent=147 // pred_region
          %v1430 = vld [vmem:[%s1219] sm:$0xff]
          %vm1431 = vcmask 261120
          %1432 = vst.msk [vmem:[#allocation2] sm:$0xff] %vm1431, %v1430
        $region280: #{albert_forward.5} parent=147 // pred_fallthru
          _
        %v1433 = vld [vmem:[#allocation2] sm:$0xff]
        %v1434 = vpack.c.bf16 %v1433, %v1433
        %v1435 = vld [vmem:[#allocation7] sm:$0xf]
        %v1436 = vld [vmem:[#allocation7 + $0x4] sm:$0xf]
        %v1437 = vld [vmem:[#allocation7 + $0x8] sm:$0xf]
        %v1438 = vld [vmem:[#allocation7 + $0xc] sm:$0xf]
        %v1439 = vld [vmem:[#allocation7 + $0x10] sm:$0xf]
        %v1440 = vld [vmem:[#allocation7 + $0x14] sm:$0xf]
        %v1441 = vld [vmem:[#allocation7 + $0x18] sm:$0xf]
        %v1442 = vld [vmem:[#allocation7 + $0x1c] sm:$0xf]
        %v1443 = vld [vmem:[#allocation7 + $0x20] sm:$0xf]
        %v1444 = vld [vmem:[#allocation7 + $0x24] sm:$0xf]
        %v1445 = vld [vmem:[#allocation7 + $0x28] sm:$0xf]
        %v1446 = vld [vmem:[#allocation7 + $0x2c] sm:$0xf]
        %v1447 = vld [vmem:[#allocation7 + $0x30] sm:$0xf]
        %v1448 = vld [vmem:[#allocation7 + $0x34] sm:$0xf]
        %v1449 = vld [vmem:[#allocation7 + $0x38] sm:$0xf]
        %v1450 = vld [vmem:[#allocation7 + $0x3c] sm:$0xf]
        %v1451 = vld [vmem:[#allocation9] sm:$0x1]
        %v1452 = vld [vmem:[#allocation9 + $0x1] sm:$0x1]
        %v1453 = vld [vmem:[#allocation9 + $0x2] sm:$0x1]
        %v1454 = vld [vmem:[#allocation9 + $0x3] sm:$0x1]
        %v1459 = vlaneseq
        %v1460 = vshrl.u32 %v1459, 7
        %v1461 = vsub.s32 0, %v1460
        %v1462 = vrot.slane %v1451, %v1461
        %v1463 = vlaneseq
        %v1464 = vshrl.u32 %v1463, 7
        %v1465 = vsub.s32 0, %v1464
        %v1466 = vrot.slane %v1452, %v1465
        %v1467 = vlaneseq
        %v1468 = vshrl.u32 %v1467, 7
        %v1469 = vsub.s32 0, %v1468
        %v1470 = vrot.slane %v1453, %v1469
        %v1471 = vlaneseq
        %v1472 = vshrl.u32 %v1471, 7
        %v1473 = vsub.s32 0, %v1472
        %v1474 = vrot.slane %v1454, %v1473
        %v1483 = vunpack.c.l.b16 %v1435
        %v1484 = vunpack.c.l.b16 %v1436
        %v1485 = vunpack.c.l.b16 %v1437
        %v1486 = vunpack.c.l.b16 %v1438
        %v1487 = vpack.c.b16 %v1484, %v1483
        %v1488 = vpack.c.b16 %v1486, %v1485
        %vm1491 = vcmask 261120
        %v1493 = vsel %vm1491, %v1434, 0
        %1495 = vmatprep.subr.bf16.mxu0 0
        %1496 = vmatpush1.bf16.msra.mxu0 %v1487
        %1497 = vmatprep.subr.bf16.mxu0 0
        %1498 = vmatpush1.bf16.msra.mxu0 %v1488
        %1499 = vmatprep.subr.bf16.mxu0 0
        %1500 = vmatpush1.bf16.msra.mxu0 0
        %1501 = vmatprep.subr.bf16.mxu0 0
        %1502 = vmatpush1.bf16.msra.mxu0 0
        %1503 = vmatprep.subr.bf16.mxu0 0
        %1504 = vmatpush1.bf16.msra.mxu0 0
        %1505 = vmatprep.subr.bf16.mxu0 0
        %1506 = vmatpush1.bf16.msra.mxu0 0
        %1507 = vmatprep.subr.bf16.mxu0 0
        %1508 = vmatpush1.bf16.msra.mxu0 0
        %1509 = vmatprep.subr.bf16.mxu0 0
        %1510 = vmatpush1.bf16.msra.mxu0 0
        %1511 = vmatprep.subr.bf16.mxu0 0
        %1512 = vmatpush1.bf16.msra.mxu0 0
        %1513 = vmatprep.subr.bf16.mxu0 0
        %1514 = vmatpush1.bf16.msra.mxu0 0
        %1515 = vmatprep.subr.bf16.mxu0 0
        %1516 = vmatpush1.bf16.msra.mxu0 0
        %1517 = vmatprep.subr.bf16.mxu0 0
        %1518 = vmatpush1.bf16.msra.mxu0 0
        %1519 = vmatprep.subr.bf16.mxu0 0
        %1520 = vmatpush1.bf16.msra.mxu0 0
        %1521 = vmatprep.subr.bf16.mxu0 0
        %1522 = vmatpush1.bf16.msra.mxu0 0
        %1523 = vmatprep.subr.bf16.mxu0 0
        %1524 = vmatpush1.bf16.msra.mxu0 0
        %1525 = vmatprep.subr.bf16.mxu0 0
        %1526 = vmatpush1.bf16.msra.mxu0 0
        %1527 = vmatprep.mubr.bf16.mxu0 0
        %1528 = vmatmul.mubr.bf16.gmra.mrb[0].mxu0 %v1493
        %v1529 = vpop.f32.mrb[0].mxu0
        %v1530 = vadd.f32 %v1462, %v1529
        %v1531 = vpop.f32.mrb[0].mxu0
        %v1532 = vpop.f32.mrb[0].mxu0
        %v1533 = vpop.f32.mrb[0].mxu0
        %1534 = vdwg.mxu0
        %v1539 = vunpack.c.l.b16 %v1439
        %v1540 = vunpack.c.l.b16 %v1440
        %v1541 = vunpack.c.l.b16 %v1441
        %v1542 = vunpack.c.l.b16 %v1442
        %v1543 = vpack.c.b16 %v1540, %v1539
        %v1544 = vpack.c.b16 %v1542, %v1541
        %1547 = vmatprep.subr.bf16.mxu0 0
        %1548 = vmatpush1.bf16.msra.mxu0 %v1543
        %1549 = vmatprep.subr.bf16.mxu0 0
        %1550 = vmatpush1.bf16.msra.mxu0 %v1544
        %1551 = vmatprep.subr.bf16.mxu0 0
        %1552 = vmatpush1.bf16.msra.mxu0 0
        %1553 = vmatprep.subr.bf16.mxu0 0
        %1554 = vmatpush1.bf16.msra.mxu0 0
        %1555 = vmatprep.subr.bf16.mxu0 0
        %1556 = vmatpush1.bf16.msra.mxu0 0
        %1557 = vmatprep.subr.bf16.mxu0 0
        %1558 = vmatpush1.bf16.msra.mxu0 0
        %1559 = vmatprep.subr.bf16.mxu0 0
        %1560 = vmatpush1.bf16.msra.mxu0 0
        %1561 = vmatprep.subr.bf16.mxu0 0
        %1562 = vmatpush1.bf16.msra.mxu0 0
        %1563 = vmatprep.subr.bf16.mxu0 0
        %1564 = vmatpush1.bf16.msra.mxu0 0
        %1565 = vmatprep.subr.bf16.mxu0 0
        %1566 = vmatpush1.bf16.msra.mxu0 0
        %1567 = vmatprep.subr.bf16.mxu0 0
        %1568 = vmatpush1.bf16.msra.mxu0 0
        %1569 = vmatprep.subr.bf16.mxu0 0
        %1570 = vmatpush1.bf16.msra.mxu0 0
        %1571 = vmatprep.subr.bf16.mxu0 0
        %1572 = vmatpush1.bf16.msra.mxu0 0
        %1573 = vmatprep.subr.bf16.mxu0 0
        %1574 = vmatpush1.bf16.msra.mxu0 0
        %1575 = vmatprep.subr.bf16.mxu0 0
        %1576 = vmatpush1.bf16.msra.mxu0 0
        %1577 = vmatprep.subr.bf16.mxu0 0
        %1578 = vmatpush1.bf16.msra.mxu0 0
        %1579 = vmatprep.mubr.bf16.mxu0 0
        %1580 = vmatmul.mubr.bf16.gmra.mrb[0].mxu0 %v1493
        %v1581 = vpop.f32.mrb[0].mxu0
        %v1582 = vadd.f32 %v1466, %v1581
        %v1583 = vpop.f32.mrb[0].mxu0
        %v1584 = vpop.f32.mrb[0].mxu0
        %v1585 = vpop.f32.mrb[0].mxu0
        %1586 = vdwg.mxu0
        %v1591 = vunpack.c.l.b16 %v1443
        %v1592 = vunpack.c.l.b16 %v1444
        %v1593 = vunpack.c.l.b16 %v1445
        %v1594 = vunpack.c.l.b16 %v1446
        %v1595 = vpack.c.b16 %v1592, %v1591
        %v1596 = vpack.c.b16 %v1594, %v1593
        %1599 = vmatprep.subr.bf16.mxu0 0
        %1600 = vmatpush1.bf16.msra.mxu0 %v1595
        %1601 = vmatprep.subr.bf16.mxu0 0
        %1602 = vmatpush1.bf16.msra.mxu0 %v1596
        %1603 = vmatprep.subr.bf16.mxu0 0
        %1604 = vmatpush1.bf16.msra.mxu0 0
        %1605 = vmatprep.subr.bf16.mxu0 0
        %1606 = vmatpush1.bf16.msra.mxu0 0
        %1607 = vmatprep.subr.bf16.mxu0 0
        %1608 = vmatpush1.bf16.msra.mxu0 0
        %1609 = vmatprep.subr.bf16.mxu0 0
        %1610 = vmatpush1.bf16.msra.mxu0 0
        %1611 = vmatprep.subr.bf16.mxu0 0
        %1612 = vmatpush1.bf16.msra.mxu0 0
        %1613 = vmatprep.subr.bf16.mxu0 0
        %1614 = vmatpush1.bf16.msra.mxu0 0
        %1615 = vmatprep.subr.bf16.mxu0 0
        %1616 = vmatpush1.bf16.msra.mxu0 0
        %1617 = vmatprep.subr.bf16.mxu0 0
        %1618 = vmatpush1.bf16.msra.mxu0 0
        %1619 = vmatprep.subr.bf16.mxu0 0
        %1620 = vmatpush1.bf16.msra.mxu0 0
        %1621 = vmatprep.subr.bf16.mxu0 0
        %1622 = vmatpush1.bf16.msra.mxu0 0
        %1623 = vmatprep.subr.bf16.mxu0 0
        %1624 = vmatpush1.bf16.msra.mxu0 0
        %1625 = vmatprep.subr.bf16.mxu0 0
        %1626 = vmatpush1.bf16.msra.mxu0 0
        %1627 = vmatprep.subr.bf16.mxu0 0
        %1628 = vmatpush1.bf16.msra.mxu0 0
        %1629 = vmatprep.subr.bf16.mxu0 0
        %1630 = vmatpush1.bf16.msra.mxu0 0
        %1631 = vmatprep.mubr.bf16.mxu0 0
        %1632 = vmatmul.mubr.bf16.gmra.mrb[0].mxu0 %v1493
        %v1633 = vpop.f32.mrb[0].mxu0
        %v1634 = vadd.f32 %v1470, %v1633
        %v1635 = vpop.f32.mrb[0].mxu0
        %v1636 = vpop.f32.mrb[0].mxu0
        %v1637 = vpop.f32.mrb[0].mxu0
        %1638 = vdwg.mxu0
        %v1643 = vunpack.c.l.b16 %v1447
        %v1644 = vunpack.c.l.b16 %v1448
        %v1645 = vunpack.c.l.b16 %v1449
        %v1646 = vunpack.c.l.b16 %v1450
        %v1647 = vpack.c.b16 %v1644, %v1643
        %v1648 = vpack.c.b16 %v1646, %v1645
        %1651 = vmatprep.subr.bf16.mxu0 0
        %1652 = vmatpush1.bf16.msra.mxu0 %v1647
        %1653 = vmatprep.subr.bf16.mxu0 0
        %1654 = vmatpush1.bf16.msra.mxu0 %v1648
        %1655 = vmatprep.subr.bf16.mxu0 0
        %1656 = vmatpush1.bf16.msra.mxu0 0
        %1657 = vmatprep.subr.bf16.mxu0 0
        %1658 = vmatpush1.bf16.msra.mxu0 0
        %1659 = vmatprep.subr.bf16.mxu0 0
        %1660 = vmatpush1.bf16.msra.mxu0 0
        %1661 = vmatprep.subr.bf16.mxu0 0
        %1662 = vmatpush1.bf16.msra.mxu0 0
        %1663 = vmatprep.subr.bf16.mxu0 0
        %1664 = vmatpush1.bf16.msra.mxu0 0
        %1665 = vmatprep.subr.bf16.mxu0 0
        %1666 = vmatpush1.bf16.msra.mxu0 0
        %1667 = vmatprep.subr.bf16.mxu0 0
        %1668 = vmatpush1.bf16.msra.mxu0 0
        %1669 = vmatprep.subr.bf16.mxu0 0
        %1670 = vmatpush1.bf16.msra.mxu0 0
        %1671 = vmatprep.subr.bf16.mxu0 0
        %1672 = vmatpush1.bf16.msra.mxu0 0
        %1673 = vmatprep.subr.bf16.mxu0 0
        %1674 = vmatpush1.bf16.msra.mxu0 0
        %1675 = vmatprep.subr.bf16.mxu0 0
        %1676 = vmatpush1.bf16.msra.mxu0 0
        %1677 = vmatprep.subr.bf16.mxu0 0
        %1678 = vmatpush1.bf16.msra.mxu0 0
        %1679 = vmatprep.subr.bf16.mxu0 0
        %1680 = vmatpush1.bf16.msra.mxu0 0
        %1681 = vmatprep.subr.bf16.mxu0 0
        %1682 = vmatpush1.bf16.msra.mxu0 0
        %1683 = vmatprep.mubr.bf16.mxu0 0
        %1684 = vmatmul.mubr.bf16.gmra.mrb[0].mxu0 %v1493
        %v1685 = vpop.f32.mrb[0].mxu0
        %v1686 = vadd.f32 %v1474, %v1685
        %v1687 = vpop.f32.mrb[0].mxu0
        %v1688 = vpop.f32.mrb[0].mxu0
        %v1689 = vpop.f32.mrb[0].mxu0
        %1690 = vdwg.mxu0
        %v1691 = vld [vmem:[#allocation10] sm:$0xf]
        %v1692 = vld [vmem:[#allocation10 + $0x4] sm:$0xf]
        %v1693 = vld [vmem:[#allocation10 + $0x8] sm:$0xf]
        %v1694 = vld [vmem:[#allocation10 + $0xc] sm:$0xf]
        %v1695 = vld [vmem:[#allocation10 + $0x10] sm:$0xf]
        %v1696 = vld [vmem:[#allocation10 + $0x14] sm:$0xf]
        %v1697 = vld [vmem:[#allocation10 + $0x18] sm:$0xf]
        %v1698 = vld [vmem:[#allocation10 + $0x1c] sm:$0xf]
        %v1699 = vld [vmem:[#allocation10 + $0x20] sm:$0xf]
        %v1700 = vld [vmem:[#allocation10 + $0x24] sm:$0xf]
        %v1701 = vld [vmem:[#allocation10 + $0x28] sm:$0xf]
        %v1702 = vld [vmem:[#allocation10 + $0x2c] sm:$0xf]
        %v1703 = vld [vmem:[#allocation10 + $0x30] sm:$0xf]
        %v1704 = vld [vmem:[#allocation10 + $0x34] sm:$0xf]
        %v1705 = vld [vmem:[#allocation10 + $0x38] sm:$0xf]
        %v1706 = vld [vmem:[#allocation10 + $0x3c] sm:$0xf]
        %v1707 = vld [vmem:[#allocation12] sm:$0x1]
        %v1708 = vld [vmem:[#allocation12 + $0x1] sm:$0x1]
        %v1709 = vld [vmem:[#allocation12 + $0x2] sm:$0x1]
        %v1710 = vld [vmem:[#allocation12 + $0x3] sm:$0x1]
        %v1715 = vlaneseq
        %v1716 = vshrl.u32 %v1715, 7
        %v1717 = vsub.s32 0, %v1716
        %v1718 = vrot.slane %v1707, %v1717
        %v1719 = vlaneseq
        %v1720 = vshrl.u32 %v1719, 7
        %v1721 = vsub.s32 0, %v1720
        %v1722 = vrot.slane %v1708, %v1721
        %v1723 = vlaneseq
        %v1724 = vshrl.u32 %v1723, 7
        %v1725 = vsub.s32 0, %v1724
        %v1726 = vrot.slane %v1709, %v1725
        %v1727 = vlaneseq
        %v1728 = vshrl.u32 %v1727, 7
        %v1729 = vsub.s32 0, %v1728
        %v1730 = vrot.slane %v1710, %v1729
        %v1739 = vunpack.c.l.b16 %v1691
        %v1740 = vunpack.c.l.b16 %v1692
        %v1741 = vunpack.c.l.b16 %v1693
        %v1742 = vunpack.c.l.b16 %v1694
        %v1743 = vpack.c.b16 %v1740, %v1739
        %v1744 = vpack.c.b16 %v1742, %v1741
        %1747 = vmatprep.subr.bf16.mxu0 0
        %1748 = vmatpush1.bf16.msra.mxu0 %v1743
        %1749 = vmatprep.subr.bf16.mxu0 0
        %1750 = vmatpush1.bf16.msra.mxu0 %v1744
        %1751 = vmatprep.subr.bf16.mxu0 0
        %1752 = vmatpush1.bf16.msra.mxu0 0
        %1753 = vmatprep.subr.bf16.mxu0 0
        %1754 = vmatpush1.bf16.msra.mxu0 0
        %1755 = vmatprep.subr.bf16.mxu0 0
        %1756 = vmatpush1.bf16.msra.mxu0 0
        %1757 = vmatprep.subr.bf16.mxu0 0
        %1758 = vmatpush1.bf16.msra.mxu0 0
        %1759 = vmatprep.subr.bf16.mxu0 0
        %1760 = vmatpush1.bf16.msra.mxu0 0
        %1761 = vmatprep.subr.bf16.mxu0 0
        %1762 = vmatpush1.bf16.msra.mxu0 0
        %1763 = vmatprep.subr.bf16.mxu0 0
        %1764 = vmatpush1.bf16.msra.mxu0 0
        %1765 = vmatprep.subr.bf16.mxu0 0
        %1766 = vmatpush1.bf16.msra.mxu0 0
        %1767 = vmatprep.subr.bf16.mxu0 0
        %1768 = vmatpush1.bf16.msra.mxu0 0
        %1769 = vmatprep.subr.bf16.mxu0 0
        %1770 = vmatpush1.bf16.msra.mxu0 0
        %1771 = vmatprep.subr.bf16.mxu0 0
        %1772 = vmatpush1.bf16.msra.mxu0 0
        %1773 = vmatprep.subr.bf16.mxu0 0
        %1774 = vmatpush1.bf16.msra.mxu0 0
        %1775 = vmatprep.subr.bf16.mxu0 0
        %1776 = vmatpush1.bf16.msra.mxu0 0
        %1777 = vmatprep.subr.bf16.mxu0 0
        %1778 = vmatpush1.bf16.msra.mxu0 0
        %1779 = vmatprep.mubr.bf16.mxu0 0
        %1780 = vmatmul.mubr.bf16.gmra.mrb[0].mxu0 %v1493
        %v1781 = vpop.f32.mrb[0].mxu0
        %v1782 = vadd.f32 %v1718, %v1781
        %v1783 = vpop.f32.mrb[0].mxu0
        %v1784 = vpop.f32.mrb[0].mxu0
        %v1785 = vpop.f32.mrb[0].mxu0
        %1786 = vdwg.mxu0
        %v1791 = vunpack.c.l.b16 %v1695
        %v1792 = vunpack.c.l.b16 %v1696
        %v1793 = vunpack.c.l.b16 %v1697
        %v1794 = vunpack.c.l.b16 %v1698
        %v1795 = vpack.c.b16 %v1792, %v1791
        %v1796 = vpack.c.b16 %v1794, %v1793
        %1799 = vmatprep.subr.bf16.mxu0 0
        %1800 = vmatpush1.bf16.msra.mxu0 %v1795
        %1801 = vmatprep.subr.bf16.mxu0 0
        %1802 = vmatpush1.bf16.msra.mxu0 %v1796
        %1803 = vmatprep.subr.bf16.mxu0 0
        %1804 = vmatpush1.bf16.msra.mxu0 0
        %1805 = vmatprep.subr.bf16.mxu0 0
        %1806 = vmatpush1.bf16.msra.mxu0 0
        %1807 = vmatprep.subr.bf16.mxu0 0
        %1808 = vmatpush1.bf16.msra.mxu0 0
        %1809 = vmatprep.subr.bf16.mxu0 0
        %1810 = vmatpush1.bf16.msra.mxu0 0
        %1811 = vmatprep.subr.bf16.mxu0 0
        %1812 = vmatpush1.bf16.msra.mxu0 0
        %1813 = vmatprep.subr.bf16.mxu0 0
        %1814 = vmatpush1.bf16.msra.mxu0 0
        %1815 = vmatprep.subr.bf16.mxu0 0
        %1816 = vmatpush1.bf16.msra.mxu0 0
        %1817 = vmatprep.subr.bf16.mxu0 0
        %1818 = vmatpush1.bf16.msra.mxu0 0
        %1819 = vmatprep.subr.bf16.mxu0 0
        %1820 = vmatpush1.bf16.msra.mxu0 0
        %1821 = vmatprep.subr.bf16.mxu0 0
        %1822 = vmatpush1.bf16.msra.mxu0 0
        %1823 = vmatprep.subr.bf16.mxu0 0
        %1824 = vmatpush1.bf16.msra.mxu0 0
        %1825 = vmatprep.subr.bf16.mxu0 0
        %1826 = vmatpush1.bf16.msra.mxu0 0
        %1827 = vmatprep.subr.bf16.mxu0 0
        %1828 = vmatpush1.bf16.msra.mxu0 0
        %1829 = vmatprep.subr.bf16.mxu0 0
        %1830 = vmatpush1.bf16.msra.mxu0 0
        %1831 = vmatprep.mubr.bf16.mxu0 0
        %1832 = vmatmul.mubr.bf16.gmra.mrb[0].mxu0 %v1493
        %v1833 = vpop.f32.mrb[0].mxu0
        %v1834 = vadd.f32 %v1722, %v1833
        %v1835 = vpop.f32.mrb[0].mxu0
        %v1836 = vpop.f32.mrb[0].mxu0
        %v1837 = vpop.f32.mrb[0].mxu0
        %1838 = vdwg.mxu0
        %v1843 = vunpack.c.l.b16 %v1699
        %v1844 = vunpack.c.l.b16 %v1700
        %v1845 = vunpack.c.l.b16 %v1701
        %v1846 = vunpack.c.l.b16 %v1702
        %v1847 = vpack.c.b16 %v1844, %v1843
        %v1848 = vpack.c.b16 %v1846, %v1845
        %1851 = vmatprep.subr.bf16.mxu0 0
        %1852 = vmatpush1.bf16.msra.mxu0 %v1847
        %1853 = vmatprep.subr.bf16.mxu0 0
        %1854 = vmatpush1.bf16.msra.mxu0 %v1848
        %1855 = vmatprep.subr.bf16.mxu0 0
        %1856 = vmatpush1.bf16.msra.mxu0 0
        %1857 = vmatprep.subr.bf16.mxu0 0
        %1858 = vmatpush1.bf16.msra.mxu0 0
        %1859 = vmatprep.subr.bf16.mxu0 0
        %1860 = vmatpush1.bf16.msra.mxu0 0
        %1861 = vmatprep.subr.bf16.mxu0 0
        %1862 = vmatpush1.bf16.msra.mxu0 0
        %1863 = vmatprep.subr.bf16.mxu0 0
        %1864 = vmatpush1.bf16.msra.mxu0 0
        %1865 = vmatprep.subr.bf16.mxu0 0
        %1866 = vmatpush1.bf16.msra.mxu0 0
        %1867 = vmatprep.subr.bf16.mxu0 0
        %1868 = vmatpush1.bf16.msra.mxu0 0
        %1869 = vmatprep.subr.bf16.mxu0 0
        %1870 = vmatpush1.bf16.msra.mxu0 0
        %1871 = vmatprep.subr.bf16.mxu0 0
        %1872 = vmatpush1.bf16.msra.mxu0 0
        %1873 = vmatprep.subr.bf16.mxu0 0
        %1874 = vmatpush1.bf16.msra.mxu0 0
        %1875 = vmatprep.subr.bf16.mxu0 0
        %1876 = vmatpush1.bf16.msra.mxu0 0
        %1877 = vmatprep.subr.bf16.mxu0 0
        %1878 = vmatpush1.bf16.msra.mxu0 0
        %1879 = vmatprep.subr.bf16.mxu0 0
        %1880 = vmatpush1.bf16.msra.mxu0 0
        %1881 = vmatprep.subr.bf16.mxu0 0
        %1882 = vmatpush1.bf16.msra.mxu0 0
        %1883 = vmatprep.mubr.bf16.mxu0 0
        %1884 = vmatmul.mubr.bf16.gmra.mrb[0].mxu0 %v1493
        %v1885 = vpop.f32.mrb[0].mxu0
        %v1886 = vadd.f32 %v1726, %v1885
        %v1887 = vpop.f32.mrb[0].mxu0
        %v1888 = vpop.f32.mrb[0].mxu0
        %v1889 = vpop.f32.mrb[0].mxu0
        %1890 = vdwg.mxu0
        %v1895 = vunpack.c.l.b16 %v1703
        %v1896 = vunpack.c.l.b16 %v1704
        %v1897 = vunpack.c.l.b16 %v1705
        %v1898 = vunpack.c.l.b16 %v1706
        %v1899 = vpack.c.b16 %v1896, %v1895
        %v1900 = vpack.c.b16 %v1898, %v1897
        %1903 = vmatprep.subr.bf16.mxu0 0
        %1904 = vmatpush1.bf16.msra.mxu0 %v1899
        %1905 = vmatprep.subr.bf16.mxu0 0
        %1906 = vmatpush1.bf16.msra.mxu0 %v1900
        %1907 = vmatprep.subr.bf16.mxu0 0
        %1908 = vmatpush1.bf16.msra.mxu0 0
        %1909 = vmatprep.subr.bf16.mxu0 0
        %1910 = vmatpush1.bf16.msra.mxu0 0
        %1911 = vmatprep.subr.bf16.mxu0 0
        %1912 = vmatpush1.bf16.msra.mxu0 0
        %1913 = vmatprep.subr.bf16.mxu0 0
        %1914 = vmatpush1.bf16.msra.mxu0 0
        %1915 = vmatprep.subr.bf16.mxu0 0
        %1916 = vmatpush1.bf16.msra.mxu0 0
        %1917 = vmatprep.subr.bf16.mxu0 0
        %1918 = vmatpush1.bf16.msra.mxu0 0
        %1919 = vmatprep.subr.bf16.mxu0 0
        %1920 = vmatpush1.bf16.msra.mxu0 0
        %1921 = vmatprep.subr.bf16.mxu0 0
        %1922 = vmatpush1.bf16.msra.mxu0 0
        %1923 = vmatprep.subr.bf16.mxu0 0
        %1924 = vmatpush1.bf16.msra.mxu0 0
        %1925 = vmatprep.subr.bf16.mxu0 0
        %1926 = vmatpush1.bf16.msra.mxu0 0
        %1927 = vmatprep.subr.bf16.mxu0 0
        %1928 = vmatpush1.bf16.msra.mxu0 0
        %1929 = vmatprep.subr.bf16.mxu0 0
        %1930 = vmatpush1.bf16.msra.mxu0 0
        %1931 = vmatprep.subr.bf16.mxu0 0
        %1932 = vmatpush1.bf16.msra.mxu0 0
        %1933 = vmatprep.subr.bf16.mxu0 0
        %1934 = vmatpush1.bf16.msra.mxu0 0
        %1935 = vmatprep.mubr.bf16.mxu0 0
        %1936 = vmatmul.mubr.bf16.gmra.mrb[0].mxu0 %v1493
        %v1937 = vpop.f32.mrb[0].mxu0
        %v1938 = vadd.f32 %v1730, %v1937
        %v1939 = vpop.f32.mrb[0].mxu0
        %v1940 = vpop.f32.mrb[0].mxu0
        %v1941 = vpop.f32.mrb[0].mxu0
        %1942 = vdwg.mxu0
        %v1943 = vld [vmem:[#allocation13] sm:$0xf]
        %v1944 = vld [vmem:[#allocation13 + $0x4] sm:$0xf]
        %v1945 = vld [vmem:[#allocation13 + $0x8] sm:$0xf]
        %v1946 = vld [vmem:[#allocation13 + $0xc] sm:$0xf]
        %v1947 = vld [vmem:[#allocation13 + $0x10] sm:$0xf]
        %v1948 = vld [vmem:[#allocation13 + $0x14] sm:$0xf]
        %v1949 = vld [vmem:[#allocation13 + $0x18] sm:$0xf]
        %v1950 = vld [vmem:[#allocation13 + $0x1c] sm:$0xf]
        %v1951 = vld [vmem:[#allocation13 + $0x20] sm:$0xf]
        %v1952 = vld [vmem:[#allocation13 + $0x24] sm:$0xf]
        %v1953 = vld [vmem:[#allocation13 + $0x28] sm:$0xf]
        %v1954 = vld [vmem:[#allocation13 + $0x2c] sm:$0xf]
        %v1955 = vld [vmem:[#allocation13 + $0x30] sm:$0xf]
        %v1956 = vld [vmem:[#allocation13 + $0x34] sm:$0xf]
        %v1957 = vld [vmem:[#allocation13 + $0x38] sm:$0xf]
        %v1958 = vld [vmem:[#allocation13 + $0x3c] sm:$0xf]
        %v1959 = vld [vmem:[#allocation15] sm:$0x1]
        %v1960 = vld [vmem:[#allocation15 + $0x1] sm:$0x1]
        %v1961 = vld [vmem:[#allocation15 + $0x2] sm:$0x1]
        %v1962 = vld [vmem:[#allocation15 + $0x3] sm:$0x1]
        %v1967 = vlaneseq
        %v1968 = vshrl.u32 %v1967, 7
        %v1969 = vsub.s32 0, %v1968
        %v1970 = vrot.slane %v1959, %v1969
        %v1971 = vlaneseq
        %v1972 = vshrl.u32 %v1971, 7
        %v1973 = vsub.s32 0, %v1972
        %v1974 = vrot.slane %v1960, %v1973
        %v1975 = vlaneseq
        %v1976 = vshrl.u32 %v1975, 7
        %v1977 = vsub.s32 0, %v1976
        %v1978 = vrot.slane %v1961, %v1977
        %v1979 = vlaneseq
        %v1980 = vshrl.u32 %v1979, 7
        %v1981 = vsub.s32 0, %v1980
        %v1982 = vrot.slane %v1962, %v1981
        %v1991 = vunpack.c.l.b16 %v1943
        %v1992 = vunpack.c.l.b16 %v1944
        %v1993 = vunpack.c.l.b16 %v1945
        %v1994 = vunpack.c.l.b16 %v1946
        %v1995 = vpack.c.b16 %v1992, %v1991
        %v1996 = vpack.c.b16 %v1994, %v1993
        %1999 = vmatprep.subr.bf16.mxu0 0
        %2000 = vmatpush1.bf16.msra.mxu0 %v1995
        %2001 = vmatprep.subr.bf16.mxu0 0
        %2002 = vmatpush1.bf16.msra.mxu0 %v1996
        %2003 = vmatprep.subr.bf16.mxu0 0
        %2004 = vmatpush1.bf16.msra.mxu0 0
        %2005 = vmatprep.subr.bf16.mxu0 0
        %2006 = vmatpush1.bf16.msra.mxu0 0
        %2007 = vmatprep.subr.bf16.mxu0 0
        %2008 = vmatpush1.bf16.msra.mxu0 0
        %2009 = vmatprep.subr.bf16.mxu0 0
        %2010 = vmatpush1.bf16.msra.mxu0 0
        %2011 = vmatprep.subr.bf16.mxu0 0
        %2012 = vmatpush1.bf16.msra.mxu0 0
        %2013 = vmatprep.subr.bf16.mxu0 0
        %2014 = vmatpush1.bf16.msra.mxu0 0
        %2015 = vmatprep.subr.bf16.mxu0 0
        %2016 = vmatpush1.bf16.msra.mxu0 0
        %2017 = vmatprep.subr.bf16.mxu0 0
        %2018 = vmatpush1.bf16.msra.mxu0 0
        %2019 = vmatprep.subr.bf16.mxu0 0
        %2020 = vmatpush1.bf16.msra.mxu0 0
        %2021 = vmatprep.subr.bf16.mxu0 0
        %2022 = vmatpush1.bf16.msra.mxu0 0
        %2023 = vmatprep.subr.bf16.mxu0 0
        %2024 = vmatpush1.bf16.msra.mxu0 0
        %2025 = vmatprep.subr.bf16.mxu0 0
        %2026 = vmatpush1.bf16.msra.mxu0 0
        %2027 = vmatprep.subr.bf16.mxu0 0
        %2028 = vmatpush1.bf16.msra.mxu0 0
        %2029 = vmatprep.subr.bf16.mxu0 0
        %2030 = vmatpush1.bf16.msra.mxu0 0
        %2031 = vmatprep.mubr.bf16.mxu0 0
        %2032 = vmatmul.mubr.bf16.gmra.mrb[0].mxu0 %v1493
        %v2033 = vpop.f32.mrb[0].mxu0
        %v2034 = vadd.f32 %v1970, %v2033
        %v2035 = vpop.f32.mrb[0].mxu0
        %v2036 = vpop.f32.mrb[0].mxu0
        %v2037 = vpop.f32.mrb[0].mxu0
        %2038 = vdwg.mxu0
        %v2043 = vunpack.c.l.b16 %v1947
        %v2044 = vunpack.c.l.b16 %v1948
        %v2045 = vunpack.c.l.b16 %v1949
        %v2046 = vunpack.c.l.b16 %v1950
        %v2047 = vpack.c.b16 %v2044, %v2043
        %v2048 = vpack.c.b16 %v2046, %v2045
        %2051 = vmatprep.subr.bf16.mxu0 0
        %2052 = vmatpush1.bf16.msra.mxu0 %v2047
        %2053 = vmatprep.subr.bf16.mxu0 0
        %2054 = vmatpush1.bf16.msra.mxu0 %v2048
        %2055 = vmatprep.subr.bf16.mxu0 0
        %2056 = vmatpush1.bf16.msra.mxu0 0
        %2057 = vmatprep.subr.bf16.mxu0 0
        %2058 = vmatpush1.bf16.msra.mxu0 0
        %2059 = vmatprep.subr.bf16.mxu0 0
        %2060 = vmatpush1.bf16.msra.mxu0 0
        %2061 = vmatprep.subr.bf16.mxu0 0
        %2062 = vmatpush1.bf16.msra.mxu0 0
        %2063 = vmatprep.subr.bf16.mxu0 0
        %2064 = vmatpush1.bf16.msra.mxu0 0
        %2065 = vmatprep.subr.bf16.mxu0 0
        %2066 = vmatpush1.bf16.msra.mxu0 0
        %2067 = vmatprep.subr.bf16.mxu0 0
        %2068 = vmatpush1.bf16.msra.mxu0 0
        %2069 = vmatprep.subr.bf16.mxu0 0
        %2070 = vmatpush1.bf16.msra.mxu0 0
        %2071 = vmatprep.subr.bf16.mxu0 0
        %2072 = vmatpush1.bf16.msra.mxu0 0
        %2073 = vmatprep.subr.bf16.mxu0 0
        %2074 = vmatpush1.bf16.msra.mxu0 0
        %2075 = vmatprep.subr.bf16.mxu0 0
        %2076 = vmatpush1.bf16.msra.mxu0 0
        %2077 = vmatprep.subr.bf16.mxu0 0
        %2078 = vmatpush1.bf16.msra.mxu0 0
        %2079 = vmatprep.subr.bf16.mxu0 0
        %2080 = vmatpush1.bf16.msra.mxu0 0
        %2081 = vmatprep.subr.bf16.mxu0 0
        %2082 = vmatpush1.bf16.msra.mxu0 0
        %2083 = vmatprep.mubr.bf16.mxu0 0
        %2084 = vmatmul.mubr.bf16.gmra.mrb[0].mxu0 %v1493
        %v2085 = vpop.f32.mrb[0].mxu0
        %v2086 = vadd.f32 %v1974, %v2085
        %v2087 = vpop.f32.mrb[0].mxu0
        %v2088 = vpop.f32.mrb[0].mxu0
        %v2089 = vpop.f32.mrb[0].mxu0
        %2090 = vdwg.mxu0
        %v2095 = vunpack.c.l.b16 %v1951
        %v2096 = vunpack.c.l.b16 %v1952
        %v2097 = vunpack.c.l.b16 %v1953
        %v2098 = vunpack.c.l.b16 %v1954
        %v2099 = vpack.c.b16 %v2096, %v2095
        %v2100 = vpack.c.b16 %v2098, %v2097
        %2103 = vmatprep.subr.bf16.mxu0 0
        %2104 = vmatpush1.bf16.msra.mxu0 %v2099
        %2105 = vmatprep.subr.bf16.mxu0 0
        %2106 = vmatpush1.bf16.msra.mxu0 %v2100
        %2107 = vmatprep.subr.bf16.mxu0 0
        %2108 = vmatpush1.bf16.msra.mxu0 0
        %2109 = vmatprep.subr.bf16.mxu0 0
        %2110 = vmatpush1.bf16.msra.mxu0 0
        %2111 = vmatprep.subr.bf16.mxu0 0
        %2112 = vmatpush1.bf16.msra.mxu0 0
        %2113 = vmatprep.subr.bf16.mxu0 0
        %2114 = vmatpush1.bf16.msra.mxu0 0
        %2115 = vmatprep.subr.bf16.mxu0 0
        %2116 = vmatpush1.bf16.msra.mxu0 0
        %2117 = vmatprep.subr.bf16.mxu0 0
        %2118 = vmatpush1.bf16.msra.mxu0 0
        %2119 = vmatprep.subr.bf16.mxu0 0
        %2120 = vmatpush1.bf16.msra.mxu0 0
        %2121 = vmatprep.subr.bf16.mxu0 0
        %2122 = vmatpush1.bf16.msra.mxu0 0
        %2123 = vmatprep.subr.bf16.mxu0 0
        %2124 = vmatpush1.bf16.msra.mxu0 0
        %2125 = vmatprep.subr.bf16.mxu0 0
        %2126 = vmatpush1.bf16.msra.mxu0 0
        %2127 = vmatprep.subr.bf16.mxu0 0
        %2128 = vmatpush1.bf16.msra.mxu0 0
        %2129 = vmatprep.subr.bf16.mxu0 0
        %2130 = vmatpush1.bf16.msra.mxu0 0
        %2131 = vmatprep.subr.bf16.mxu0 0
        %2132 = vmatpush1.bf16.msra.mxu0 0
        %2133 = vmatprep.subr.bf16.mxu0 0
        %2134 = vmatpush1.bf16.msra.mxu0 0
        %2135 = vmatprep.mubr.bf16.mxu0 0
        %2136 = vmatmul.mubr.bf16.gmra.mrb[0].mxu0 %v1493
        %v2137 = vpop.f32.mrb[0].mxu0
        %v2138 = vadd.f32 %v1978, %v2137
        %v2139 = vpop.f32.mrb[0].mxu0
        %v2140 = vpop.f32.mrb[0].mxu0
        %v2141 = vpop.f32.mrb[0].mxu0
        %2142 = vdwg.mxu0
        %v2147 = vunpack.c.l.b16 %v1955
        %v2148 = vunpack.c.l.b16 %v1956
        %v2149 = vunpack.c.l.b16 %v1957
        %v2150 = vunpack.c.l.b16 %v1958
        %v2151 = vpack.c.b16 %v2148, %v2147
        %v2152 = vpack.c.b16 %v2150, %v2149
        %2155 = vmatprep.subr.bf16.mxu0 0
        %2156 = vmatpush1.bf16.msra.mxu0 %v2151
        %2157 = vmatprep.subr.bf16.mxu0 0
        %2158 = vmatpush1.bf16.msra.mxu0 %v2152
        %2159 = vmatprep.subr.bf16.mxu0 0
        %2160 = vmatpush1.bf16.msra.mxu0 0
        %2161 = vmatprep.subr.bf16.mxu0 0
        %2162 = vmatpush1.bf16.msra.mxu0 0
        %2163 = vmatprep.subr.bf16.mxu0 0
        %2164 = vmatpush1.bf16.msra.mxu0 0
        %2165 = vmatprep.subr.bf16.mxu0 0
        %2166 = vmatpush1.bf16.msra.mxu0 0
        %2167 = vmatprep.subr.bf16.mxu0 0
        %2168 = vmatpush1.bf16.msra.mxu0 0
        %2169 = vmatprep.subr.bf16.mxu0 0
        %2170 = vmatpush1.bf16.msra.mxu0 0
        %2171 = vmatprep.subr.bf16.mxu0 0
        %2172 = vmatpush1.bf16.msra.mxu0 0
        %2173 = vmatprep.subr.bf16.mxu0 0
        %2174 = vmatpush1.bf16.msra.mxu0 0
        %2175 = vmatprep.subr.bf16.mxu0 0
        %2176 = vmatpush1.bf16.msra.mxu0 0
        %2177 = vmatprep.subr.bf16.mxu0 0
        %2178 = vmatpush1.bf16.msra.mxu0 0
        %2179 = vmatprep.subr.bf16.mxu0 0
        %2180 = vmatpush1.bf16.msra.mxu0 0
        %2181 = vmatprep.subr.bf16.mxu0 0
        %2182 = vmatpush1.bf16.msra.mxu0 0
        %2183 = vmatprep.subr.bf16.mxu0 0
        %2184 = vmatpush1.bf16.msra.mxu0 0
        %2185 = vmatprep.subr.bf16.mxu0 0
        %2186 = vmatpush1.bf16.msra.mxu0 0
        %2187 = vmatprep.mubr.bf16.mxu0 0
        %2188 = vmatmul.mubr.bf16.gmra.mrb[0].mxu0 %v1493
        %v2189 = vpop.f32.mrb[0].mxu0
        %v2190 = vadd.f32 %v1982, %v2189
        %v2191 = vpop.f32.mrb[0].mxu0
        %v2192 = vpop.f32.mrb[0].mxu0
        %v2193 = vpop.f32.mrb[0].mxu0
        %2194 = vdwg.mxu0
        %v2195 = vmul.f32 %v1530, 0.35355338
        %v2196 = vmul.f32 %v1582, 0.35355338
        %v2197 = vmul.f32 %v1634, 0.35355338
        %v2198 = vmul.f32 %v1686, 0.35355338
        %v2199 = vpack.c.bf16 %v2195, %v2195
        %v2200 = vpack.c.bf16 %v2196, %v2196
        %v2201 = vpack.c.bf16 %v2197, %v2197
        %v2202 = vpack.c.bf16 %v2198, %v2198
        %v2203 = vpack.c.bf16 %v1782, %v1782
        %v2204 = vpack.c.bf16 %v1834, %v1834
        %v2205 = vpack.c.bf16 %v1886, %v1886
        %v2206 = vpack.c.bf16 %v1938, %v1938
        %vm2207 = vcmask 64512
        %v2209 = vsel %vm2207, %v2199, 0
        %v2212 = vsel %vm2207, %v2203, 0
        %2214 = vmatprep.subr.bf16.mxu0 0
        %2215 = vmatpush1.bf16.xpose.msra.mxu0 %v2212
        %2216 = vmatprep.subr.bf16.mxu0 0
        %2217 = vmatpush1.bf16.xpose.msra.mxu0 0
        %2218 = vmatprep.subr.bf16.mxu0 0
        %2219 = vmatpush1.bf16.xpose.msra.mxu0 0
        %2220 = vmatprep.subr.bf16.mxu0 0
        %2221 = vmatpush1.bf16.xpose.msra.mxu0 0
        %2222 = vmatprep.subr.bf16.mxu0 0
        %2223 = vmatpush1.bf16.xpose.msra.mxu0 0
        %2224 = vmatprep.subr.bf16.mxu0 0
        %2225 = vmatpush1.bf16.xpose.msra.mxu0 0
        %2226 = vmatprep.subr.bf16.mxu0 0
        %2227 = vmatpush1.bf16.xpose.msra.mxu0 0
        %2228 = vmatprep.subr.bf16.mxu0 0
        %2229 = vmatpush1.bf16.xpose.msra.mxu0 0
        %2230 = vmatprep.subr.bf16.mxu0 0
        %2231 = vmatpush1.bf16.xpose.msra.mxu0 0
        %2232 = vmatprep.subr.bf16.mxu0 0
        %2233 = vmatpush1.bf16.xpose.msra.mxu0 0
        %2234 = vmatprep.subr.bf16.mxu0 0
        %2235 = vmatpush1.bf16.xpose.msra.mxu0 0
        %2236 = vmatprep.subr.bf16.mxu0 0
        %2237 = vmatpush1.bf16.xpose.msra.mxu0 0
        %2238 = vmatprep.subr.bf16.mxu0 0
        %2239 = vmatpush1.bf16.xpose.msra.mxu0 0
        %2240 = vmatprep.subr.bf16.mxu0 0
        %2241 = vmatpush1.bf16.xpose.msra.mxu0 0
        %2242 = vmatprep.subr.bf16.mxu0 0
        %2243 = vmatpush1.bf16.xpose.msra.mxu0 0
        %2244 = vmatprep.subr.bf16.mxu0 0
        %2245 = vmatpush1.bf16.xpose.msra.mxu0 0
        %2246 = vmatprep.mubr.bf16.mxu0 0
        %2247 = vmatmul.mubr.bf16.gmra.mrb[0].mxu0 %v2209
        %v2248 = vpop.f32.mrb[0].mxu0
        %v2249 = vadd.f32 0.0, %v2248
        %v2250 = vpop.f32.mrb[0].mxu0
        %v2251 = vpop.f32.mrb[0].mxu0
        %v2252 = vpop.f32.mrb[0].mxu0
        %2253 = vdwg.mxu0
        %v2255 = vsel %vm2207, %v2200, 0
        %v2258 = vsel %vm2207, %v2204, 0
        %2260 = vmatprep.subr.bf16.mxu0 0
        %2261 = vmatpush1.bf16.xpose.msra.mxu0 %v2258
        %2262 = vmatprep.subr.bf16.mxu0 0
        %2263 = vmatpush1.bf16.xpose.msra.mxu0 0
        %2264 = vmatprep.subr.bf16.mxu0 0
        %2265 = vmatpush1.bf16.xpose.msra.mxu0 0
        %2266 = vmatprep.subr.bf16.mxu0 0
        %2267 = vmatpush1.bf16.xpose.msra.mxu0 0
        %2268 = vmatprep.subr.bf16.mxu0 0
        %2269 = vmatpush1.bf16.xpose.msra.mxu0 0
        %2270 = vmatprep.subr.bf16.mxu0 0
        %2271 = vmatpush1.bf16.xpose.msra.mxu0 0
        %2272 = vmatprep.subr.bf16.mxu0 0
        %2273 = vmatpush1.bf16.xpose.msra.mxu0 0
        %2274 = vmatprep.subr.bf16.mxu0 0
        %2275 = vmatpush1.bf16.xpose.msra.mxu0 0
        %2276 = vmatprep.subr.bf16.mxu0 0
        %2277 = vmatpush1.bf16.xpose.msra.mxu0 0
        %2278 = vmatprep.subr.bf16.mxu0 0
        %2279 = vmatpush1.bf16.xpose.msra.mxu0 0
        %2280 = vmatprep.subr.bf16.mxu0 0
        %2281 = vmatpush1.bf16.xpose.msra.mxu0 0
        %2282 = vmatprep.subr.bf16.mxu0 0
        %2283 = vmatpush1.bf16.xpose.msra.mxu0 0
        %2284 = vmatprep.subr.bf16.mxu0 0
        %2285 = vmatpush1.bf16.xpose.msra.mxu0 0
        %2286 = vmatprep.subr.bf16.mxu0 0
        %2287 = vmatpush1.bf16.xpose.msra.mxu0 0
        %2288 = vmatprep.subr.bf16.mxu0 0
        %2289 = vmatpush1.bf16.xpose.msra.mxu0 0
        %2290 = vmatprep.subr.bf16.mxu0 0
        %2291 = vmatpush1.bf16.xpose.msra.mxu0 0
        %2292 = vmatprep.mubr.bf16.mxu0 0
        %2293 = vmatmul.mubr.bf16.gmra.mrb[0].mxu0 %v2255
        %v2294 = vpop.f32.mrb[0].mxu0
        %v2295 = vadd.f32 0.0, %v2294
        %v2296 = vpop.f32.mrb[0].mxu0
        %v2297 = vpop.f32.mrb[0].mxu0
        %v2298 = vpop.f32.mrb[0].mxu0
        %2299 = vdwg.mxu0
        %v2301 = vsel %vm2207, %v2201, 0
        %v2304 = vsel %vm2207, %v2205, 0
        %2306 = vmatprep.subr.bf16.mxu0 0
        %2307 = vmatpush1.bf16.xpose.msra.mxu0 %v2304
        %2308 = vmatprep.subr.bf16.mxu0 0
        %2309 = vmatpush1.bf16.xpose.msra.mxu0 0
        %2310 = vmatprep.subr.bf16.mxu0 0
        %2311 = vmatpush1.bf16.xpose.msra.mxu0 0
        %2312 = vmatprep.subr.bf16.mxu0 0
        %2313 = vmatpush1.bf16.xpose.msra.mxu0 0
        %2314 = vmatprep.subr.bf16.mxu0 0
        %2315 = vmatpush1.bf16.xpose.msra.mxu0 0
        %2316 = vmatprep.subr.bf16.mxu0 0
        %2317 = vmatpush1.bf16.xpose.msra.mxu0 0
        %2318 = vmatprep.subr.bf16.mxu0 0
        %2319 = vmatpush1.bf16.xpose.msra.mxu0 0
        %2320 = vmatprep.subr.bf16.mxu0 0
        %2321 = vmatpush1.bf16.xpose.msra.mxu0 0
        %2322 = vmatprep.subr.bf16.mxu0 0
        %2323 = vmatpush1.bf16.xpose.msra.mxu0 0
        %2324 = vmatprep.subr.bf16.mxu0 0
        %2325 = vmatpush1.bf16.xpose.msra.mxu0 0
        %2326 = vmatprep.subr.bf16.mxu0 0
        %2327 = vmatpush1.bf16.xpose.msra.mxu0 0
        %2328 = vmatprep.subr.bf16.mxu0 0
        %2329 = vmatpush1.bf16.xpose.msra.mxu0 0
        %2330 = vmatprep.subr.bf16.mxu0 0
        %2331 = vmatpush1.bf16.xpose.msra.mxu0 0
        %2332 = vmatprep.subr.bf16.mxu0 0
        %2333 = vmatpush1.bf16.xpose.msra.mxu0 0
        %2334 = vmatprep.subr.bf16.mxu0 0
        %2335 = vmatpush1.bf16.xpose.msra.mxu0 0
        %2336 = vmatprep.subr.bf16.mxu0 0
        %2337 = vmatpush1.bf16.xpose.msra.mxu0 0
        %2338 = vmatprep.mubr.bf16.mxu0 0
        %2339 = vmatmul.mubr.bf16.gmra.mrb[0].mxu0 %v2301
        %v2340 = vpop.f32.mrb[0].mxu0
        %v2341 = vadd.f32 0.0, %v2340
        %v2342 = vpop.f32.mrb[0].mxu0
        %v2343 = vpop.f32.mrb[0].mxu0
        %v2344 = vpop.f32.mrb[0].mxu0
        %2345 = vdwg.mxu0
        %v2347 = vsel %vm2207, %v2202, 0
        %v2350 = vsel %vm2207, %v2206, 0
        %2352 = vmatprep.subr.bf16.mxu0 0
        %2353 = vmatpush1.bf16.xpose.msra.mxu0 %v2350
        %2354 = vmatprep.subr.bf16.mxu0 0
        %2355 = vmatpush1.bf16.xpose.msra.mxu0 0
        %2356 = vmatprep.subr.bf16.mxu0 0
        %2357 = vmatpush1.bf16.xpose.msra.mxu0 0
        %2358 = vmatprep.subr.bf16.mxu0 0
        %2359 = vmatpush1.bf16.xpose.msra.mxu0 0
        %2360 = vmatprep.subr.bf16.mxu0 0
        %2361 = vmatpush1.bf16.xpose.msra.mxu0 0
        %2362 = vmatprep.subr.bf16.mxu0 0
        %2363 = vmatpush1.bf16.xpose.msra.mxu0 0
        %2364 = vmatprep.subr.bf16.mxu0 0
        %2365 = vmatpush1.bf16.xpose.msra.mxu0 0
        %2366 = vmatprep.subr.bf16.mxu0 0
        %2367 = vmatpush1.bf16.xpose.msra.mxu0 0
        %2368 = vmatprep.subr.bf16.mxu0 0
        %2369 = vmatpush1.bf16.xpose.msra.mxu0 0
        %2370 = vmatprep.subr.bf16.mxu0 0
        %2371 = vmatpush1.bf16.xpose.msra.mxu0 0
        %2372 = vmatprep.subr.bf16.mxu0 0
        %2373 = vmatpush1.bf16.xpose.msra.mxu0 0
        %2374 = vmatprep.subr.bf16.mxu0 0
        %2375 = vmatpush1.bf16.xpose.msra.mxu0 0
        %2376 = vmatprep.subr.bf16.mxu0 0
        %2377 = vmatpush1.bf16.xpose.msra.mxu0 0
        %2378 = vmatprep.subr.bf16.mxu0 0
        %2379 = vmatpush1.bf16.xpose.msra.mxu0 0
        %2380 = vmatprep.subr.bf16.mxu0 0
        %2381 = vmatpush1.bf16.xpose.msra.mxu0 0
        %2382 = vmatprep.subr.bf16.mxu0 0
        %2383 = vmatpush1.bf16.xpose.msra.mxu0 0
        %2384 = vmatprep.mubr.bf16.mxu0 0
        %2385 = vmatmul.mubr.bf16.gmra.mrb[0].mxu0 %v2347
        %v2386 = vpop.f32.mrb[0].mxu0
        %v2387 = vadd.f32 0.0, %v2386
        %v2388 = vpop.f32.mrb[0].mxu0
        %v2389 = vpop.f32.mrb[0].mxu0
        %v2390 = vpop.f32.mrb[0].mxu0
        %2391 = vdwg.mxu0
        %v2392 = vsel %vm2207, %v2249, -inf
        %2393 = vmax.xlane.f32.xlu0 %v2392
        %v2394 = vpop.xlane.xlu0 %2393
        %v2395 = vsel %vm2207, %v2295, -inf
        %2396 = vmax.xlane.f32.xlu0 %v2395
        %v2397 = vpop.xlane.xlu0 %2396
        %v2398 = vsel %vm2207, %v2341, -inf
        %2399 = vmax.xlane.f32.xlu0 %v2398
        %v2400 = vpop.xlane.xlu0 %2399
        %v2401 = vsel %vm2207, %v2387, -inf
        %2402 = vmax.xlane.f32.xlu0 %v2401
        %v2403 = vpop.xlane.xlu0 %2402
        %v2404 = vsub.f32 %v2249, %v2394
        %v2405 = vsub.f32 %v2295, %v2397
        %v2406 = vsub.f32 %v2341, %v2400
        %v2407 = vsub.f32 %v2387, %v2403
        %v2408 = vmul.f32 %v2404, 1.442695
        %v2409 = vpow.pop %v2408
        %v2410 = vmul.f32 %v2405, 1.442695
        %v2411 = vpow.pop %v2410
        %v2412 = vmul.f32 %v2406, 1.442695
        %v2413 = vpow.pop %v2412
        %v2414 = vmul.f32 %v2407, 1.442695
        %v2415 = vpow.pop %v2414
        %v2416 = vsel %vm2207, %v2409, 0.0
        %2417 = vadd.xlane.f32.xlu0 %v2416
        %v2418 = vpop.xlane.xlu0 %2417
        %v2419 = vsel %vm2207, %v2411, 0.0
        %2420 = vadd.xlane.f32.xlu0 %v2419
        %v2421 = vpop.xlane.xlu0 %2420
        %v2422 = vsel %vm2207, %v2413, 0.0
        %2423 = vadd.xlane.f32.xlu0 %v2422
        %v2424 = vpop.xlane.xlu0 %2423
        %v2425 = vsel %vm2207, %v2415, 0.0
        %2426 = vadd.xlane.f32.xlu0 %v2425
        %v2427 = vpop.xlane.xlu0 %2426
        %v2428 = vrcp.pop %v2418
        %v2429 = vrcp.pop %v2421
        %v2430 = vrcp.pop %v2424
        %v2431 = vrcp.pop %v2427
        %v2432 = vmul.f32 %v2409, %v2428
        %v2433 = vmul.f32 %v2411, %v2429
        %v2434 = vmul.f32 %v2413, %v2430
        %v2435 = vmul.f32 %v2415, %v2431
        %v2436 = vpack.c.bf16 %v2432, %v2432
        %v2437 = vpack.c.bf16 %v2433, %v2433
        %v2438 = vpack.c.bf16 %v2434, %v2434
        %v2439 = vpack.c.bf16 %v2435, %v2435
        %v2440 = vpack.c.bf16 %v2034, %v2034
        %v2441 = vpack.c.bf16 %v2086, %v2086
        %v2442 = vpack.c.bf16 %v2138, %v2138
        %v2443 = vpack.c.bf16 %v2190, %v2190
        %v2445 = vsel %vm2207, %v2436, 0
        %vm2447 = vcmask 1043456
        %v2449 = vsel %vm2447, %v2440, 0
        %2451 = vmatprep.subr.bf16.mxu0 0
        %2452 = vmatpush1.bf16.msra.mxu0 %v2449
        %2453 = vmatprep.subr.bf16.mxu0 0
        %2454 = vmatpush1.bf16.msra.mxu0 0
        %2455 = vmatprep.subr.bf16.mxu0 0
        %2456 = vmatpush1.bf16.msra.mxu0 0
        %2457 = vmatprep.subr.bf16.mxu0 0
        %2458 = vmatpush1.bf16.msra.mxu0 0
        %2459 = vmatprep.subr.bf16.mxu0 0
        %2460 = vmatpush1.bf16.msra.mxu0 0
        %2461 = vmatprep.subr.bf16.mxu0 0
        %2462 = vmatpush1.bf16.msra.mxu0 0
        %2463 = vmatprep.subr.bf16.mxu0 0
        %2464 = vmatpush1.bf16.msra.mxu0 0
        %2465 = vmatprep.subr.bf16.mxu0 0
        %2466 = vmatpush1.bf16.msra.mxu0 0
        %2467 = vmatprep.subr.bf16.mxu0 0
        %2468 = vmatpush1.bf16.msra.mxu0 0
        %2469 = vmatprep.subr.bf16.mxu0 0
        %2470 = vmatpush1.bf16.msra.mxu0 0
        %2471 = vmatprep.subr.bf16.mxu0 0
        %2472 = vmatpush1.bf16.msra.mxu0 0
        %2473 = vmatprep.subr.bf16.mxu0 0
        %2474 = vmatpush1.bf16.msra.mxu0 0
        %2475 = vmatprep.subr.bf16.mxu0 0
        %2476 = vmatpush1.bf16.msra.mxu0 0
        %2477 = vmatprep.subr.bf16.mxu0 0
        %2478 = vmatpush1.bf16.msra.mxu0 0
        %2479 = vmatprep.subr.bf16.mxu0 0
        %2480 = vmatpush1.bf16.msra.mxu0 0
        %2481 = vmatprep.subr.bf16.mxu0 0
        %2482 = vmatpush1.bf16.msra.mxu0 0
        %2483 = vmatprep.mubr.bf16.mxu0 0
        %2484 = vmatmul.mubr.bf16.gmra.mrb[0].mxu0 %v2445
        %v2485 = vpop.f32.mrb[0].mxu0
        %v2486 = vadd.f32 0.0, %v2485
        %v2487 = vpop.f32.mrb[0].mxu0
        %v2488 = vpop.f32.mrb[0].mxu0
        %v2489 = vpop.f32.mrb[0].mxu0
        %2490 = vdwg.mxu0
        %v2492 = vsel %vm2207, %v2437, 0
        %v2495 = vsel %vm2447, %v2441, 0
        %2497 = vmatprep.subr.bf16.mxu0 0
        %2498 = vmatpush1.bf16.msra.mxu0 %v2495
        %2499 = vmatprep.subr.bf16.mxu0 0
        %2500 = vmatpush1.bf16.msra.mxu0 0
        %2501 = vmatprep.subr.bf16.mxu0 0
        %2502 = vmatpush1.bf16.msra.mxu0 0
        %2503 = vmatprep.subr.bf16.mxu0 0
        %2504 = vmatpush1.bf16.msra.mxu0 0
        %2505 = vmatprep.subr.bf16.mxu0 0
        %2506 = vmatpush1.bf16.msra.mxu0 0
        %2507 = vmatprep.subr.bf16.mxu0 0
        %2508 = vmatpush1.bf16.msra.mxu0 0
        %2509 = vmatprep.subr.bf16.mxu0 0
        %2510 = vmatpush1.bf16.msra.mxu0 0
        %2511 = vmatprep.subr.bf16.mxu0 0
        %2512 = vmatpush1.bf16.msra.mxu0 0
        %2513 = vmatprep.subr.bf16.mxu0 0
        %2514 = vmatpush1.bf16.msra.mxu0 0
        %2515 = vmatprep.subr.bf16.mxu0 0
        %2516 = vmatpush1.bf16.msra.mxu0 0
        %2517 = vmatprep.subr.bf16.mxu0 0
        %2518 = vmatpush1.bf16.msra.mxu0 0
        %2519 = vmatprep.subr.bf16.mxu0 0
        %2520 = vmatpush1.bf16.msra.mxu0 0
        %2521 = vmatprep.subr.bf16.mxu0 0
        %2522 = vmatpush1.bf16.msra.mxu0 0
        %2523 = vmatprep.subr.bf16.mxu0 0
        %2524 = vmatpush1.bf16.msra.mxu0 0
        %2525 = vmatprep.subr.bf16.mxu0 0
        %2526 = vmatpush1.bf16.msra.mxu0 0
        %2527 = vmatprep.subr.bf16.mxu0 0
        %2528 = vmatpush1.bf16.msra.mxu0 0
        %2529 = vmatprep.mubr.bf16.mxu0 0
        %2530 = vmatmul.mubr.bf16.gmra.mrb[0].mxu0 %v2492
        %v2531 = vpop.f32.mrb[0].mxu0
        %v2532 = vadd.f32 0.0, %v2531
        %v2533 = vpop.f32.mrb[0].mxu0
        %v2534 = vpop.f32.mrb[0].mxu0
        %v2535 = vpop.f32.mrb[0].mxu0
        %2536 = vdwg.mxu0
        %v2538 = vsel %vm2207, %v2438, 0
        %v2541 = vsel %vm2447, %v2442, 0
        %2543 = vmatprep.subr.bf16.mxu0 0
        %2544 = vmatpush1.bf16.msra.mxu0 %v2541
        %2545 = vmatprep.subr.bf16.mxu0 0
        %2546 = vmatpush1.bf16.msra.mxu0 0
        %2547 = vmatprep.subr.bf16.mxu0 0
        %2548 = vmatpush1.bf16.msra.mxu0 0
        %2549 = vmatprep.subr.bf16.mxu0 0
        %2550 = vmatpush1.bf16.msra.mxu0 0
        %2551 = vmatprep.subr.bf16.mxu0 0
        %2552 = vmatpush1.bf16.msra.mxu0 0
        %2553 = vmatprep.subr.bf16.mxu0 0
        %2554 = vmatpush1.bf16.msra.mxu0 0
        %2555 = vmatprep.subr.bf16.mxu0 0
        %2556 = vmatpush1.bf16.msra.mxu0 0
        %2557 = vmatprep.subr.bf16.mxu0 0
        %2558 = vmatpush1.bf16.msra.mxu0 0
        %2559 = vmatprep.subr.bf16.mxu0 0
        %2560 = vmatpush1.bf16.msra.mxu0 0
        %2561 = vmatprep.subr.bf16.mxu0 0
        %2562 = vmatpush1.bf16.msra.mxu0 0
        %2563 = vmatprep.subr.bf16.mxu0 0
        %2564 = vmatpush1.bf16.msra.mxu0 0
        %2565 = vmatprep.subr.bf16.mxu0 0
        %2566 = vmatpush1.bf16.msra.mxu0 0
        %2567 = vmatprep.subr.bf16.mxu0 0
        %2568 = vmatpush1.bf16.msra.mxu0 0
        %2569 = vmatprep.subr.bf16.mxu0 0
        %2570 = vmatpush1.bf16.msra.mxu0 0
        %2571 = vmatprep.subr.bf16.mxu0 0
        %2572 = vmatpush1.bf16.msra.mxu0 0
        %2573 = vmatprep.subr.bf16.mxu0 0
        %2574 = vmatpush1.bf16.msra.mxu0 0
        %2575 = vmatprep.mubr.bf16.mxu0 0
        %2576 = vmatmul.mubr.bf16.gmra.mrb[0].mxu0 %v2538
        %v2577 = vpop.f32.mrb[0].mxu0
        %v2578 = vadd.f32 0.0, %v2577
        %v2579 = vpop.f32.mrb[0].mxu0
        %v2580 = vpop.f32.mrb[0].mxu0
        %v2581 = vpop.f32.mrb[0].mxu0
        %2582 = vdwg.mxu0
        %v2584 = vsel %vm2207, %v2439, 0
        %v2587 = vsel %vm2447, %v2443, 0
        %2589 = vmatprep.subr.bf16.mxu0 0
        %2590 = vmatpush1.bf16.msra.mxu0 %v2587
        %2591 = vmatprep.subr.bf16.mxu0 0
        %2592 = vmatpush1.bf16.msra.mxu0 0
        %2593 = vmatprep.subr.bf16.mxu0 0
        %2594 = vmatpush1.bf16.msra.mxu0 0
        %2595 = vmatprep.subr.bf16.mxu0 0
        %2596 = vmatpush1.bf16.msra.mxu0 0
        %2597 = vmatprep.subr.bf16.mxu0 0
        %2598 = vmatpush1.bf16.msra.mxu0 0
        %2599 = vmatprep.subr.bf16.mxu0 0
        %2600 = vmatpush1.bf16.msra.mxu0 0
        %2601 = vmatprep.subr.bf16.mxu0 0
        %2602 = vmatpush1.bf16.msra.mxu0 0
        %2603 = vmatprep.subr.bf16.mxu0 0
        %2604 = vmatpush1.bf16.msra.mxu0 0
        %2605 = vmatprep.subr.bf16.mxu0 0
        %2606 = vmatpush1.bf16.msra.mxu0 0
        %2607 = vmatprep.subr.bf16.mxu0 0
        %2608 = vmatpush1.bf16.msra.mxu0 0
        %2609 = vmatprep.subr.bf16.mxu0 0
        %2610 = vmatpush1.bf16.msra.mxu0 0
        %2611 = vmatprep.subr.bf16.mxu0 0
        %2612 = vmatpush1.bf16.msra.mxu0 0
        %2613 = vmatprep.subr.bf16.mxu0 0
        %2614 = vmatpush1.bf16.msra.mxu0 0
        %2615 = vmatprep.subr.bf16.mxu0 0
        %2616 = vmatpush1.bf16.msra.mxu0 0
        %2617 = vmatprep.subr.bf16.mxu0 0
        %2618 = vmatpush1.bf16.msra.mxu0 0
        %2619 = vmatprep.subr.bf16.mxu0 0
        %2620 = vmatpush1.bf16.msra.mxu0 0
        %2621 = vmatprep.mubr.bf16.mxu0 0
        %2622 = vmatmul.mubr.bf16.gmra.mrb[0].mxu0 %v2584
        %v2623 = vpop.f32.mrb[0].mxu0
        %v2624 = vadd.f32 0.0, %v2623
        %v2625 = vpop.f32.mrb[0].mxu0
        %v2626 = vpop.f32.mrb[0].mxu0
        %v2627 = vpop.f32.mrb[0].mxu0
        %2628 = vdwg.mxu0
        %v2629 = vpack.c.bf16 %v2486, %v2486
        %v2630 = vpack.c.bf16 %v2532, %v2532
        %v2631 = vpack.c.bf16 %v2578, %v2578
        %v2632 = vpack.c.bf16 %v2624, %v2624
        %v2633 = vld [vmem:[#allocation16] sm:$0xf]
        %v2634 = vld [vmem:[#allocation16 + $0x4] sm:$0xf]
        %v2635 = vld [vmem:[#allocation16 + $0x8] sm:$0xf]
        %v2636 = vld [vmem:[#allocation16 + $0xc] sm:$0xf]
        %v2638 = vsel %vm2207, %v2629, 0
        %v2641 = vsel %vm2447, %v2633, 0
        %2643 = vmatprep.subr.bf16.mxu0 0
        %2644 = vmatpush1.bf16.msra.mxu0 %v2641
        %2645 = vmatprep.subr.bf16.mxu0 0
        %2646 = vmatpush1.bf16.msra.mxu0 0
        %2647 = vmatprep.subr.bf16.mxu0 0
        %2648 = vmatpush1.bf16.msra.mxu0 0
        %2649 = vmatprep.subr.bf16.mxu0 0
        %2650 = vmatpush1.bf16.msra.mxu0 0
        %2651 = vmatprep.subr.bf16.mxu0 0
        %2652 = vmatpush1.bf16.msra.mxu0 0
        %2653 = vmatprep.subr.bf16.mxu0 0
        %2654 = vmatpush1.bf16.msra.mxu0 0
        %2655 = vmatprep.subr.bf16.mxu0 0
        %2656 = vmatpush1.bf16.msra.mxu0 0
        %2657 = vmatprep.subr.bf16.mxu0 0
        %2658 = vmatpush1.bf16.msra.mxu0 0
        %2659 = vmatprep.subr.bf16.mxu0 0
        %2660 = vmatpush1.bf16.msra.mxu0 0
        %2661 = vmatprep.subr.bf16.mxu0 0
        %2662 = vmatpush1.bf16.msra.mxu0 0
        %2663 = vmatprep.subr.bf16.mxu0 0
        %2664 = vmatpush1.bf16.msra.mxu0 0
        %2665 = vmatprep.subr.bf16.mxu0 0
        %2666 = vmatpush1.bf16.msra.mxu0 0
        %2667 = vmatprep.subr.bf16.mxu0 0
        %2668 = vmatpush1.bf16.msra.mxu0 0
        %2669 = vmatprep.subr.bf16.mxu0 0
        %2670 = vmatpush1.bf16.msra.mxu0 0
        %2671 = vmatprep.subr.bf16.mxu0 0
        %2672 = vmatpush1.bf16.msra.mxu0 0
        %2673 = vmatprep.subr.bf16.mxu0 0
        %2674 = vmatpush1.bf16.msra.mxu0 0
        %2675 = vmatprep.mubr.bf16.mxu0 0
        %2676 = vmatmul.mubr.bf16.gmra.mrb[0].mxu0 %v2638
        %v2677 = vpop.f32.mrb[0].mxu0
        %v2678 = vadd.f32 0.0, %v2677
        %v2679 = vpop.f32.mrb[0].mxu0
        %v2680 = vpop.f32.mrb[0].mxu0
        %v2681 = vpop.f32.mrb[0].mxu0
        %2682 = vdwg.mxu0
        %v2684 = vsel %vm2207, %v2630, 0
        %v2687 = vsel %vm2447, %v2634, 0
        %2689 = vmatprep.subr.bf16.mxu0 0
        %2690 = vmatpush1.bf16.msra.mxu0 %v2687
        %2691 = vmatprep.subr.bf16.mxu0 0
        %2692 = vmatpush1.bf16.msra.mxu0 0
        %2693 = vmatprep.subr.bf16.mxu0 0
        %2694 = vmatpush1.bf16.msra.mxu0 0
        %2695 = vmatprep.subr.bf16.mxu0 0
        %2696 = vmatpush1.bf16.msra.mxu0 0
        %2697 = vmatprep.subr.bf16.mxu0 0
        %2698 = vmatpush1.bf16.msra.mxu0 0
        %2699 = vmatprep.subr.bf16.mxu0 0
        %2700 = vmatpush1.bf16.msra.mxu0 0
        %2701 = vmatprep.subr.bf16.mxu0 0
        %2702 = vmatpush1.bf16.msra.mxu0 0
        %2703 = vmatprep.subr.bf16.mxu0 0
        %2704 = vmatpush1.bf16.msra.mxu0 0
        %2705 = vmatprep.subr.bf16.mxu0 0
        %2706 = vmatpush1.bf16.msra.mxu0 0
        %2707 = vmatprep.subr.bf16.mxu0 0
        %2708 = vmatpush1.bf16.msra.mxu0 0
        %2709 = vmatprep.subr.bf16.mxu0 0
        %2710 = vmatpush1.bf16.msra.mxu0 0
        %2711 = vmatprep.subr.bf16.mxu0 0
        %2712 = vmatpush1.bf16.msra.mxu0 0
        %2713 = vmatprep.subr.bf16.mxu0 0
        %2714 = vmatpush1.bf16.msra.mxu0 0
        %2715 = vmatprep.subr.bf16.mxu0 0
        %2716 = vmatpush1.bf16.msra.mxu0 0
        %2717 = vmatprep.subr.bf16.mxu0 0
        %2718 = vmatpush1.bf16.msra.mxu0 0
        %2719 = vmatprep.subr.bf16.mxu0 0
        %2720 = vmatpush1.bf16.msra.mxu0 0
        %2721 = vmatprep.mubr.bf16.mxu0 0
        %2722 = vmatmul.mubr.bf16.gmra.mrb[0].mxu0 %v2684
        %v2723 = vpop.f32.mrb[0].mxu0
        %v2724 = vadd.f32 0.0, %v2723
        %v2725 = vpop.f32.mrb[0].mxu0
        %v2726 = vpop.f32.mrb[0].mxu0
        %v2727 = vpop.f32.mrb[0].mxu0
        %2728 = vdwg.mxu0
        %v2730 = vsel %vm2207, %v2631, 0
        %v2733 = vsel %vm2447, %v2635, 0
        %2735 = vmatprep.subr.bf16.mxu0 0
        %2736 = vmatpush1.bf16.msra.mxu0 %v2733
        %2737 = vmatprep.subr.bf16.mxu0 0
        %2738 = vmatpush1.bf16.msra.mxu0 0
        %2739 = vmatprep.subr.bf16.mxu0 0
        %2740 = vmatpush1.bf16.msra.mxu0 0
        %2741 = vmatprep.subr.bf16.mxu0 0
        %2742 = vmatpush1.bf16.msra.mxu0 0
        %2743 = vmatprep.subr.bf16.mxu0 0
        %2744 = vmatpush1.bf16.msra.mxu0 0
        %2745 = vmatprep.subr.bf16.mxu0 0
        %2746 = vmatpush1.bf16.msra.mxu0 0
        %2747 = vmatprep.subr.bf16.mxu0 0
        %2748 = vmatpush1.bf16.msra.mxu0 0
        %2749 = vmatprep.subr.bf16.mxu0 0
        %2750 = vmatpush1.bf16.msra.mxu0 0
        %2751 = vmatprep.subr.bf16.mxu0 0
        %2752 = vmatpush1.bf16.msra.mxu0 0
        %2753 = vmatprep.subr.bf16.mxu0 0
        %2754 = vmatpush1.bf16.msra.mxu0 0
        %2755 = vmatprep.subr.bf16.mxu0 0
        %2756 = vmatpush1.bf16.msra.mxu0 0
        %2757 = vmatprep.subr.bf16.mxu0 0
        %2758 = vmatpush1.bf16.msra.mxu0 0
        %2759 = vmatprep.subr.bf16.mxu0 0
        %2760 = vmatpush1.bf16.msra.mxu0 0
        %2761 = vmatprep.subr.bf16.mxu0 0
        %2762 = vmatpush1.bf16.msra.mxu0 0
        %2763 = vmatprep.subr.bf16.mxu0 0
        %2764 = vmatpush1.bf16.msra.mxu0 0
        %2765 = vmatprep.subr.bf16.mxu0 0
        %2766 = vmatpush1.bf16.msra.mxu0 0
        %2767 = vmatprep.mubr.bf16.mxu0 0
        %2768 = vmatmul.mubr.bf16.gmra.mrb[0].mxu0 %v2730
        %v2769 = vpop.f32.mrb[0].mxu0
        %v2770 = vadd.f32 0.0, %v2769
        %v2771 = vpop.f32.mrb[0].mxu0
        %v2772 = vpop.f32.mrb[0].mxu0
        %v2773 = vpop.f32.mrb[0].mxu0
        %2774 = vdwg.mxu0
        %v2776 = vsel %vm2207, %v2632, 0
        %v2779 = vsel %vm2447, %v2636, 0
        %2781 = vmatprep.subr.bf16.mxu0 0
        %2782 = vmatpush1.bf16.msra.mxu0 %v2779
        %2783 = vmatprep.subr.bf16.mxu0 0
        %2784 = vmatpush1.bf16.msra.mxu0 0
        %2785 = vmatprep.subr.bf16.mxu0 0
        %2786 = vmatpush1.bf16.msra.mxu0 0
        %2787 = vmatprep.subr.bf16.mxu0 0
        %2788 = vmatpush1.bf16.msra.mxu0 0
        %2789 = vmatprep.subr.bf16.mxu0 0
        %2790 = vmatpush1.bf16.msra.mxu0 0
        %2791 = vmatprep.subr.bf16.mxu0 0
        %2792 = vmatpush1.bf16.msra.mxu0 0
        %2793 = vmatprep.subr.bf16.mxu0 0
        %2794 = vmatpush1.bf16.msra.mxu0 0
        %2795 = vmatprep.subr.bf16.mxu0 0
        %2796 = vmatpush1.bf16.msra.mxu0 0
        %2797 = vmatprep.subr.bf16.mxu0 0
        %2798 = vmatpush1.bf16.msra.mxu0 0
        %2799 = vmatprep.subr.bf16.mxu0 0
        %2800 = vmatpush1.bf16.msra.mxu0 0
        %2801 = vmatprep.subr.bf16.mxu0 0
        %2802 = vmatpush1.bf16.msra.mxu0 0
        %2803 = vmatprep.subr.bf16.mxu0 0
        %2804 = vmatpush1.bf16.msra.mxu0 0
        %2805 = vmatprep.subr.bf16.mxu0 0
        %2806 = vmatpush1.bf16.msra.mxu0 0
        %2807 = vmatprep.subr.bf16.mxu0 0
        %2808 = vmatpush1.bf16.msra.mxu0 0
        %2809 = vmatprep.subr.bf16.mxu0 0
        %2810 = vmatpush1.bf16.msra.mxu0 0
        %2811 = vmatprep.subr.bf16.mxu0 0
        %2812 = vmatpush1.bf16.msra.mxu0 0
        %2813 = vmatprep.mubr.bf16.mxu0 0
        %2814 = vmatmul.mubr.bf16.gmra.mrb[0].mxu0 %v2776
        %v2815 = vpop.f32.mrb[0].mxu0
        %v2816 = vadd.f32 0.0, %v2815
        %v2817 = vpop.f32.mrb[0].mxu0
        %v2818 = vpop.f32.mrb[0].mxu0
        %v2819 = vpop.f32.mrb[0].mxu0
        %2820 = vdwg.mxu0
        %v2821 = vsel %vm1491, %v2678, 0.0
        %v2822 = vsel %vm1491, %v2724, 0.0
        %v2823 = vadd.f32 %v2821, %v2822
        %v2824 = vsel %vm1491, %v2770, 0.0
        %v2825 = vadd.f32 %v2823, %v2824
        %v2826 = vsel %vm1491, %v2816, 0.0
        %v2827 = vadd.f32 %v2825, %v2826
        %v2828 = vld [vmem:[#allocation18] sm:$0x1]
        %v2830 = vlaneseq
        %v2831 = vshrl.u32 %v2830, 7
        %v2832 = vsub.s32 0, %v2831
        %v2833 = vrot.slane %v2828, %v2832
        %v2835 = vadd.f32 %v2827, %v2833
        %v2836 = vadd.f32 %v2835, %v1433
        %v2837 = vld [vmem:[#allocation19] sm:$0x1]
        %v2838 = vld [vmem:[#allocation21] sm:$0x1]
        %v2839 = vsel %vm1491, %v2836, 0.0
        %2840 = vadd.xlane.f32.xlu0 %v2839
        %v2841 = vpop.xlane.xlu0 %2840
        %v2842 = vrcp.pop 32.0
        %v2843 = vmul.f32 %v2841, %v2842
        %v2844 = vsub.f32 %v2836, %v2843
        %v2845 = vmul.f32 %v2844, %v2844
        %v2846 = vsel %vm1491, %v2845, 0.0
        %2847 = vadd.xlane.f32.xlu0 %v2846
        %v2848 = vpop.xlane.xlu0 %2847
        %v2849 = vmul.f32 %v2848, %v2842
        %v2850 = vadd.f32 %v2849, 1e-05
        %v2851 = vrsqrt.pop %v2850
        %v2852 = vmul.f32 %v2844, %v2851
        %v2854 = vlaneseq
        %v2855 = vshrl.u32 %v2854, 7
        %v2856 = vsub.s32 0, %v2855
        %v2857 = vrot.slane %v2837, %v2856
        %v2859 = vmul.f32 %v2852, %v2857
        %v2861 = vlaneseq
        %v2862 = vshrl.u32 %v2861, 7
        %v2863 = vsub.s32 0, %v2862
        %v2864 = vrot.slane %v2838, %v2863
        %v2866 = vadd.f32 %v2859, %v2864
        %v2867 = vpack.c.bf16 %v2866, %v2866
        %v2868 = vld [vmem:[#allocation22] sm:$0xf]
        %v2869 = vld [vmem:[#allocation22 + $0x4] sm:$0xf]
        %v2870 = vld [vmem:[#allocation22 + $0x8] sm:$0xf]
        %v2871 = vld [vmem:[#allocation22 + $0xc] sm:$0xf]
        %v2872 = vld [vmem:[#allocation24] sm:$0x1]
        %v2874 = vlaneseq
        %v2875 = vshrl.u32 %v2874, 7
        %v2876 = vsub.s32 0, %v2875
        %v2877 = vrot.slane %v2872, %v2876
        %v2883 = vunpack.c.l.b16 %v2868
        %v2884 = vunpack.c.l.b16 %v2869
        %v2885 = vunpack.c.l.b16 %v2870
        %v2886 = vunpack.c.l.b16 %v2871
        %v2887 = vpack.c.b16 %v2884, %v2883
        %v2888 = vpack.c.b16 %v2886, %v2885
        %v2892 = vsel %vm1491, %v2867, 0
        %2894 = vmatprep.subr.bf16.mxu0 0
        %2895 = vmatpush1.bf16.msra.mxu0 %v2887
        %2896 = vmatprep.subr.bf16.mxu0 0
        %2897 = vmatpush1.bf16.msra.mxu0 %v2888
        %2898 = vmatprep.subr.bf16.mxu0 0
        %2899 = vmatpush1.bf16.msra.mxu0 0
        %2900 = vmatprep.subr.bf16.mxu0 0
        %2901 = vmatpush1.bf16.msra.mxu0 0
        %2902 = vmatprep.subr.bf16.mxu0 0
        %2903 = vmatpush1.bf16.msra.mxu0 0
        %2904 = vmatprep.subr.bf16.mxu0 0
        %2905 = vmatpush1.bf16.msra.mxu0 0
        %2906 = vmatprep.subr.bf16.mxu0 0
        %2907 = vmatpush1.bf16.msra.mxu0 0
        %2908 = vmatprep.subr.bf16.mxu0 0
        %2909 = vmatpush1.bf16.msra.mxu0 0
        %2910 = vmatprep.subr.bf16.mxu0 0
        %2911 = vmatpush1.bf16.msra.mxu0 0
        %2912 = vmatprep.subr.bf16.mxu0 0
        %2913 = vmatpush1.bf16.msra.mxu0 0
        %2914 = vmatprep.subr.bf16.mxu0 0
        %2915 = vmatpush1.bf16.msra.mxu0 0
        %2916 = vmatprep.subr.bf16.mxu0 0
        %2917 = vmatpush1.bf16.msra.mxu0 0
        %2918 = vmatprep.subr.bf16.mxu0 0
        %2919 = vmatpush1.bf16.msra.mxu0 0
        %2920 = vmatprep.subr.bf16.mxu0 0
        %2921 = vmatpush1.bf16.msra.mxu0 0
        %2922 = vmatprep.subr.bf16.mxu0 0
        %2923 = vmatpush1.bf16.msra.mxu0 0
        %2924 = vmatprep.subr.bf16.mxu0 0
        %2925 = vmatpush1.bf16.msra.mxu0 0
        %2926 = vmatprep.mubr.bf16.mxu0 0
        %2927 = vmatmul.mubr.bf16.gmra.mrb[0].mxu0 %v2892
        %v2928 = vpop.f32.mrb[0].mxu0
        %v2929 = vadd.f32 %v2877, %v2928
        %v2930 = vpop.f32.mrb[0].mxu0
        %v2931 = vpop.f32.mrb[0].mxu0
        %v2932 = vpop.f32.mrb[0].mxu0
        %2933 = vdwg.mxu0
        %v2934 = vld [vmem:[#allocation25] sm:$0x1]
        %v2935 = vld [vmem:[#allocation27] sm:$0x1]
        %2936 = vadd.xlane.f32.xlu0 %v2929
        %v2937 = vpop.xlane.xlu0 %2936
        %v2938 = vrcp.pop 128.0
        %v2939 = vmul.f32 %v2937, %v2938
        %v2940 = vsub.f32 %v2929, %v2939
        %v2941 = vmul.f32 %v2940, %v2940
        %2942 = vadd.xlane.f32.xlu0 %v2941
        %v2943 = vpop.xlane.xlu0 %2942
        %v2944 = vmul.f32 %v2943, %v2938
        %v2945 = vadd.f32 %v2944, 1e-05
        %v2946 = vrsqrt.pop %v2945
        %v2947 = vmul.f32 %v2940, %v2946
        %v2949 = vlaneseq
        %v2950 = vshrl.u32 %v2949, 7
        %v2951 = vsub.s32 0, %v2950
        %v2952 = vrot.slane %v2934, %v2951
        %v2954 = vmul.f32 %v2947, %v2952
        %v2956 = vlaneseq
        %v2957 = vshrl.u32 %v2956, 7
        %v2958 = vsub.s32 0, %v2957
        %v2959 = vrot.slane %v2935, %v2958
        %v2961 = vadd.f32 %v2954, %v2959
        %v2962 = vmul.f32 %v2961, 1.442695
        %v2963 = vpow.pop %v2962
        %v2964 = vadd.f32 %v2963, 1.0
        %v2965 = vmul.f32 %v2964, %v2964
        %v2966 = vadd.f32 %v2965, 1.0
        %v2967 = vrcp.pop %v2966
        %v2968 = vmul.f32 %v2967, 2.0
        %v2969 = vsub.f32 1.0, %v2968
        %v2970 = vmul.f32 %v2961, %v2969
        %v2971 = vpack.c.bf16 %v2970, %v2970
        %v2972 = vld [vmem:[#allocation28] sm:$0xf]
        %v2973 = vld [vmem:[#allocation28 + $0x4] sm:$0xf]
        %v2974 = vld [vmem:[#allocation28 + $0x8] sm:$0xf]
        %v2975 = vld [vmem:[#allocation28 + $0xc] sm:$0xf]
        %v2976 = vld [vmem:[#allocation28 + $0x10] sm:$0xf]
        %v2977 = vld [vmem:[#allocation28 + $0x14] sm:$0xf]
        %v2978 = vld [vmem:[#allocation28 + $0x18] sm:$0xf]
        %v2979 = vld [vmem:[#allocation28 + $0x1c] sm:$0xf]
        %v2980 = vld [vmem:[#allocation28 + $0x20] sm:$0xf]
        %v2981 = vld [vmem:[#allocation28 + $0x24] sm:$0xf]
        %v2982 = vld [vmem:[#allocation28 + $0x28] sm:$0xf]
        %v2983 = vld [vmem:[#allocation28 + $0x2c] sm:$0xf]
        %v2984 = vld [vmem:[#allocation28 + $0x30] sm:$0xf]
        %v2985 = vld [vmem:[#allocation28 + $0x34] sm:$0xf]
        %v2986 = vld [vmem:[#allocation28 + $0x38] sm:$0xf]
        %v2987 = vld [vmem:[#allocation28 + $0x3c] sm:$0xf]
        %v2988 = vld [vmem:[#allocation30] sm:$0x1]
        %v2990 = vlaneseq
        %v2991 = vshrl.u32 %v2990, 7
        %v2992 = vsub.s32 0, %v2991
        %v2993 = vrot.slane %v2988, %v2992
        %v3011 = vunpack.c.l.b16 %v2972
        %v3012 = vunpack.c.l.b16 %v2973
        %v3013 = vunpack.c.l.b16 %v2974
        %v3014 = vunpack.c.l.b16 %v2975
        %v3015 = vunpack.c.l.b16 %v2976
        %v3016 = vunpack.c.l.b16 %v2977
        %v3017 = vunpack.c.l.b16 %v2978
        %v3018 = vunpack.c.l.b16 %v2979
        %v3019 = vunpack.c.l.b16 %v2980
        %v3020 = vunpack.c.l.b16 %v2981
        %v3021 = vunpack.c.l.b16 %v2982
        %v3022 = vunpack.c.l.b16 %v2983
        %v3023 = vunpack.c.l.b16 %v2984
        %v3024 = vunpack.c.l.b16 %v2985
        %v3025 = vunpack.c.l.b16 %v2986
        %v3026 = vunpack.c.l.b16 %v2987
        %v3027 = vpack.c.b16 %v3012, %v3011
        %v3028 = vpack.c.b16 %v3014, %v3013
        %v3029 = vpack.c.b16 %v3016, %v3015
        %v3030 = vpack.c.b16 %v3018, %v3017
        %v3031 = vpack.c.b16 %v3020, %v3019
        %v3032 = vpack.c.b16 %v3022, %v3021
        %v3033 = vpack.c.b16 %v3024, %v3023
        %v3034 = vpack.c.b16 %v3026, %v3025
        %3043 = vmatprep.subr.bf16.mxu0 0
        %3044 = vmatpush1.bf16.msra.mxu0 %v3027
        %3045 = vmatprep.subr.bf16.mxu0 0
        %3046 = vmatpush1.bf16.msra.mxu0 %v3028
        %3047 = vmatprep.subr.bf16.mxu0 0
        %3048 = vmatpush1.bf16.msra.mxu0 %v3029
        %3049 = vmatprep.subr.bf16.mxu0 0
        %3050 = vmatpush1.bf16.msra.mxu0 %v3030
        %3051 = vmatprep.subr.bf16.mxu0 0
        %3052 = vmatpush1.bf16.msra.mxu0 %v3031
        %3053 = vmatprep.subr.bf16.mxu0 0
        %3054 = vmatpush1.bf16.msra.mxu0 %v3032
        %3055 = vmatprep.subr.bf16.mxu0 0
        %3056 = vmatpush1.bf16.msra.mxu0 %v3033
        %3057 = vmatprep.subr.bf16.mxu0 0
        %3058 = vmatpush1.bf16.msra.mxu0 %v3034
        %3059 = vmatprep.subr.bf16.mxu0 0
        %3060 = vmatpush1.bf16.msra.mxu0 0
        %3061 = vmatprep.subr.bf16.mxu0 0
        %3062 = vmatpush1.bf16.msra.mxu0 0
        %3063 = vmatprep.subr.bf16.mxu0 0
        %3064 = vmatpush1.bf16.msra.mxu0 0
        %3065 = vmatprep.subr.bf16.mxu0 0
        %3066 = vmatpush1.bf16.msra.mxu0 0
        %3067 = vmatprep.subr.bf16.mxu0 0
        %3068 = vmatpush1.bf16.msra.mxu0 0
        %3069 = vmatprep.subr.bf16.mxu0 0
        %3070 = vmatpush1.bf16.msra.mxu0 0
        %3071 = vmatprep.subr.bf16.mxu0 0
        %3072 = vmatpush1.bf16.msra.mxu0 0
        %3073 = vmatprep.subr.bf16.mxu0 0
        %3074 = vmatpush1.bf16.msra.mxu0 0
        %3075 = vmatprep.mubr.bf16.mxu0 0
        %3076 = vmatmul.mubr.bf16.gmra.mrb[0].mxu0 %v2971
        %v3077 = vpop.f32.mrb[0].mxu0
        %v3078 = vadd.f32 %v2993, %v3077
        %v3079 = vpop.f32.mrb[0].mxu0
        %v3080 = vpop.f32.mrb[0].mxu0
        %v3081 = vpop.f32.mrb[0].mxu0
        %3082 = vdwg.mxu0
        %v3083 = vmul.f32 %v3078, 1.442695
        %v3084 = vpow.pop %v3083
        %v3085 = vadd.f32 %v3084, 1.0
        %v3086 = vmul.f32 %v3085, %v3085
        %v3087 = vadd.f32 %v3086, 1.0
        %v3088 = vrcp.pop %v3087
        %v3089 = vmul.f32 %v3088, 2.0
        %v3090 = vsub.f32 1.0, %v3089
        %v3091 = vmul.f32 %v3078, %v3090
        %v3092 = vadd.f32 %v3091, %v2866
        %v3093 = vld [vmem:[#allocation31] sm:$0x1]
        %v3094 = vld [vmem:[#allocation33] sm:$0x1]
        %v3095 = vsel %vm1491, %v3092, 0.0
        %3096 = vadd.xlane.f32.xlu0 %v3095
        %v3097 = vpop.xlane.xlu0 %3096
        %v3098 = vmul.f32 %v3097, %v2842
        %v3099 = vsub.f32 %v3092, %v3098
        %v3100 = vmul.f32 %v3099, %v3099
        %v3101 = vsel %vm1491, %v3100, 0.0
        %3102 = vadd.xlane.f32.xlu0 %v3101
        %v3103 = vpop.xlane.xlu0 %3102
        %v3104 = vmul.f32 %v3103, %v2842
        %v3105 = vadd.f32 %v3104, 1e-05
        %v3106 = vrsqrt.pop %v3105
        %v3107 = vmul.f32 %v3099, %v3106
        %v3109 = vlaneseq
        %v3110 = vshrl.u32 %v3109, 7
        %v3111 = vsub.s32 0, %v3110
        %v3112 = vrot.slane %v3093, %v3111
        %v3114 = vmul.f32 %v3107, %v3112
        %v3116 = vlaneseq
        %v3117 = vshrl.u32 %v3116, 7
        %v3118 = vsub.s32 0, %v3117
        %v3119 = vrot.slane %v3094, %v3118
        %v3121 = vadd.f32 %v3114, %v3119
        %v3122 = vld [vmem:[#allocation34] sm:$0xf]
        %v3123 = vld [vmem:[#allocation34 + $0x4] sm:$0xf]
        %v3124 = vld [vmem:[#allocation34 + $0x8] sm:$0xf]
        %v3125 = vld [vmem:[#allocation34 + $0xc] sm:$0xf]
        %v3126 = vld [vmem:[#allocation36] sm:$0x1]
        %v3128 = vlaneseq
        %v3129 = vshrl.u32 %v3128, 7
        %v3130 = vsub.s32 0, %v3129
        %v3131 = vrot.slane %v3126, %v3130
        %v3137 = vunpack.c.l.b16 %v3122
        %v3138 = vunpack.c.l.b16 %v3123
        %v3139 = vunpack.c.l.b16 %v3124
        %v3140 = vunpack.c.l.b16 %v3125
        %v3141 = vpack.c.b16 %v3138, %v3137
        %v3142 = vpack.c.b16 %v3140, %v3139
        %3145 = vmatprep.subr.bf16.mxu0 0
        %3146 = vmatpush1.bf16.msra.mxu0 %v3141
        %3147 = vmatprep.subr.bf16.mxu0 0
        %3148 = vmatpush1.bf16.msra.mxu0 %v3142
        %3149 = vmatprep.subr.bf16.mxu0 0
        %3150 = vmatpush1.bf16.msra.mxu0 0
        %3151 = vmatprep.subr.bf16.mxu0 0
        %3152 = vmatpush1.bf16.msra.mxu0 0
        %3153 = vmatprep.subr.bf16.mxu0 0
        %3154 = vmatpush1.bf16.msra.mxu0 0
        %3155 = vmatprep.subr.bf16.mxu0 0
        %3156 = vmatpush1.bf16.msra.mxu0 0
        %3157 = vmatprep.subr.bf16.mxu0 0
        %3158 = vmatpush1.bf16.msra.mxu0 0
        %3159 = vmatprep.subr.bf16.mxu0 0
        %3160 = vmatpush1.bf16.msra.mxu0 0
        %3161 = vmatprep.subr.bf16.mxu0 0
        %3162 = vmatpush1.bf16.msra.mxu0 0
        %3163 = vmatprep.subr.bf16.mxu0 0
        %3164 = vmatpush1.bf16.msra.mxu0 0
        %3165 = vmatprep.subr.bf16.mxu0 0
        %3166 = vmatpush1.bf16.msra.mxu0 0
        %3167 = vmatprep.subr.bf16.mxu0 0
        %3168 = vmatpush1.bf16.msra.mxu0 0
        %3169 = vmatprep.subr.bf16.mxu0 0
        %3170 = vmatpush1.bf16.msra.mxu0 0
        %3171 = vmatprep.subr.bf16.mxu0 0
        %3172 = vmatpush1.bf16.msra.mxu0 0
        %3173 = vmatprep.subr.bf16.mxu0 0
        %3174 = vmatpush1.bf16.msra.mxu0 0
        %3175 = vmatprep.subr.bf16.mxu0 0
        %3176 = vmatpush1.bf16.msra.mxu0 0
        %3177 = vmatprep.mubr.bf16.mxu0 0
        %3178 = vmatmul.mubr.bf16.gmra.mrb[0].mxu0 %v1493
        %v3179 = vpop.f32.mrb[0].mxu0
        %v3180 = vadd.f32 %v3131, %v3179
        %v3181 = vpop.f32.mrb[0].mxu0
        %v3182 = vpop.f32.mrb[0].mxu0
        %v3183 = vpop.f32.mrb[0].mxu0
        %3184 = vdwg.mxu0
        %v3185 = vld [vmem:[#allocation37] sm:$0x1]
        %v3186 = vld [vmem:[#allocation39] sm:$0x1]
        %3187 = vadd.xlane.f32.xlu0 %v3180
        %v3188 = vpop.xlane.xlu0 %3187
        %v3189 = vmul.f32 %v3188, %v2938
        %v3190 = vsub.f32 %v3180, %v3189
        %v3191 = vmul.f32 %v3190, %v3190
        %3192 = vadd.xlane.f32.xlu0 %v3191
        %v3193 = vpop.xlane.xlu0 %3192
        %v3194 = vmul.f32 %v3193, %v2938
        %v3195 = vadd.f32 %v3194, 1e-05
        %v3196 = vrsqrt.pop %v3195
        %v3197 = vmul.f32 %v3190, %v3196
        %v3199 = vlaneseq
        %v3200 = vshrl.u32 %v3199, 7
        %v3201 = vsub.s32 0, %v3200
        %v3202 = vrot.slane %v3185, %v3201
        %v3204 = vmul.f32 %v3197, %v3202
        %v3206 = vlaneseq
        %v3207 = vshrl.u32 %v3206, 7
        %v3208 = vsub.s32 0, %v3207
        %v3209 = vrot.slane %v3186, %v3208
        %v3211 = vadd.f32 %v3204, %v3209
        %v3212 = vmul.f32 %v3211, 1.442695
        %v3213 = vpow.pop %v3212
        %v3214 = vadd.f32 %v3213, 1.0
        %v3215 = vmul.f32 %v3214, %v3214
        %v3216 = vadd.f32 %v3215, 1.0
        %v3217 = vrcp.pop %v3216
        %v3218 = vmul.f32 %v3217, 2.0
        %v3219 = vsub.f32 1.0, %v3218
        %v3220 = vmul.f32 %v3211, %v3219
        %v3221 = vpack.c.bf16 %v3220, %v3220
        %v3222 = vld [vmem:[#allocation40] sm:$0xf]
        %v3223 = vld [vmem:[#allocation40 + $0x4] sm:$0xf]
        %v3224 = vld [vmem:[#allocation40 + $0x8] sm:$0xf]
        %v3225 = vld [vmem:[#allocation40 + $0xc] sm:$0xf]
        %v3226 = vld [vmem:[#allocation40 + $0x10] sm:$0xf]
        %v3227 = vld [vmem:[#allocation40 + $0x14] sm:$0xf]
        %v3228 = vld [vmem:[#allocation40 + $0x18] sm:$0xf]
        %v3229 = vld [vmem:[#allocation40 + $0x1c] sm:$0xf]
        %v3230 = vld [vmem:[#allocation40 + $0x20] sm:$0xf]
        %v3231 = vld [vmem:[#allocation40 + $0x24] sm:$0xf]
        %v3232 = vld [vmem:[#allocation40 + $0x28] sm:$0xf]
        %v3233 = vld [vmem:[#allocation40 + $0x2c] sm:$0xf]
        %v3234 = vld [vmem:[#allocation40 + $0x30] sm:$0xf]
        %v3235 = vld [vmem:[#allocation40 + $0x34] sm:$0xf]
        %v3236 = vld [vmem:[#allocation40 + $0x38] sm:$0xf]
        %v3237 = vld [vmem:[#allocation40 + $0x3c] sm:$0xf]
        %v3238 = vld [vmem:[#allocation42] sm:$0x1]
        %v3240 = vlaneseq
        %v3241 = vshrl.u32 %v3240, 7
        %v3242 = vsub.s32 0, %v3241
        %v3243 = vrot.slane %v3238, %v3242
        %v3261 = vunpack.c.l.b16 %v3222
        %v3262 = vunpack.c.l.b16 %v3223
        %v3263 = vunpack.c.l.b16 %v3224
        %v3264 = vunpack.c.l.b16 %v3225
        %v3265 = vunpack.c.l.b16 %v3226
        %v3266 = vunpack.c.l.b16 %v3227
        %v3267 = vunpack.c.l.b16 %v3228
        %v3268 = vunpack.c.l.b16 %v3229
        %v3269 = vunpack.c.l.b16 %v3230
        %v3270 = vunpack.c.l.b16 %v3231
        %v3271 = vunpack.c.l.b16 %v3232
        %v3272 = vunpack.c.l.b16 %v3233
        %v3273 = vunpack.c.l.b16 %v3234
        %v3274 = vunpack.c.l.b16 %v3235
        %v3275 = vunpack.c.l.b16 %v3236
        %v3276 = vunpack.c.l.b16 %v3237
        %v3277 = vpack.c.b16 %v3262, %v3261
        %v3278 = vpack.c.b16 %v3264, %v3263
        %v3279 = vpack.c.b16 %v3266, %v3265
        %v3280 = vpack.c.b16 %v3268, %v3267
        %v3281 = vpack.c.b16 %v3270, %v3269
        %v3282 = vpack.c.b16 %v3272, %v3271
        %v3283 = vpack.c.b16 %v3274, %v3273
        %v3284 = vpack.c.b16 %v3276, %v3275
        %3293 = vmatprep.subr.bf16.mxu0 0
        %3294 = vmatpush1.bf16.msra.mxu0 %v3277
        %3295 = vmatprep.subr.bf16.mxu0 0
        %3296 = vmatpush1.bf16.msra.mxu0 %v3278
        %3297 = vmatprep.subr.bf16.mxu0 0
        %3298 = vmatpush1.bf16.msra.mxu0 %v3279
        %3299 = vmatprep.subr.bf16.mxu0 0
        %3300 = vmatpush1.bf16.msra.mxu0 %v3280
        %3301 = vmatprep.subr.bf16.mxu0 0
        %3302 = vmatpush1.bf16.msra.mxu0 %v3281
        %3303 = vmatprep.subr.bf16.mxu0 0
        %3304 = vmatpush1.bf16.msra.mxu0 %v3282
        %3305 = vmatprep.subr.bf16.mxu0 0
        %3306 = vmatpush1.bf16.msra.mxu0 %v3283
        %3307 = vmatprep.subr.bf16.mxu0 0
        %3308 = vmatpush1.bf16.msra.mxu0 %v3284
        %3309 = vmatprep.subr.bf16.mxu0 0
        %3310 = vmatpush1.bf16.msra.mxu0 0
        %3311 = vmatprep.subr.bf16.mxu0 0
        %3312 = vmatpush1.bf16.msra.mxu0 0
        %3313 = vmatprep.subr.bf16.mxu0 0
        %3314 = vmatpush1.bf16.msra.mxu0 0
        %3315 = vmatprep.subr.bf16.mxu0 0
        %3316 = vmatpush1.bf16.msra.mxu0 0
        %3317 = vmatprep.subr.bf16.mxu0 0
        %3318 = vmatpush1.bf16.msra.mxu0 0
        %3319 = vmatprep.subr.bf16.mxu0 0
        %3320 = vmatpush1.bf16.msra.mxu0 0
        %3321 = vmatprep.subr.bf16.mxu0 0
        %3322 = vmatpush1.bf16.msra.mxu0 0
        %3323 = vmatprep.subr.bf16.mxu0 0
        %3324 = vmatpush1.bf16.msra.mxu0 0
        %3325 = vmatprep.mubr.bf16.mxu0 0
        %3326 = vmatmul.mubr.bf16.gmra.mrb[0].mxu0 %v3221
        %v3327 = vpop.f32.mrb[0].mxu0
        %v3328 = vadd.f32 %v3243, %v3327
        %v3329 = vpop.f32.mrb[0].mxu0
        %v3330 = vpop.f32.mrb[0].mxu0
        %v3331 = vpop.f32.mrb[0].mxu0
        %3332 = vdwg.mxu0
        %v3333 = vmul.f32 %v3328, 1.442695
        %v3334 = vpow.pop %v3333
        %v3335 = vadd.f32 %v3334, 1.0
        %v3336 = vmul.f32 %v3335, %v3335
        %v3337 = vadd.f32 %v3336, 1.0
        %v3338 = vrcp.pop %v3337
        %v3339 = vmul.f32 %v3338, 2.0
        %v3340 = vsub.f32 1.0, %v3339
        %v3341 = vmul.f32 %v3328, %v3340
        %v3342 = vadd.f32 %v3341, %v1433
        %v3343 = vld [vmem:[#allocation43] sm:$0x1]
        %v3344 = vld [vmem:[#allocation45] sm:$0x1]
        %v3345 = vsel %vm1491, %v3342, 0.0
        %3346 = vadd.xlane.f32.xlu0 %v3345
        %v3347 = vpop.xlane.xlu0 %3346
        %v3348 = vmul.f32 %v3347, %v2842
        %v3349 = vsub.f32 %v3342, %v3348
        %v3350 = vmul.f32 %v3349, %v3349
        %v3351 = vsel %vm1491, %v3350, 0.0
        %3352 = vadd.xlane.f32.xlu0 %v3351
        %v3353 = vpop.xlane.xlu0 %3352
        %v3354 = vmul.f32 %v3353, %v2842
        %v3355 = vadd.f32 %v3354, 1e-05
        %v3356 = vrsqrt.pop %v3355
        %v3357 = vmul.f32 %v3349, %v3356
        %v3359 = vlaneseq
        %v3360 = vshrl.u32 %v3359, 7
        %v3361 = vsub.s32 0, %v3360
        %v3362 = vrot.slane %v3343, %v3361
        %v3364 = vmul.f32 %v3357, %v3362
        %v3366 = vlaneseq
        %v3367 = vshrl.u32 %v3366, 7
        %v3368 = vsub.s32 0, %v3367
        %v3369 = vrot.slane %v3344, %v3368
        %v3371 = vadd.f32 %v3364, %v3369
        %v3372 = vld [vmem:[#allocation46] sm:$0xf]
        %v3373 = vld [vmem:[#allocation46 + $0x4] sm:$0xf]
        %v3374 = vld [vmem:[#allocation46 + $0x8] sm:$0xf]
        %v3375 = vld [vmem:[#allocation46 + $0xc] sm:$0xf]
        %v3376 = vld [vmem:[#allocation48] sm:$0x1]
        %v3378 = vlaneseq
        %v3379 = vshrl.u32 %v3378, 7
        %v3380 = vsub.s32 0, %v3379
        %v3381 = vrot.slane %v3376, %v3380
        %v3387 = vunpack.c.l.b16 %v3372
        %v3388 = vunpack.c.l.b16 %v3373
        %v3389 = vunpack.c.l.b16 %v3374
        %v3390 = vunpack.c.l.b16 %v3375
        %v3391 = vpack.c.b16 %v3388, %v3387
        %v3392 = vpack.c.b16 %v3390, %v3389
        %3395 = vmatprep.subr.bf16.mxu0 0
        %3396 = vmatpush1.bf16.msra.mxu0 %v3391
        %3397 = vmatprep.subr.bf16.mxu0 0
        %3398 = vmatpush1.bf16.msra.mxu0 %v3392
        %3399 = vmatprep.subr.bf16.mxu0 0
        %3400 = vmatpush1.bf16.msra.mxu0 0
        %3401 = vmatprep.subr.bf16.mxu0 0
        %3402 = vmatpush1.bf16.msra.mxu0 0
        %3403 = vmatprep.subr.bf16.mxu0 0
        %3404 = vmatpush1.bf16.msra.mxu0 0
        %3405 = vmatprep.subr.bf16.mxu0 0
        %3406 = vmatpush1.bf16.msra.mxu0 0
        %3407 = vmatprep.subr.bf16.mxu0 0
        %3408 = vmatpush1.bf16.msra.mxu0 0
        %3409 = vmatprep.subr.bf16.mxu0 0
        %3410 = vmatpush1.bf16.msra.mxu0 0
        %3411 = vmatprep.subr.bf16.mxu0 0
        %3412 = vmatpush1.bf16.msra.mxu0 0
        %3413 = vmatprep.subr.bf16.mxu0 0
        %3414 = vmatpush1.bf16.msra.mxu0 0
        %3415 = vmatprep.subr.bf16.mxu0 0
        %3416 = vmatpush1.bf16.msra.mxu0 0
        %3417 = vmatprep.subr.bf16.mxu0 0
        %3418 = vmatpush1.bf16.msra.mxu0 0
        %3419 = vmatprep.subr.bf16.mxu0 0
        %3420 = vmatpush1.bf16.msra.mxu0 0
        %3421 = vmatprep.subr.bf16.mxu0 0
        %3422 = vmatpush1.bf16.msra.mxu0 0
        %3423 = vmatprep.subr.bf16.mxu0 0
        %3424 = vmatpush1.bf16.msra.mxu0 0
        %3425 = vmatprep.subr.bf16.mxu0 0
        %3426 = vmatpush1.bf16.msra.mxu0 0
        %3427 = vmatprep.mubr.bf16.mxu0 0
        %3428 = vmatmul.mubr.bf16.gmra.mrb[0].mxu0 %v1493
        %v3429 = vpop.f32.mrb[0].mxu0
        %v3430 = vadd.f32 %v3381, %v3429
        %v3431 = vpop.f32.mrb[0].mxu0
        %v3432 = vpop.f32.mrb[0].mxu0
        %v3433 = vpop.f32.mrb[0].mxu0
        %3434 = vdwg.mxu0
        %v3435 = vmul.f32 %v3430, 1.442695
        %v3436 = vpow.pop %v3435
        %v3437 = vadd.f32 %v3436, 1.0
        %v3438 = vmul.f32 %v3437, %v3437
        %v3439 = vadd.f32 %v3438, 1.0
        %v3440 = vrcp.pop %v3439
        %v3441 = vmul.f32 %v3440, 2.0
        %v3442 = vsub.f32 1.0, %v3441
        %v3443 = vmul.f32 %v3430, %v3442
        %v3444 = vadd.f32 %v3443, %v1433
        %v3445 = vld [vmem:[#allocation49] sm:$0x1]
        %v3446 = vld [vmem:[#allocation51] sm:$0x1]
        %v3447 = vsel %vm1491, %v3444, 0.0
        %3448 = vadd.xlane.f32.xlu0 %v3447
        %v3449 = vpop.xlane.xlu0 %3448
        %v3450 = vmul.f32 %v3449, %v2842
        %v3451 = vsub.f32 %v3444, %v3450
        %v3452 = vmul.f32 %v3451, %v3451
        %v3453 = vsel %vm1491, %v3452, 0.0
        %3454 = vadd.xlane.f32.xlu0 %v3453
        %v3455 = vpop.xlane.xlu0 %3454
        %v3456 = vmul.f32 %v3455, %v2842
        %v3457 = vadd.f32 %v3456, 1e-05
        %v3458 = vrsqrt.pop %v3457
        %v3459 = vmul.f32 %v3451, %v3458
        %v3461 = vlaneseq
        %v3462 = vshrl.u32 %v3461, 7
        %v3463 = vsub.s32 0, %v3462
        %v3464 = vrot.slane %v3445, %v3463
        %v3466 = vmul.f32 %v3459, %v3464
        %v3468 = vlaneseq
        %v3469 = vshrl.u32 %v3468, 7
        %v3470 = vsub.s32 0, %v3469
        %v3471 = vrot.slane %v3446, %v3470
        %v3473 = vadd.f32 %v3466, %v3471
        %s3474 = sld [smem:[#allocation52]]
        %v3475 = vstv %s3474
        %v3476 = vmul.f32 %v3121, %v3475
        %s3477 = sld [smem:[#allocation52 + $0x1]]
        %v3478 = vstv %s3477
        %v3479 = vmul.f32 %v3371, %v3478
        %v3480 = vadd.f32 %v3476, %v3479
        %s3481 = sld [smem:[#allocation52 + $0x2]]
        %v3482 = vstv %s3481
        %v3483 = vmul.f32 %v3473, %v3482
        %v3484 = vadd.f32 %v3480, %v3483
        %3485 = vst.msk [vmem:[#allocation2] sm:$0xff] %vm1491, %v3484
        %p3486 = scmp.eq.s32.totalorder %s103, 1
        // Predicated region
        $region281: #{albert_forward.5} parent=147 // pred_check
          %p3487 = pneg %p3486
        $region282: #{albert_forward.5} parent=147 // pred_check_branch
          %3489 = sbr.rel (%p3487) target = $region284
        $region283: #{albert_forward.5} parent=147 // pred_region
          %3490 = vst.msk [vmem:[%s1424] sm:$0xff] %vm1491, %v3484
        $region284: #{albert_forward.5} parent=147 // pred_fallthru
          _
        %s3491 = sand.u32 %s795, 1
        %s3492 = scalar_lea.sflag [#allocation5], %s3491
        %s3493 = sand.u32 %s795, 1
        %s3494 = smul.addr %s3493, 8
        %s3495 = scalar_lea.vmem [#allocation53], %s3494
        // Predicated region
        $region285: #{albert_forward.5} parent=147 // pred_check
          %p3496 = pneg %p805
        $region286: #{albert_forward.5} parent=147 // pred_check_branch
          %3498 = sbr.rel (%p3496) target = $region288
        $region287: #{albert_forward.5} parent=147 // pred_region
          %s3500 = ssub.s32 128, 128
          %3501 = vsyncadd %s3492, %s3500
          %s3502 = smul.addr %s102, 128
          %s3503 = scalar_lea.hbm %s65, %s3502
          %s3505 = sshll.u32 %s3495, 4
          %s3506 = int_to_ptr.vmem [resolvable:$true] %s3505
          %3508 = dma.vmem_to_hbm [thread:$0]  %s3506, 128, %s3503, %s3492
        $region288: #{albert_forward.5} parent=147 // pred_fallthru
          _
      $region148: #{albert_forward.5} parent=5 // pred_fallthru
        _
      %p3509 = scmp.le.s32.totalorder 2, %s93
      // Predicated region
      $region289: #{albert_forward.5} parent=5 // pred_check
        %p3510 = pneg %p3509
      $region290: #{albert_forward.5} parent=5 // pred_check_branch
        %3512 = sbr.rel (%p3510) target = $region292
      $region291: #{albert_forward.5} parent=5 // pred_region
        %s3513 = ssub.s32 %s93, 2
        // Predicated region
        $region293: #{albert_forward.5} parent=291 // pred_check
          %p3514 = pneg %p811
        $region294: #{albert_forward.5} parent=291 // pred_check_branch
          %3516 = sbr.rel (%p3514) target = $region296
        $region295: #{albert_forward.5} parent=291 // pred_region
          %s3517 = sand.u32 %s796, 1
          %s3518 = scalar_lea.sflag [#allocation5], %s3517
          %s3519 = sand.u32 %s796, 1
          %s3520 = smul.addr %s3519, 8
          %s3521 = scalar_lea.vmem [#allocation53], %s3520
          %3522 = dma.done %s3518, 128
        $region296: #{albert_forward.5} parent=291 // pred_fallthru
          _
      $region292: #{albert_forward.5} parent=5 // pred_fallthru
        _
    $region6: #{albert_forward.5} parent=1 // loop_footer
      %s97 = sadd.s32 1, %s93
    $region7: #{albert_forward.5} parent=1 // loop_footer_branch
      %92 = sbr.rel target = $region3
    $region8: #{albert_forward.5} parent=1 // loop_exit
      _
    %3523 = vsyncpa [#allocation4], 1
    %s3524 = scalar_lea.sflag [#allocation4], 1
    %3525 = vsyncpa %s3524, 1
    %3526 = vsyncpa [#allocation8], 1
    %3527 = vsyncpa [#allocation11], 1
    %3528 = vsyncpa [#allocation14], 1
    %3529 = vsyncpa [#allocation17], 1
    %3530 = vsyncpa [#allocation20], 1
    %3531 = vsyncpa [#allocation23], 1
    %3532 = vsyncpa [#allocation26], 1
    %3533 = vsyncpa [#allocation29], 1
    %3534 = vsyncpa [#allocation32], 1
    %3535 = vsyncpa [#allocation35], 1
    %3536 = vsyncpa [#allocation38], 1
    %3537 = vsyncpa [#allocation41], 1
    %3538 = vsyncpa [#allocation44], 1
    %3539 = vsyncpa [#allocation47], 1
    %3540 = vsyncpa [#allocation50], 1
    %3541 = vsyncpa [#allocation5], 1
    %s3542 = scalar_lea.sflag [#allocation5], 1
    %3543 = vsyncpa %s3542, 1
    %3544 = vsyncpa [#allocation6], 1
    %s3545 = scalar_lea.sflag [#allocation6], 1
    %3546 = vsyncpa %s3545, 1

</llo_original>
